<compile_context>
chip_gen: v6e
topology: v6e:2x2x1
jax: 0.10.0
libtpu: 0.0.40
codegen_flags: <defaults>
</compile_context>

<pallas_src>
import math
from functools import partial

import jax
import jax.numpy as jnp
import numpy as np
from jax.experimental import pallas as pl
from jax.experimental.pallas import tpu as pltpu

LN_EPS = 1e-5  # PyTorch nn.LayerNorm default


# --------------------------------------------------------------------------------------
# small helpers
# --------------------------------------------------------------------------------------
def _layernorm_f32(x, gamma, beta):
    mu = jnp.mean(x, axis=-1, keepdims=True)
    var = jnp.mean((x - mu) ** 2, axis=-1, keepdims=True)   # biased variance (PyTorch LN)
    return (x - mu) * jax.lax.rsqrt(var + LN_EPS) * gamma + beta


# erf via Abramowitz & Stegun 7.1.26: only exp/mul/add/recip, all of which lower in
# Mosaic.  The 1/(1+p|z|) divide goes through the EUP (approx reciprocal) to keep it off
# the VALU; resulting |erf error| ~1e-3 worst case, far inside the bf16-MXU tolerance.
_ERF_P = 0.3275911
_A1, _A2, _A3, _A4, _A5 = (0.254829592, -0.284496736, 1.421413741,
                           -1.453152027, 1.061405429)


def _erf_f32(z):
    za = jnp.abs(z)
    t = pl.reciprocal(1.0 + _ERF_P * za, approx=True)        # EUP, not VALU divide
    poly = ((((_A5 * t + _A4) * t + _A3) * t + _A2) * t + _A1) * t
    y = 1.0 - poly * jnp.exp(-za * za)
    return jnp.where(z >= 0.0, y, -y)


def _gelu_exact_f32(x):
    # TODO(synk): on v6e/v7x the Horner polynomial could be evaluated in bf16 (bf16 VALU)
    # for another ~2x VALU saving; kept f32 so the same kernel body is v5e-safe.
    return 0.5 * x * (1.0 + _erf_f32(x * (1.0 / math.sqrt(2.0))))


def _tpu_generation(default=6):
    try:
        kind = jax.devices()[0].device_kind.lower()
    except Exception:
        return default
    for g in (7, 6, 5, 4, 3, 2):
        if f"v{g}" in kind:
            return g
    return default


def _tpu_vmem_capacity_bytes():
    """Physical per-core VMEM capacity; defensive fallback if the query is unavailable."""
    try:
        info = pltpu.get_tpu_info()
        for attr in ("vmem_capacity_bytes", "vmem_bytes", "vmem_size_bytes"):
            cap = getattr(info, attr, None)
            if cap:
                return int(cap)
    except Exception:
        pass
    try:
        kind = jax.devices()[0].device_kind.lower()
    except Exception:
        kind = ""
    return (64 << 20) if "v7" in kind else (128 << 20)


def _const_index_map(ndim):
    zeros = (0,) * ndim
    return lambda b, t: zeros


# --------------------------------------------------------------------------------------
# kernel
# --------------------------------------------------------------------------------------
def block_kernel(x_ref,
                 ln1_g_ref, ln1_b_ref, wqkv_ref, wprojr_ref, bproj_ref,
                 ln2_g_ref, ln2_b_ref, wfc1_ref, bfc1_ref, wfc2_ref, bfc2_ref,
                 o_ref,
                 q_scr, k_scr, v_scr,
                 *, num_heads, head_dim, tq):
    qt = pl.program_id(1)
    N = x_ref.shape[1]
    C = num_heads * head_dim

    # ---- once per batch element (qt == 0): qkv for ALL tokens -> per-head scratch ----
    # Relies on the qt axis being "arbitrary" (sequential) and on scratch persistence.
    @pl.when(qt == 0)
    def _setup():
        xf = x_ref[0].astype(jnp.float32)                              # (N, C)
        h = _layernorm_f32(xf, ln1_g_ref[...], ln1_b_ref[...])
        qkv = jnp.dot(h.astype(jnp.bfloat16), wqkv_ref[...],
                      preferred_element_type=jnp.float32)              # one big MXU matmul
        qkv = qkv.astype(jnp.bfloat16)                                 # (N, 3C)
        # TODO(synk): a single pltpu.einshape relayout could replace these 3*H lane
        # slices (head_dim < 128 -> each column slice is an XLU extraction).
        for hh in range(num_heads):
            lo = hh * head_dim
            q_scr[hh] = qkv[:, lo:lo + head_dim]                       # pre-scaled via wqkv
            k_scr[hh] = qkv[:, C + lo:C + lo + head_dim]
            v_scr[hh] = qkv[:, 2 * C + lo:2 * C + lo + head_dim]

    # ---- per query tile --------------------------------------------------------------
    q_start = pl.multiple_of(qt * tq, tq)                              # sublane-aligned

    x_t = x_ref[0, pl.ds(q_start, tq), :].astype(jnp.float32)          # (TQ, C) residual rows

    q = q_scr[:, pl.ds(q_start, tq), :]                                # (H, TQ, hd) bf16
    k = k_scr[...]                                                     # (H, N, hd)  bf16
    v = v_scr[...]                                                     # (H, N, hd)  bf16

    # head-batched attention: one dot_general (leading batch dim) per step.
    s = jnp.einsum("hqd,hkd->hqk", q, k,
                   preferred_element_type=jnp.float32)                 # (H, TQ, N) f32
    m = jnp.max(s, axis=-1, keepdims=True)
    e = jnp.exp(s - m)
    denom = jnp.sum(e, axis=-1, keepdims=True)
    p = (e * pl.reciprocal(denom, approx=True)).astype(jnp.bfloat16)   # softmax (f32 stats)
    o_heads = jnp.einsum("hqk,hkd->hqd", p, v,
                         preferred_element_type=jnp.float32)           # (H, TQ, hd) f32

    # Head recombination fused into the projection: y = sum_h O_h @ Wproj_h + b.
    # (No attn_scr scratch, no masked per-head stores, no VMEM store/reload.)
    y = jnp.dot(o_heads[0].astype(jnp.bfloat16), wprojr_ref[0],
                preferred_element_type=jnp.float32)
    for hh in range(1, num_heads):
        y = y + jnp.dot(o_heads[hh].astype(jnp.bfloat16), wprojr_ref[hh],
                        preferred_element_type=jnp.float32)
    y = y + bproj_ref[...]                                             # (TQ, C) f32

    x1 = x_t + y          # residual; drop_path / proj_drop are identity at rate 0.0

    h2 = _layernorm_f32(x1, ln2_g_ref[...], ln2_b_ref[...])
    h2 = jnp.dot(h2.astype(jnp.bfloat16), wfc1_ref[...],
                 preferred_element_type=jnp.float32) + bfc1_ref[...]
    h2 = _gelu_exact_f32(h2)
    h2 = jnp.dot(h2.astype(jnp.bfloat16), wfc2_ref[...],
                 preferred_element_type=jnp.float32) + bfc2_ref[...]

    o_ref[...] = (x1 + h2)[None].astype(o_ref.dtype)


# --------------------------------------------------------------------------------------
# wrapper
# --------------------------------------------------------------------------------------
def block_forward(x, params, *, num_heads, tq=None):
    B, N, C = x.shape
    assert C % num_heads == 0
    head_dim = C // num_heads
    scale = head_dim ** (-0.5)

    gen = _tpu_generation()
    if tq is None:
        tq_max = 256 if gen >= 6 else 128     # 256x256 MXUs on v6e/v7x; 128-M on v5e
        if N <= tq_max:
            tq = N
        else:
            cands = [t for t in range(8, tq_max + 1, 8) if N % t == 0]
            tq = max(cands) if cands else N
    assert N % tq == 0, "pad N to a multiple of the query tile (e.g. ViT's 197 -> 200/256)"
    n_qt = N // tq
    assert n_qt == 1 or tq % 8 == 0, "query tile must be sublane-aligned (multiple of 8)"

    # ---- parameter prep (host-side, outside the kernel) ------------------------------
    # Fold the 1/sqrt(head_dim) attention scale into the Q columns of wqkv.
    wqkv = params["wqkv"].astype(jnp.float32)
    wqkv = wqkv.at[:, :C].multiply(scale).astype(jnp.bfloat16)
    # Reshape wproj (C, C) -> (H, hd, C) so head recombination fuses into the projection.
    wprojr = params["wproj"].astype(jnp.float32).reshape(num_heads, head_dim, C)
    wprojr = wprojr.astype(jnp.bfloat16)
    wfc1 = params["wfc1"].astype(jnp.bfloat16)
    wfc2 = params["wfc2"].astype(jnp.bfloat16)
    plist = [params["ln1_g"], params["ln1_b"], wqkv, wprojr, params["bproj"],
             params["ln2_g"], params["ln2_b"], wfc1, params["bfc1"], wfc2, params["bfc2"]]
    hidden = params["wfc1"].shape[1]

    # ---- specs ------------------------------------------------------------------------
    in_specs = [
        pl.BlockSpec((1, N, C), lambda b, t: (b, 0, 0)),    # full token window (Q/K/V + residual)
    ]
    # Weights: constant block index -> fetched once; single-buffered (Buffered(1)) since
    # the second pipeline buffer would be dead VMEM (matters for ViT-L/H on v7x).
    in_specs += [
        pl.BlockSpec(p.shape, _const_index_map(p.ndim), pipeline_mode=pl.Buffered(1))
        for p in plist
    ]
    out_specs = pl.BlockSpec((1, tq, C), lambda b, t: (b, t, 0))

    scratch_shapes = [
        pltpu.VMEM((num_heads, N, head_dim), jnp.bfloat16),  # Q (same layout as K/V)
        pltpu.VMEM((num_heads, N, head_dim), jnp.bfloat16),  # K
        pltpu.VMEM((num_heads, N, head_dim), jnp.bfloat16),  # V
    ]

    # ---- VMEM budget: weights single-buffered + activations + scratch + f32 temps -----
    itemsize = x.dtype.itemsize
    bytes_params = sum(int(np.prod(p.shape)) * p.dtype.itemsize for p in plist)
    bytes_x = 2 * N * C * itemsize                       # double-buffered input window
    bytes_out = 2 * tq * C * itemsize                    # double-buffered output tile
    bytes_scr = 3 * num_heads * N * head_dim * 2         # Q/K/V bf16 scratch
    bytes_tmp = (N * 3 * C * (4 + 2)                     # qkv f32 accumulator + bf16 copy
                 + 2 * num_heads * tq * N * 4            # f32 scores + exp
                 + 2 * tq * hidden * 4                   # fc1 output + GELU temporaries
                 + 4 * tq * C * 4)                       # misc (TQ, C) f32 temporaries
    vmem_needed = bytes_params + bytes_x + bytes_out + bytes_scr + bytes_tmp + (8 << 20)
    vmem_cap = int(0.85 * _tpu_vmem_capacity_bytes())    # leave compiler/internal headroom
    vmem_limit = int(min(max(vmem_needed, 32 << 20), vmem_cap))

    # ---- cost estimate (weights fetched once per call, not per batch element) ---------
    flops = int(B * (2 * N * C * 3 * C                      # qkv
                     + 4 * num_heads * N * N * head_dim     # q@k^T + p@v
                     + 2 * N * C * C                        # proj
                     + 4 * N * C * hidden))                 # fc1 + fc2
    transcendentals = int(B * N * (num_heads * N + hidden))
    bytes_accessed = int(2 * x.size * itemsize + bytes_params)

    kernel = partial(block_kernel, num_heads=num_heads, head_dim=head_dim, tq=tq)

    return pl.pallas_call(
        kernel,
        out_shape=jax.ShapeDtypeStruct((B, N, C), x.dtype),
        grid_spec=pltpu.PrefetchScalarGridSpec(
            num_scalar_prefetch=0,
            grid=(B, n_qt),
            in_specs=in_specs,
            out_specs=out_specs,
            scratch_shapes=scratch_shapes,
        ),
        compiler_params=pltpu.CompilerParams(
            # qt stays "arbitrary": K/V scratch written at qt==0 is reused by later tiles.
            # TODO(synk): for B==1 on v7x (2 TCs), add a parallel head-group / qt axis with
            # per-core K/V recompute so the second TensorCore is not idle.
            dimension_semantics=("parallel", "arbitrary"),
            vmem_limit_bytes=vmem_limit,
        ),
        cost_estimate=pl.CostEstimate(flops=flops, transcendentals=transcendentals,
                                      bytes_accessed=bytes_accessed),
    )(x, *plist)


# --------------------------------------------------------------------------------------
# pure-JAX reference + demo
# --------------------------------------------------------------------------------------
def block_reference(x, p, *, num_heads):
    """Pure-JAX (f32) reference mirroring the PyTorch forward exactly."""
    B, N, C = x.shape
    hd = C // num_heads
    scale = hd ** (-0.5)

    def ln(v, g, b):
        mu = v.mean(-1, keepdims=True)
        var = ((v - mu) ** 2).mean(-1, keepdims=True)
        return (v - mu) / jnp.sqrt(var + LN_EPS) * g + b

    h = ln(x, p["ln1_g"], p["ln1_b"])
    qkv = (h @ p["wqkv"]).reshape(B, N, 3, num_heads, hd).transpose(2, 0, 3, 1, 4)
    q, k, v = qkv[0], qkv[1], qkv[2]                               # (B, H, N, hd)
    attn = jnp.einsum("bhqd,bhkd->bhqk", q, k) * scale
    attn = jax.nn.softmax(attn, axis=-1)
    y = jnp.einsum("bhqk,bhkd->bhqd", attn, v).transpose(0, 2, 1, 3).reshape(B, N, C)
    y = y @ p["wproj"] + p["bproj"]
    x1 = x + y
    h2 = ln(x1, p["ln2_g"], p["ln2_b"])
    h2 = h2 @ p["wfc1"] + p["bfc1"]
    h2 = 0.5 * h2 * (1.0 + jax.lax.erf(h2 / jnp.sqrt(2.0)))        # exact nn.GELU
    h2 = h2 @ p["wfc2"] + p["bfc2"]
    return x1 + h2


def make_params(key, dim, mlp_hidden):
    ks = jax.random.split(key, 8)
    w = lambda k, shape: 0.02 * jax.random.normal(k, shape, jnp.float32)
    return {
        "ln1_g": 1.0 + 0.1 * jax.random.normal(ks[4], (1, dim), jnp.float32),
        "ln1_b": 0.05 * jax.random.normal(ks[5], (1, dim), jnp.float32),
        "wqkv":  w(ks[0], (dim, 3 * dim)),            # qkv_bias=False (module default)
        "wproj": w(ks[1], (dim, dim)),
        "bproj": 0.01 * jnp.ones((1, dim), jnp.float32),
        "ln2_g": 1.0 + 0.1 * jax.random.normal(ks[6], (1, dim), jnp.float32),
        "ln2_b": 0.05 * jax.random.normal(ks[7], (1, dim), jnp.float32),
        "wfc1":  w(ks[2], (dim, mlp_hidden)),
        "bfc1":  0.01 * jnp.ones((1, mlp_hidden), jnp.float32),
        "wfc2":  w(ks[3], (mlp_hidden, dim)),
        "bfc2":  0.01 * jnp.ones((1, dim), jnp.float32),
    }


if __name__ == "__main__":
    # Lane/sublane-friendly small demo shape: N % 8 == 0, C % 128 == 0.
    B, N, C = 2, 32, 128
    NUM_HEADS = 4                 # head_dim = 32
    MLP_HIDDEN = int(C * 4.0)     # mlp_ratio = 4.0

    key = jax.random.PRNGKey(0)
    kx, kp = jax.random.split(key)
    x = jax.random.normal(kx, (B, N, C), jnp.float32)
    params = make_params(kp, C, MLP_HIDDEN)

    out = jax.block_until_ready(
        block_forward(x, params, num_heads=NUM_HEADS, tq=16))   # 2 query tiles -> exercises tiling

    ref = jax.block_until_ready(block_reference(x, params, num_heads=NUM_HEADS))
    # bf16 MXU operands + approx reciprocals -> tolerance loosened vs the f32 reference.
    np.testing.assert_allclose(np.asarray(out), np.asarray(ref), atol=2e-2, rtol=2e-2)

    print("KERNEL_OK")
</pallas_src>

<mosaic_0001>
module attributes {stable_mosaic.version = 11 : i64} {
  func.func @block_kernel(%arg0: i32, %arg1: i32, %arg2: memref<1x32x128xf32, #tpu.memory_space<vmem>>, %arg3: memref<1x128xf32, #tpu.memory_space<vmem>>, %arg4: memref<1x128xf32, #tpu.memory_space<vmem>>, %arg5: memref<128x384xbf16, #tpu.memory_space<vmem>>, %arg6: memref<4x32x128xbf16, #tpu.memory_space<vmem>>, %arg7: memref<1x128xf32, #tpu.memory_space<vmem>>, %arg8: memref<1x128xf32, #tpu.memory_space<vmem>>, %arg9: memref<1x128xf32, #tpu.memory_space<vmem>>, %arg10: memref<128x512xbf16, #tpu.memory_space<vmem>>, %arg11: memref<1x512xf32, #tpu.memory_space<vmem>>, %arg12: memref<512x128xbf16, #tpu.memory_space<vmem>>, %arg13: memref<1x128xf32, #tpu.memory_space<vmem>>, %arg14: memref<1x16x128xf32, #tpu.memory_space<vmem>>, %arg15: memref<4x32x32xbf16, #tpu.memory_space<vmem>>, %arg16: memref<4x32x32xbf16, #tpu.memory_space<vmem>>, %arg17: memref<4x32x32xbf16, #tpu.memory_space<vmem>>) attributes {dimension_semantics = [#tpu.dimension_semantics<parallel>, #tpu.dimension_semantics<arbitrary>], iteration_bounds = array<i64: 2, 2>, scalar_prefetch = 0 : i64, scratch_operands = 3 : i64, tpu.core_type = #tpu.core_type<tc>, window_params = [{transform_indices = @transform_0, window_bounds = array<i64: 1, 32, 128>}, {pipeline_mode = #tpu.pipeline_mode<synchronous>, transform_indices = @transform_1, window_bounds = array<i64: 1, 128>}, {pipeline_mode = #tpu.pipeline_mode<synchronous>, transform_indices = @transform_2, window_bounds = array<i64: 1, 128>}, {pipeline_mode = #tpu.pipeline_mode<synchronous>, transform_indices = @transform_3, window_bounds = array<i64: 128, 384>}, {pipeline_mode = #tpu.pipeline_mode<synchronous>, transform_indices = @transform_4, window_bounds = array<i64: 4, 32, 128>}, {pipeline_mode = #tpu.pipeline_mode<synchronous>, transform_indices = @transform_5, window_bounds = array<i64: 1, 128>}, {pipeline_mode = #tpu.pipeline_mode<synchronous>, transform_indices = @transform_6, window_bounds = array<i64: 1, 128>}, {pipeline_mode = #tpu.pipeline_mode<synchronous>, transform_indices = @transform_7, window_bounds = array<i64: 1, 128>}, {pipeline_mode = #tpu.pipeline_mode<synchronous>, transform_indices = @transform_8, window_bounds = array<i64: 128, 512>}, {pipeline_mode = #tpu.pipeline_mode<synchronous>, transform_indices = @transform_9, window_bounds = array<i64: 1, 512>}, {pipeline_mode = #tpu.pipeline_mode<synchronous>, transform_indices = @transform_10, window_bounds = array<i64: 512, 128>}, {pipeline_mode = #tpu.pipeline_mode<synchronous>, transform_indices = @transform_11, window_bounds = array<i64: 1, 128>}, {transform_indices = @transform_12, window_bounds = array<i64: 1, 16, 128>}]} {
    %c0_i32 = arith.constant 0 : i32
    %0 = arith.cmpi eq, %arg1, %c0_i32 : i32
    %1 = arith.extui %0 : i1 to i32
    %c0_i32_0 = arith.constant 0 : i32
    %2 = arith.cmpi ne, %1, %c0_i32_0 : i32
    scf.if %2 {
      %c0_64 = arith.constant 0 : index
      %c0_65 = arith.constant 0 : index
      %c0_66 = arith.constant 0 : index
      %134 = vector.load %arg2[%c0_64, %c0_65, %c0_66] : memref<1x32x128xf32, #tpu.memory_space<vmem>>, vector<1x32x128xf32>
      %135 = vector.shape_cast %134 : vector<1x32x128xf32> to vector<32x128xf32>
      %c0_67 = arith.constant 0 : index
      %c0_68 = arith.constant 0 : index
      %136 = vector.load %arg3[%c0_67, %c0_68] : memref<1x128xf32, #tpu.memory_space<vmem>>, vector<1x128xf32>
      %c0_69 = arith.constant 0 : index
      %c0_70 = arith.constant 0 : index
      %137 = vector.load %arg4[%c0_69, %c0_70] : memref<1x128xf32, #tpu.memory_space<vmem>>, vector<1x128xf32>
      %cst_71 = arith.constant dense<0.000000e+00> : vector<32xf32>
      %138 = vector.multi_reduction <add>, %135, %cst_71 [1] : vector<32x128xf32> to vector<32xf32>
      %139 = vector.shape_cast %138 : vector<32xf32> to vector<32x1xf32>
      %cst_72 = arith.constant 1.280000e+02 : f32
      %140 = vector.broadcast %cst_72 : f32 to vector<32x1xf32>
      %141 = arith.divf %139, %140 : vector<32x1xf32>
      %142 = vector.broadcast %141 : vector<32x1xf32> to vector<32x128xf32>
      %143 = arith.subf %135, %142 : vector<32x128xf32>
      %144 = arith.mulf %143, %143 : vector<32x128xf32>
      %cst_73 = arith.constant dense<0.000000e+00> : vector<32xf32>
      %145 = vector.multi_reduction <add>, %144, %cst_73 [1] : vector<32x128xf32> to vector<32xf32>
      %146 = vector.shape_cast %145 : vector<32xf32> to vector<32x1xf32>
      %cst_74 = arith.constant 1.280000e+02 : f32
      %147 = vector.broadcast %cst_74 : f32 to vector<32x1xf32>
      %148 = arith.divf %146, %147 : vector<32x1xf32>
      %149 = vector.broadcast %141 : vector<32x1xf32> to vector<32x128xf32>
      %150 = arith.subf %135, %149 : vector<32x128xf32>
      %cst_75 = arith.constant 9.99999974E-6 : f32
      %151 = vector.broadcast %cst_75 : f32 to vector<32x1xf32>
      %152 = arith.addf %148, %151 : vector<32x1xf32>
      %153 = math.rsqrt %152 : vector<32x1xf32>
      %154 = vector.broadcast %153 : vector<32x1xf32> to vector<32x128xf32>
      %155 = arith.mulf %150, %154 : vector<32x128xf32>
      %156 = vector.broadcast %136 : vector<1x128xf32> to vector<32x128xf32>
      %157 = arith.mulf %155, %156 : vector<32x128xf32>
      %158 = vector.broadcast %137 : vector<1x128xf32> to vector<32x128xf32>
      %159 = arith.addf %157, %158 : vector<32x128xf32>
      %160 = arith.truncf %159 : vector<32x128xf32> to vector<32x128xbf16>
      %c0_76 = arith.constant 0 : index
      %c0_77 = arith.constant 0 : index
      %161 = vector.load %arg5[%c0_76, %c0_77] : memref<128x384xbf16, #tpu.memory_space<vmem>>, vector<128x384xbf16>
      %cst_78 = arith.constant dense<0.000000e+00> : vector<32x384xf32>
      %162 = tpu.matmul %160, %161, %cst_78 {dimension_numbers = #tpu.dot_dimension_numbers<[1], [0], [0], [1], [0, 0, 1, 1], [], []>} : vector<32x128xbf16>, vector<128x384xbf16>, vector<32x384xf32> -> vector<32x384xf32>
      %163 = arith.truncf %162 : vector<32x384xf32> to vector<32x384xbf16>
      %164 = vector.extract_strided_slice %163 {offsets = [0, 0], sizes = [32, 32], strides = [1, 1]} : vector<32x384xbf16> to vector<32x32xbf16>
      %c0_79 = arith.constant 0 : index
      %c0_80 = arith.constant 0 : index
      %c0_81 = arith.constant 0 : index
      %165 = vector.load %arg15[%c0_79, %c0_80, %c0_81] : memref<4x32x32xbf16, #tpu.memory_space<vmem>>, vector<1x32x32xbf16>
      %166 = vector.shape_cast %165 : vector<1x32x32xbf16> to vector<32x32xbf16>
      %167 = vector.shape_cast %164 : vector<32x32xbf16> to vector<1x32x32xbf16>
      tpu.vector_store %arg15[%c0_79, %c0_80, %c0_81], %167 {strides = array<i32>} : memref<4x32x32xbf16, #tpu.memory_space<vmem>>, vector<1x32x32xbf16>,
      %168 = vector.extract_strided_slice %163 {offsets = [0, 128], sizes = [32, 32], strides = [1, 1]} : vector<32x384xbf16> to vector<32x32xbf16>
      %c0_82 = arith.constant 0 : index
      %c0_83 = arith.constant 0 : index
      %c0_84 = arith.constant 0 : index
      %169 = vector.load %arg16[%c0_82, %c0_83, %c0_84] : memref<4x32x32xbf16, #tpu.memory_space<vmem>>, vector<1x32x32xbf16>
      %170 = vector.shape_cast %169 : vector<1x32x32xbf16> to vector<32x32xbf16>
      %171 = vector.shape_cast %168 : vector<32x32xbf16> to vector<1x32x32xbf16>
      tpu.vector_store %arg16[%c0_82, %c0_83, %c0_84], %171 {strides = array<i32>} : memref<4x32x32xbf16, #tpu.memory_space<vmem>>, vector<1x32x32xbf16>,
      %172 = vector.extract_strided_slice %163 {offsets = [0, 256], sizes = [32, 32], strides = [1, 1]} : vector<32x384xbf16> to vector<32x32xbf16>
      %c0_85 = arith.constant 0 : index
      %c0_86 = arith.constant 0 : index
      %c0_87 = arith.constant 0 : index
      %173 = vector.load %arg17[%c0_85, %c0_86, %c0_87] : memref<4x32x32xbf16, #tpu.memory_space<vmem>>, vector<1x32x32xbf16>
      %174 = vector.shape_cast %173 : vector<1x32x32xbf16> to vector<32x32xbf16>
      %175 = vector.shape_cast %172 : vector<32x32xbf16> to vector<1x32x32xbf16>
      tpu.vector_store %arg17[%c0_85, %c0_86, %c0_87], %175 {strides = array<i32>} : memref<4x32x32xbf16, #tpu.memory_space<vmem>>, vector<1x32x32xbf16>,
      %176 = vector.extract_strided_slice %163 {offsets = [0, 32], sizes = [32, 32], strides = [1, 1]} : vector<32x384xbf16> to vector<32x32xbf16>
      %c1_88 = arith.constant 1 : index
      %c0_89 = arith.constant 0 : index
      %c0_90 = arith.constant 0 : index
      %177 = vector.load %arg15[%c1_88, %c0_89, %c0_90] : memref<4x32x32xbf16, #tpu.memory_space<vmem>>, vector<1x32x32xbf16>
      %178 = vector.shape_cast %177 : vector<1x32x32xbf16> to vector<32x32xbf16>
      %179 = vector.shape_cast %176 : vector<32x32xbf16> to vector<1x32x32xbf16>
      tpu.vector_store %arg15[%c1_88, %c0_89, %c0_90], %179 {strides = array<i32>} : memref<4x32x32xbf16, #tpu.memory_space<vmem>>, vector<1x32x32xbf16>,
      %180 = vector.extract_strided_slice %163 {offsets = [0, 160], sizes = [32, 32], strides = [1, 1]} : vector<32x384xbf16> to vector<32x32xbf16>
      %c1_91 = arith.constant 1 : index
      %c0_92 = arith.constant 0 : index
      %c0_93 = arith.constant 0 : index
      %181 = vector.load %arg16[%c1_91, %c0_92, %c0_93] : memref<4x32x32xbf16, #tpu.memory_space<vmem>>, vector<1x32x32xbf16>
      %182 = vector.shape_cast %181 : vector<1x32x32xbf16> to vector<32x32xbf16>
      %183 = vector.shape_cast %180 : vector<32x32xbf16> to vector<1x32x32xbf16>
      tpu.vector_store %arg16[%c1_91, %c0_92, %c0_93], %183 {strides = array<i32>} : memref<4x32x32xbf16, #tpu.memory_space<vmem>>, vector<1x32x32xbf16>,
      %184 = vector.extract_strided_slice %163 {offsets = [0, 288], sizes = [32, 32], strides = [1, 1]} : vector<32x384xbf16> to vector<32x32xbf16>
      %c1_94 = arith.constant 1 : index
      %c0_95 = arith.constant 0 : index
      %c0_96 = arith.constant 0 : index
      %185 = vector.load %arg17[%c1_94, %c0_95, %c0_96] : memref<4x32x32xbf16, #tpu.memory_space<vmem>>, vector<1x32x32xbf16>
      %186 = vector.shape_cast %185 : vector<1x32x32xbf16> to vector<32x32xbf16>
      %187 = vector.shape_cast %184 : vector<32x32xbf16> to vector<1x32x32xbf16>
      tpu.vector_store %arg17[%c1_94, %c0_95, %c0_96], %187 {strides = array<i32>} : memref<4x32x32xbf16, #tpu.memory_space<vmem>>, vector<1x32x32xbf16>,
      %188 = vector.extract_strided_slice %163 {offsets = [0, 64], sizes = [32, 32], strides = [1, 1]} : vector<32x384xbf16> to vector<32x32xbf16>
      %c2_97 = arith.constant 2 : index
      %c0_98 = arith.constant 0 : index
      %c0_99 = arith.constant 0 : index
      %189 = vector.load %arg15[%c2_97, %c0_98, %c0_99] : memref<4x32x32xbf16, #tpu.memory_space<vmem>>, vector<1x32x32xbf16>
      %190 = vector.shape_cast %189 : vector<1x32x32xbf16> to vector<32x32xbf16>
      %191 = vector.shape_cast %188 : vector<32x32xbf16> to vector<1x32x32xbf16>
      tpu.vector_store %arg15[%c2_97, %c0_98, %c0_99], %191 {strides = array<i32>} : memref<4x32x32xbf16, #tpu.memory_space<vmem>>, vector<1x32x32xbf16>,
      %192 = vector.extract_strided_slice %163 {offsets = [0, 192], sizes = [32, 32], strides = [1, 1]} : vector<32x384xbf16> to vector<32x32xbf16>
      %c2_100 = arith.constant 2 : index
      %c0_101 = arith.constant 0 : index
      %c0_102 = arith.constant 0 : index
      %193 = vector.load %arg16[%c2_100, %c0_101, %c0_102] : memref<4x32x32xbf16, #tpu.memory_space<vmem>>, vector<1x32x32xbf16>
      %194 = vector.shape_cast %193 : vector<1x32x32xbf16> to vector<32x32xbf16>
      %195 = vector.shape_cast %192 : vector<32x32xbf16> to vector<1x32x32xbf16>
      tpu.vector_store %arg16[%c2_100, %c0_101, %c0_102], %195 {strides = array<i32>} : memref<4x32x32xbf16, #tpu.memory_space<vmem>>, vector<1x32x32xbf16>,
      %196 = vector.extract_strided_slice %163 {offsets = [0, 320], sizes = [32, 32], strides = [1, 1]} : vector<32x384xbf16> to vector<32x32xbf16>
      %c2_103 = arith.constant 2 : index
      %c0_104 = arith.constant 0 : index
      %c0_105 = arith.constant 0 : index
      %197 = vector.load %arg17[%c2_103, %c0_104, %c0_105] : memref<4x32x32xbf16, #tpu.memory_space<vmem>>, vector<1x32x32xbf16>
      %198 = vector.shape_cast %197 : vector<1x32x32xbf16> to vector<32x32xbf16>
      %199 = vector.shape_cast %196 : vector<32x32xbf16> to vector<1x32x32xbf16>
      tpu.vector_store %arg17[%c2_103, %c0_104, %c0_105], %199 {strides = array<i32>} : memref<4x32x32xbf16, #tpu.memory_space<vmem>>, vector<1x32x32xbf16>,
      %200 = vector.extract_strided_slice %163 {offsets = [0, 96], sizes = [32, 32], strides = [1, 1]} : vector<32x384xbf16> to vector<32x32xbf16>
      %c3_106 = arith.constant 3 : index
      %c0_107 = arith.constant 0 : index
      %c0_108 = arith.constant 0 : index
      %201 = vector.load %arg15[%c3_106, %c0_107, %c0_108] : memref<4x32x32xbf16, #tpu.memory_space<vmem>>, vector<1x32x32xbf16>
      %202 = vector.shape_cast %201 : vector<1x32x32xbf16> to vector<32x32xbf16>
      %203 = vector.shape_cast %200 : vector<32x32xbf16> to vector<1x32x32xbf16>
      tpu.vector_store %arg15[%c3_106, %c0_107, %c0_108], %203 {strides = array<i32>} : memref<4x32x32xbf16, #tpu.memory_space<vmem>>, vector<1x32x32xbf16>,
      %204 = vector.extract_strided_slice %163 {offsets = [0, 224], sizes = [32, 32], strides = [1, 1]} : vector<32x384xbf16> to vector<32x32xbf16>
      %c3_109 = arith.constant 3 : index
      %c0_110 = arith.constant 0 : index
      %c0_111 = arith.constant 0 : index
      %205 = vector.load %arg16[%c3_109, %c0_110, %c0_111] : memref<4x32x32xbf16, #tpu.memory_space<vmem>>, vector<1x32x32xbf16>
      %206 = vector.shape_cast %205 : vector<1x32x32xbf16> to vector<32x32xbf16>
      %207 = vector.shape_cast %204 : vector<32x32xbf16> to vector<1x32x32xbf16>
      tpu.vector_store %arg16[%c3_109, %c0_110, %c0_111], %207 {strides = array<i32>} : memref<4x32x32xbf16, #tpu.memory_space<vmem>>, vector<1x32x32xbf16>,
      %208 = vector.extract_strided_slice %163 {offsets = [0, 352], sizes = [32, 32], strides = [1, 1]} : vector<32x384xbf16> to vector<32x32xbf16>
      %c3_112 = arith.constant 3 : index
      %c0_113 = arith.constant 0 : index
      %c0_114 = arith.constant 0 : index
      %209 = vector.load %arg17[%c3_112, %c0_113, %c0_114] : memref<4x32x32xbf16, #tpu.memory_space<vmem>>, vector<1x32x32xbf16>
      %210 = vector.shape_cast %209 : vector<1x32x32xbf16> to vector<32x32xbf16>
      %211 = vector.shape_cast %208 : vector<32x32xbf16> to vector<1x32x32xbf16>
      tpu.vector_store %arg17[%c3_112, %c0_113, %c0_114], %211 {strides = array<i32>} : memref<4x32x32xbf16, #tpu.memory_space<vmem>>, vector<1x32x32xbf16>,
    } else {
    }
    %c16_i32 = arith.constant 16 : i32
    %3 = arith.muli %arg1, %c16_i32 : i32
    %4 = tpu.assume_multiple %3, 16 : i32
    %c0 = arith.constant 0 : index
    %5 = arith.index_cast %4 : i32 to index
    %c0_1 = arith.constant 0 : index
    %6 = vector.load %arg2[%c0, %5, %c0_1] : memref<1x32x128xf32, #tpu.memory_space<vmem>>, vector<1x16x128xf32>
    %7 = vector.shape_cast %6 : vector<1x16x128xf32> to vector<16x128xf32>
    %c0_2 = arith.constant 0 : index
    %8 = arith.index_cast %4 : i32 to index
    %c0_3 = arith.constant 0 : index
    %9 = vector.load %arg15[%c0_2, %8, %c0_3] : memref<4x32x32xbf16, #tpu.memory_space<vmem>>, vector<4x16x32xbf16>
    %c0_4 = arith.constant 0 : index
    %c0_5 = arith.constant 0 : index
    %c0_6 = arith.constant 0 : index
    %10 = vector.load %arg16[%c0_4, %c0_5, %c0_6] : memref<4x32x32xbf16, #tpu.memory_space<vmem>>, vector<4x32x32xbf16>
    %c0_7 = arith.constant 0 : index
    %c0_8 = arith.constant 0 : index
    %c0_9 = arith.constant 0 : index
    %11 = vector.load %arg17[%c0_7, %c0_8, %c0_9] : memref<4x32x32xbf16, #tpu.memory_space<vmem>>, vector<4x32x32xbf16>
    "tpu.trace_start"() <{level = 10 : i32, message = "hqd,hkd->hqk"}> : () -> ()
    %cst = arith.constant dense<0.000000e+00> : vector<4x16x32xf32>
    %12 = tpu.matmul %9, %10, %cst {dimension_numbers = #tpu.dot_dimension_numbers<[2], [2], [1], [1], [0, 0, 0, 1, 1, 1], [0], [0]>} : vector<4x16x32xbf16>, vector<4x32x32xbf16>, vector<4x16x32xf32> -> vector<4x16x32xf32>
    "tpu.trace_stop"() : () -> ()
    %cst_10 = arith.constant dense<0xFF800000> : vector<4x16xf32>
    %13 = vector.multi_reduction <maximumf>, %12, %cst_10 [2] : vector<4x16x32xf32> to vector<4x16xf32>
    %14 = vector.shape_cast %13 : vector<4x16xf32> to vector<4x16x1xf32>
    %15 = vector.broadcast %14 : vector<4x16x1xf32> to vector<4x16x32xf32>
    %16 = arith.subf %12, %15 : vector<4x16x32xf32>
    %17 = math.exp %16 : vector<4x16x32xf32>
    %cst_11 = arith.constant dense<0.000000e+00> : vector<4x16xf32>
    %18 = vector.multi_reduction <add>, %17, %cst_11 [2] : vector<4x16x32xf32> to vector<4x16xf32>
    %19 = vector.shape_cast %18 : vector<4x16xf32> to vector<4x16x1xf32>
    %20 = tpu.reciprocal %19 {approx = true} : vector<4x16x1xf32> -> vector<4x16x1xf32>
    %21 = vector.broadcast %20 : vector<4x16x1xf32> to vector<4x16x32xf32>
    %22 = arith.mulf %17, %21 : vector<4x16x32xf32>
    %23 = arith.truncf %22 : vector<4x16x32xf32> to vector<4x16x32xbf16>
    "tpu.trace_start"() <{level = 10 : i32, message = "hqk,hkd->hqd"}> : () -> ()
    %cst_12 = arith.constant dense<0.000000e+00> : vector<4x16x32xf32>
    %24 = tpu.matmul %23, %11, %cst_12 {dimension_numbers = #tpu.dot_dimension_numbers<[2], [1], [1], [2], [0, 0, 0, 1, 1, 2], [0], [0]>} : vector<4x16x32xbf16>, vector<4x32x32xbf16>, vector<4x16x32xf32> -> vector<4x16x32xf32>
    "tpu.trace_stop"() : () -> ()
    %25 = vector.extract_strided_slice %24 {offsets = [0, 0, 0], sizes = [1, 16, 32], strides = [1, 1, 1]} : vector<4x16x32xf32> to vector<1x16x32xf32>
    %26 = vector.shape_cast %25 : vector<1x16x32xf32> to vector<16x32xf32>
    %27 = arith.truncf %26 : vector<16x32xf32> to vector<16x32xbf16>
    %c0_13 = arith.constant 0 : index
    %c0_14 = arith.constant 0 : index
    %c0_15 = arith.constant 0 : index
    %28 = vector.load %arg6[%c0_13, %c0_14, %c0_15] : memref<4x32x128xbf16, #tpu.memory_space<vmem>>, vector<1x32x128xbf16>
    %29 = vector.shape_cast %28 : vector<1x32x128xbf16> to vector<32x128xbf16>
    %cst_16 = arith.constant dense<0.000000e+00> : vector<16x128xf32>
    %30 = tpu.matmul %27, %29, %cst_16 {dimension_numbers = #tpu.dot_dimension_numbers<[1], [0], [0], [1], [0, 0, 1, 1], [], []>} : vector<16x32xbf16>, vector<32x128xbf16>, vector<16x128xf32> -> vector<16x128xf32>
    %31 = vector.extract_strided_slice %24 {offsets = [1, 0, 0], sizes = [1, 16, 32], strides = [1, 1, 1]} : vector<4x16x32xf32> to vector<1x16x32xf32>
    %32 = vector.shape_cast %31 : vector<1x16x32xf32> to vector<16x32xf32>
    %33 = arith.truncf %32 : vector<16x32xf32> to vector<16x32xbf16>
    %c1 = arith.constant 1 : index
    %c0_17 = arith.constant 0 : index
    %c0_18 = arith.constant 0 : index
    %34 = vector.load %arg6[%c1, %c0_17, %c0_18] : memref<4x32x128xbf16, #tpu.memory_space<vmem>>, vector<1x32x128xbf16>
    %35 = vector.shape_cast %34 : vector<1x32x128xbf16> to vector<32x128xbf16>
    %cst_19 = arith.constant dense<0.000000e+00> : vector<16x128xf32>
    %36 = tpu.matmul %33, %35, %cst_19 {dimension_numbers = #tpu.dot_dimension_numbers<[1], [0], [0], [1], [0, 0, 1, 1], [], []>} : vector<16x32xbf16>, vector<32x128xbf16>, vector<16x128xf32> -> vector<16x128xf32>
    %37 = arith.addf %30, %36 : vector<16x128xf32>
    %38 = vector.extract_strided_slice %24 {offsets = [2, 0, 0], sizes = [1, 16, 32], strides = [1, 1, 1]} : vector<4x16x32xf32> to vector<1x16x32xf32>
    %39 = vector.shape_cast %38 : vector<1x16x32xf32> to vector<16x32xf32>
    %40 = arith.truncf %39 : vector<16x32xf32> to vector<16x32xbf16>
    %c2 = arith.constant 2 : index
    %c0_20 = arith.constant 0 : index
    %c0_21 = arith.constant 0 : index
    %41 = vector.load %arg6[%c2, %c0_20, %c0_21] : memref<4x32x128xbf16, #tpu.memory_space<vmem>>, vector<1x32x128xbf16>
    %42 = vector.shape_cast %41 : vector<1x32x128xbf16> to vector<32x128xbf16>
    %cst_22 = arith.constant dense<0.000000e+00> : vector<16x128xf32>
    %43 = tpu.matmul %40, %42, %cst_22 {dimension_numbers = #tpu.dot_dimension_numbers<[1], [0], [0], [1], [0, 0, 1, 1], [], []>} : vector<16x32xbf16>, vector<32x128xbf16>, vector<16x128xf32> -> vector<16x128xf32>
    %44 = arith.addf %37, %43 : vector<16x128xf32>
    %45 = vector.extract_strided_slice %24 {offsets = [3, 0, 0], sizes = [1, 16, 32], strides = [1, 1, 1]} : vector<4x16x32xf32> to vector<1x16x32xf32>
    %46 = vector.shape_cast %45 : vector<1x16x32xf32> to vector<16x32xf32>
    %47 = arith.truncf %46 : vector<16x32xf32> to vector<16x32xbf16>
    %c3 = arith.constant 3 : index
    %c0_23 = arith.constant 0 : index
    %c0_24 = arith.constant 0 : index
    %48 = vector.load %arg6[%c3, %c0_23, %c0_24] : memref<4x32x128xbf16, #tpu.memory_space<vmem>>, vector<1x32x128xbf16>
    %49 = vector.shape_cast %48 : vector<1x32x128xbf16> to vector<32x128xbf16>
    %cst_25 = arith.constant dense<0.000000e+00> : vector<16x128xf32>
    %50 = tpu.matmul %47, %49, %cst_25 {dimension_numbers = #tpu.dot_dimension_numbers<[1], [0], [0], [1], [0, 0, 1, 1], [], []>} : vector<16x32xbf16>, vector<32x128xbf16>, vector<16x128xf32> -> vector<16x128xf32>
    %51 = arith.addf %44, %50 : vector<16x128xf32>
    %c0_26 = arith.constant 0 : index
    %c0_27 = arith.constant 0 : index
    %52 = vector.load %arg7[%c0_26, %c0_27] : memref<1x128xf32, #tpu.memory_space<vmem>>, vector<1x128xf32>
    %53 = vector.broadcast %52 : vector<1x128xf32> to vector<16x128xf32>
    %54 = arith.addf %51, %53 : vector<16x128xf32>
    %55 = arith.addf %7, %54 : vector<16x128xf32>
    %c0_28 = arith.constant 0 : index
    %c0_29 = arith.constant 0 : index
    %56 = vector.load %arg8[%c0_28, %c0_29] : memref<1x128xf32, #tpu.memory_space<vmem>>, vector<1x128xf32>
    %c0_30 = arith.constant 0 : index
    %c0_31 = arith.constant 0 : index
    %57 = vector.load %arg9[%c0_30, %c0_31] : memref<1x128xf32, #tpu.memory_space<vmem>>, vector<1x128xf32>
    %cst_32 = arith.constant dense<0.000000e+00> : vector<16xf32>
    %58 = vector.multi_reduction <add>, %55, %cst_32 [1] : vector<16x128xf32> to vector<16xf32>
    %59 = vector.shape_cast %58 : vector<16xf32> to vector<16x1xf32>
    %cst_33 = arith.constant 1.280000e+02 : f32
    %60 = vector.broadcast %cst_33 : f32 to vector<16x1xf32>
    %61 = arith.divf %59, %60 : vector<16x1xf32>
    %62 = vector.broadcast %61 : vector<16x1xf32> to vector<16x128xf32>
    %63 = arith.subf %55, %62 : vector<16x128xf32>
    %64 = arith.mulf %63, %63 : vector<16x128xf32>
    %cst_34 = arith.constant dense<0.000000e+00> : vector<16xf32>
    %65 = vector.multi_reduction <add>, %64, %cst_34 [1] : vector<16x128xf32> to vector<16xf32>
    %66 = vector.shape_cast %65 : vector<16xf32> to vector<16x1xf32>
    %cst_35 = arith.constant 1.280000e+02 : f32
    %67 = vector.broadcast %cst_35 : f32 to vector<16x1xf32>
    %68 = arith.divf %66, %67 : vector<16x1xf32>
    %69 = vector.broadcast %61 : vector<16x1xf32> to vector<16x128xf32>
    %70 = arith.subf %55, %69 : vector<16x128xf32>
    %cst_36 = arith.constant 9.99999974E-6 : f32
    %71 = vector.broadcast %cst_36 : f32 to vector<16x1xf32>
    %72 = arith.addf %68, %71 : vector<16x1xf32>
    %73 = math.rsqrt %72 : vector<16x1xf32>
    %74 = vector.broadcast %73 : vector<16x1xf32> to vector<16x128xf32>
    %75 = arith.mulf %70, %74 : vector<16x128xf32>
    %76 = vector.broadcast %56 : vector<1x128xf32> to vector<16x128xf32>
    %77 = arith.mulf %75, %76 : vector<16x128xf32>
    %78 = vector.broadcast %57 : vector<1x128xf32> to vector<16x128xf32>
    %79 = arith.addf %77, %78 : vector<16x128xf32>
    %80 = arith.truncf %79 : vector<16x128xf32> to vector<16x128xbf16>
    %c0_37 = arith.constant 0 : index
    %c0_38 = arith.constant 0 : index
    %81 = vector.load %arg10[%c0_37, %c0_38] : memref<128x512xbf16, #tpu.memory_space<vmem>>, vector<128x512xbf16>
    %cst_39 = arith.constant dense<0.000000e+00> : vector<16x512xf32>
    %82 = tpu.matmul %80, %81, %cst_39 {dimension_numbers = #tpu.dot_dimension_numbers<[1], [0], [0], [1], [0, 0, 1, 1], [], []>} : vector<16x128xbf16>, vector<128x512xbf16>, vector<16x512xf32> -> vector<16x512xf32>
    %c0_40 = arith.constant 0 : index
    %c0_41 = arith.constant 0 : index
    %83 = vector.load %arg11[%c0_40, %c0_41] : memref<1x512xf32, #tpu.memory_space<vmem>>, vector<1x512xf32>
    %84 = vector.broadcast %83 : vector<1x512xf32> to vector<16x512xf32>
    %85 = arith.addf %82, %84 : vector<16x512xf32>
    %cst_42 = arith.constant 5.000000e-01 : f32
    %86 = vector.broadcast %cst_42 : f32 to vector<16x512xf32>
    %87 = arith.mulf %86, %85 : vector<16x512xf32>
    %cst_43 = arith.constant 0.707106769 : f32
    %88 = vector.broadcast %cst_43 : f32 to vector<16x512xf32>
    %89 = arith.mulf %85, %88 : vector<16x512xf32>
    %90 = math.absf %89 : vector<16x512xf32>
    %cst_44 = arith.constant 0.327591091 : f32
    %91 = vector.broadcast %cst_44 : f32 to vector<16x512xf32>
    %92 = arith.mulf %91, %90 : vector<16x512xf32>
    %cst_45 = arith.constant 1.000000e+00 : f32
    %93 = vector.broadcast %cst_45 : f32 to vector<16x512xf32>
    %94 = arith.addf %93, %92 : vector<16x512xf32>
    %95 = tpu.reciprocal %94 {approx = true} : vector<16x512xf32> -> vector<16x512xf32>
    %cst_46 = arith.constant 1.06140542 : f32
    %96 = vector.broadcast %cst_46 : f32 to vector<16x512xf32>
    %97 = arith.mulf %96, %95 : vector<16x512xf32>
    %cst_47 = arith.constant -1.45315206 : f32
    %98 = vector.broadcast %cst_47 : f32 to vector<16x512xf32>
    %99 = arith.addf %97, %98 : vector<16x512xf32>
    %100 = arith.mulf %99, %95 : vector<16x512xf32>
    %cst_48 = arith.constant 1.42141378 : f32
    %101 = vector.broadcast %cst_48 : f32 to vector<16x512xf32>
    %102 = arith.addf %100, %101 : vector<16x512xf32>
    %103 = arith.mulf %102, %95 : vector<16x512xf32>
    %cst_49 = arith.constant -0.284496725 : f32
    %104 = vector.broadcast %cst_49 : f32 to vector<16x512xf32>
    %105 = arith.addf %103, %104 : vector<16x512xf32>
    %106 = arith.mulf %105, %95 : vector<16x512xf32>
    %cst_50 = arith.constant 0.254829586 : f32
    %107 = vector.broadcast %cst_50 : f32 to vector<16x512xf32>
    %108 = arith.addf %106, %107 : vector<16x512xf32>
    %109 = arith.mulf %108, %95 : vector<16x512xf32>
    %cst_51 = arith.constant 0.000000e+00 : f32
    %110 = vector.broadcast %cst_51 : f32 to vector<16x512xf32>
    %111 = arith.subf %110, %90 : vector<16x512xf32>
    %112 = arith.mulf %111, %90 : vector<16x512xf32>
    %113 = math.exp %112 : vector<16x512xf32>
    %114 = arith.mulf %109, %113 : vector<16x512xf32>
    %cst_52 = arith.constant 1.000000e+00 : f32
    %115 = vector.broadcast %cst_52 : f32 to vector<16x512xf32>
    %116 = arith.subf %115, %114 : vector<16x512xf32>
    %cst_53 = arith.constant 0.000000e+00 : f32
    %117 = vector.broadcast %cst_53 : f32 to vector<16x512xf32>
    %118 = arith.cmpf oge, %89, %117 : vector<16x512xf32>
    %cst_54 = arith.constant 0.000000e+00 : f32
    %119 = vector.broadcast %cst_54 : f32 to vector<16x512xf32>
    %120 = arith.subf %119, %116 : vector<16x512xf32>
    %121 = arith.select %118, %116, %120 : vector<16x512xi1>, vector<16x512xf32>
    %cst_55 = arith.constant 1.000000e+00 : f32
    %122 = vector.broadcast %cst_55 : f32 to vector<16x512xf32>
    %123 = arith.addf %122, %121 : vector<16x512xf32>
    %124 = arith.mulf %87, %123 : vector<16x512xf32>
    %125 = arith.truncf %124 : vector<16x512xf32> to vector<16x512xbf16>
    %c0_56 = arith.constant 0 : index
    %c0_57 = arith.constant 0 : index
    %126 = vector.load %arg12[%c0_56, %c0_57] : memref<512x128xbf16, #tpu.memory_space<vmem>>, vector<512x128xbf16>
    %cst_58 = arith.constant dense<0.000000e+00> : vector<16x128xf32>
    %127 = tpu.matmul %125, %126, %cst_58 {dimension_numbers = #tpu.dot_dimension_numbers<[1], [0], [0], [1], [0, 0, 1, 1], [], []>} : vector<16x512xbf16>, vector<512x128xbf16>, vector<16x128xf32> -> vector<16x128xf32>
    %c0_59 = arith.constant 0 : index
    %c0_60 = arith.constant 0 : index
    %128 = vector.load %arg13[%c0_59, %c0_60] : memref<1x128xf32, #tpu.memory_space<vmem>>, vector<1x128xf32>
    %129 = vector.broadcast %128 : vector<1x128xf32> to vector<16x128xf32>
    %130 = arith.addf %127, %129 : vector<16x128xf32>
    %131 = arith.addf %55, %130 : vector<16x128xf32>
    %132 = vector.shape_cast %131 : vector<16x128xf32> to vector<1x16x128xf32>
    %c0_61 = arith.constant 0 : index
    %c0_62 = arith.constant 0 : index
    %c0_63 = arith.constant 0 : index
    %133 = vector.load %arg14[%c0_61, %c0_62, %c0_63] : memref<1x16x128xf32, #tpu.memory_space<vmem>>, vector<1x16x128xf32>
    tpu.vector_store %arg14[%c0_61, %c0_62, %c0_63], %132 {strides = array<i32>} : memref<1x16x128xf32, #tpu.memory_space<vmem>>, vector<1x16x128xf32>,
    return
  }
  func.func @transform_0(%arg0: i32, %arg1: i32) -> (i32, i32, i32) {
    %c0_i32 = arith.constant 0 : i32
    %c0_i32_0 = arith.constant 0 : i32
    %c0_i32_1 = arith.constant 0 : i32
    return %arg0, %c0_i32, %c0_i32_0 : i32, i32, i32
  }
  func.func @transform_1(%arg0: i32, %arg1: i32) -> (i32, i32) {
    %c0_i32 = arith.constant 0 : i32
    %c0_i32_0 = arith.constant 0 : i32
    %c0_i32_1 = arith.constant 0 : i32
    return %c0_i32, %c0_i32_0 : i32, i32
  }
  func.func @transform_2(%arg0: i32, %arg1: i32) -> (i32, i32) {
    %c0_i32 = arith.constant 0 : i32
    %c0_i32_0 = arith.constant 0 : i32
    %c0_i32_1 = arith.constant 0 : i32
    return %c0_i32, %c0_i32_0 : i32, i32
  }
  func.func @transform_3(%arg0: i32, %arg1: i32) -> (i32, i32) {
    %c0_i32 = arith.constant 0 : i32
    %c0_i32_0 = arith.constant 0 : i32
    %c0_i32_1 = arith.constant 0 : i32
    return %c0_i32, %c0_i32_0 : i32, i32
  }
  func.func @transform_4(%arg0: i32, %arg1: i32) -> (i32, i32, i32) {
    %c0_i32 = arith.constant 0 : i32
    %c0_i32_0 = arith.constant 0 : i32
    %c0_i32_1 = arith.constant 0 : i32
    %c0_i32_2 = arith.constant 0 : i32
    return %c0_i32, %c0_i32_0, %c0_i32_1 : i32, i32, i32
  }
  func.func @transform_5(%arg0: i32, %arg1: i32) -> (i32, i32) {
    %c0_i32 = arith.constant 0 : i32
    %c0_i32_0 = arith.constant 0 : i32
    %c0_i32_1 = arith.constant 0 : i32
    return %c0_i32, %c0_i32_0 : i32, i32
  }
  func.func @transform_6(%arg0: i32, %arg1: i32) -> (i32, i32) {
    %c0_i32 = arith.constant 0 : i32
    %c0_i32_0 = arith.constant 0 : i32
    %c0_i32_1 = arith.constant 0 : i32
    return %c0_i32, %c0_i32_0 : i32, i32
  }
  func.func @transform_7(%arg0: i32, %arg1: i32) -> (i32, i32) {
    %c0_i32 = arith.constant 0 : i32
    %c0_i32_0 = arith.constant 0 : i32
    %c0_i32_1 = arith.constant 0 : i32
    return %c0_i32, %c0_i32_0 : i32, i32
  }
  func.func @transform_8(%arg0: i32, %arg1: i32) -> (i32, i32) {
    %c0_i32 = arith.constant 0 : i32
    %c0_i32_0 = arith.constant 0 : i32
    %c0_i32_1 = arith.constant 0 : i32
    return %c0_i32, %c0_i32_0 : i32, i32
  }
  func.func @transform_9(%arg0: i32, %arg1: i32) -> (i32, i32) {
    %c0_i32 = arith.constant 0 : i32
    %c0_i32_0 = arith.constant 0 : i32
    %c0_i32_1 = arith.constant 0 : i32
    return %c0_i32, %c0_i32_0 : i32, i32
  }
  func.func @transform_10(%arg0: i32, %arg1: i32) -> (i32, i32) {
    %c0_i32 = arith.constant 0 : i32
    %c0_i32_0 = arith.constant 0 : i32
    %c0_i32_1 = arith.constant 0 : i32
    return %c0_i32, %c0_i32_0 : i32, i32
  }
  func.func @transform_11(%arg0: i32, %arg1: i32) -> (i32, i32) {
    %c0_i32 = arith.constant 0 : i32
    %c0_i32_0 = arith.constant 0 : i32
    %c0_i32_1 = arith.constant 0 : i32
    return %c0_i32, %c0_i32_0 : i32, i32
  }
  func.func @transform_12(%arg0: i32, %arg1: i32) -> (i32, i32, i32) {
    %c0_i32 = arith.constant 0 : i32
    %c0_i32_0 = arith.constant 0 : i32
    return %arg0, %arg1, %c0_i32 : i32, i32, i32
  }
}

</mosaic_0001>

<llo_original>
// kernel: tpu_custom_call.1
$region0: #{tpu_custom_call.1}
  #allocation0 [shape = 'u32[]', space=smem, size = 0x4, offset = 0x4, fixed_abs, tag = 'smem constant byte address 0x4 - core index']
  #allocation1 [shape = 'u32[144,128]{1,0:T(1,128)}', space=vmem, size = 0x12000, scoped, tag = 'internal scratch']
  #allocation2 [shape = 'bf16[4,32,32]{2,1,0:T(8,128)(2,1)}', space=vmem, size = 0x8000, scoped, tag = 'scratch operand']
  #allocation3 [shape = 'bf16[4,32,32]{2,1,0:T(8,128)(2,1)}', space=vmem, size = 0x8000, scoped, tag = 'scratch operand']
  #allocation4 [shape = 'bf16[4,32,32]{2,1,0:T(8,128)(2,1)}', space=vmem, size = 0x8000, scoped, tag = 'scratch operand']
  %s0 = inlined_call_operand.hbm [shape: f32[2,32,128], index: 0, kind: input, shape index: {}]
  %s1 = inlined_call_operand.vmem [shape: f32[1,128], index: 1, kind: input, shape index: {}]
  %s2 = inlined_call_operand.vmem [shape: f32[1,128], index: 2, kind: input, shape index: {}]
  %s3 = inlined_call_operand.hbm [shape: bf16[128,384], index: 3, kind: input, shape index: {}]
  %s4 = inlined_call_operand.hbm [shape: bf16[4,32,128], index: 4, kind: input, shape index: {}]
  %s5 = inlined_call_operand.vmem [shape: f32[1,128], index: 5, kind: input, shape index: {}]
  %s6 = inlined_call_operand.vmem [shape: f32[1,128], index: 6, kind: input, shape index: {}]
  %s7 = inlined_call_operand.vmem [shape: f32[1,128], index: 7, kind: input, shape index: {}]
  %s8 = inlined_call_operand.hbm [shape: bf16[128,512], index: 8, kind: input, shape index: {}]
  %s9 = inlined_call_operand.vmem [shape: f32[1,512], index: 9, kind: input, shape index: {}]
  %s10 = inlined_call_operand.hbm [shape: bf16[512,128], index: 10, kind: input, shape index: {}]
  %s11 = inlined_call_operand.vmem [shape: f32[1,128], index: 11, kind: input, shape index: {}]
  %s12 = inlined_call_operand.hbm [shape: f32[2,32,128], index: 12, kind: output, shape index: {}]
  %s13 = sld [smem:[#allocation0]]
  $region105: #{tpu_custom_call.1} parent=0
    _
  %s15 = ssub.s32 1, %s13
  %s16 = scalar_select 0, %s15, %s13
  $region1: #{tpu_custom_call.1} parent=0
    #allocation5 [shape = 'u8[32768]{0}', space=vmem, size = 0x8000, scoped, tag = 'input window, operand 0']
    #allocation6 [shape = 's32[2]{0}', space=sflag, size = 0x8, scoped, tag = 'scoped memory for tpu_custom_call.1']
    #allocation7 [shape = 's32[2]{0}', space=sflag, size = 0x8, scoped, tag = 'scoped memory for tpu_custom_call.1']
    #allocation8 [shape = 'u8[98304]{0}', space=vmem, size = 0x18000, scoped, tag = 'input window, operand 3, single buffered']
    #allocation9 [shape = 's32[1]{0}', space=sflag, size = 0x4, scoped, tag = 'scoped memory for tpu_custom_call.1']
    #allocation10 [shape = 'u8[32768]{0}', space=vmem, size = 0x8000, scoped, tag = 'input window, operand 4, single buffered']
    #allocation11 [shape = 'u8[131072]{0}', space=vmem, size = 0x20000, scoped, tag = 'input window, operand 8, single buffered']
    #allocation12 [shape = 's32[1]{0}', space=sflag, size = 0x4, scoped, tag = 'scoped memory for tpu_custom_call.1']
    #allocation13 [shape = 'u8[131072]{0}', space=vmem, size = 0x20000, scoped, tag = 'input window, operand 10, single buffered']
    #allocation14 [shape = 'u8[16384]{0}', space=vmem, size = 0x4000, scoped, tag = 'output window, operand 0']
    %17 = vsyncpa [#allocation6], 0
    %s18 = scalar_lea.sflag [#allocation6], 1
    %19 = vsyncpa %s18, 0
    %20 = vsyncpa [#allocation9], 0
    %21 = vsyncpa [#allocation12], 0
    %22 = vsyncpa [#allocation7], 0
    %s23 = scalar_lea.sflag [#allocation7], 1
    %24 = vsyncpa %s23, 0
    loop: start=0, step=1, limit=6
    $region2: #{tpu_custom_call.1} parent=1 // loop_pre_header
      _
    $region3: #{tpu_custom_call.1} parent=1 // loop_header
      %s26 = sphi 0, %s30
      %p27 = scmp.ge.s32.totalorder %s26, 6
      %s33 = sphi 0, %s45
      %s34 = sphi 0, %s41
      %s35 = sphi 0, %s33
      %s36 = sphi 0, %s34
      %s37 = sphi 0, %s35
      %s38 = sphi 0, %s36
      %s48 = sphi 0, %s50
      %s51 = sphi 0, %s48
      %s52 = sphi 0, %s51
      %s68 = sphi 0, %s52
      %s72 = sphi 0, %s72
      %s74 = sphi 0, %s72
      %s75 = sphi 0, %s74
      %s89 = sphi 0, %s75
      %s93 = sphi 0, %s93
      %s95 = sphi 0, %s93
      %s96 = sphi 0, %s95
      %s110 = sphi 0, %s96
      %s114 = sphi 0, %s114
      %s116 = sphi 0, %s114
      %s117 = sphi 0, %s116
      %s131 = sphi 0, %s117
      %s135 = sphi 0, %s135
      %s137 = sphi 0, %s135
      %s138 = sphi 0, %s137
      %s152 = sphi 0, %s138
      %s156 = sphi 0, %s156
      %s158 = sphi 0, %s156
      %s159 = sphi 0, %s158
      %s173 = sphi 0, %s159
      %s177 = sphi 0, %s177
      %s179 = sphi 0, %s177
      %s180 = sphi 0, %s179
      %s194 = sphi 0, %s180
      %s198 = sphi 0, %s198
      %s200 = sphi 0, %s198
      %s201 = sphi 0, %s200
      %s215 = sphi 0, %s201
      %s219 = sphi 0, %s219
      %s221 = sphi 0, %s219
      %s222 = sphi 0, %s221
      %s236 = sphi 0, %s222
      %s240 = sphi 0, %s240
      %s242 = sphi 0, %s240
      %s243 = sphi 0, %s242
      %s257 = sphi 0, %s243
      %s261 = sphi 0, %s261
      %s263 = sphi 0, %s261
      %s264 = sphi 0, %s263
      %s278 = sphi 0, %s264
      %s282 = sphi 0, %s282
      %s284 = sphi 0, %s282
      %s285 = sphi 0, %s284
      %s299 = sphi 0, %s285
      %s307 = sphi 0, %s309
      %s310 = sphi 0, %s307
      %s311 = sphi 0, %s310
      %s327 = sphi 0, %s311
    $region4: #{tpu_custom_call.1} parent=1 // loop_header_branch
      %29 = sbr.rel (%p27) target = $region8
    $region5: #{tpu_custom_call.1} parent=1 // loop_body
      %s31 = ssub.s32 %s26, 1
      %s32 = ssub.s32 %s26, 2
      %s39 = sadd.s32 1, %s34
      %p40 = scmp.ge.s32.totalorder %s39, 2
      %s41 = scalar_select %p40, 0, %s39
      %s42 = sadd.s32 1, %s33
      %s43 = scalar_select %p40, %s42, %s33
      %p44 = scmp.ge.s32.totalorder %s43, 2
      %s45 = scalar_select %p44, 0, %s43
      %s46 = ssub.s32 %s33, %s45
      %p47 = scmp.eq.s32.totalorder %s46, 0
      %s49 = sadd.s32 %s48, 1
      %s50 = scalar_select %p47, %s48, %s49
      %p53 = pneg %p47
      %p54 = scmp.eq.s32.totalorder %s26, 3
      %p55 = por %p53, %p54
      %p56 = scmp.ne.s32.totalorder %s48, %s51
      %p57 = scmp.eq.s32.totalorder %s26, 0
      %p58 = por %p56, %p57
      %p59 = scmp.ne.s32.totalorder %s48, %s51
      %p60 = scmp.eq.s32.totalorder %s31, 3
      %p61 = por %p59, %p60
      %p62 = scmp.ne.s32.totalorder %s51, %s52
      %p63 = scmp.eq.s32.totalorder %s31, 0
      %p64 = por %p62, %p63
      %p65 = scmp.ne.s32.totalorder %s51, %s52
      %p66 = scmp.eq.s32.totalorder %s32, 3
      %p67 = por %p65, %p66
      %p69 = scmp.ne.s32.totalorder %s52, %s68
      %p70 = scmp.eq.s32.totalorder %s32, 0
      %p71 = por %p69, %p70
      %s73 = sadd.s32 %s72, 1
      %p76 = scmp.eq.s32.totalorder %s26, 3
      %p77 = scmp.ne.s32.totalorder %s72, %s74
      %p78 = scmp.eq.s32.totalorder %s26, 0
      %p79 = por %p77, %p78
      %p80 = scmp.ne.s32.totalorder %s72, %s74
      %p81 = scmp.eq.s32.totalorder %s31, 3
      %p82 = por %p80, %p81
      %p83 = scmp.ne.s32.totalorder %s74, %s75
      %p84 = scmp.eq.s32.totalorder %s31, 0
      %p85 = por %p83, %p84
      %p86 = scmp.ne.s32.totalorder %s74, %s75
      %p87 = scmp.eq.s32.totalorder %s32, 3
      %p88 = por %p86, %p87
      %p90 = scmp.ne.s32.totalorder %s75, %s89
      %p91 = scmp.eq.s32.totalorder %s32, 0
      %p92 = por %p90, %p91
      %s94 = sadd.s32 %s93, 1
      %p97 = scmp.eq.s32.totalorder %s26, 3
      %p98 = scmp.ne.s32.totalorder %s93, %s95
      %p99 = scmp.eq.s32.totalorder %s26, 0
      %p100 = por %p98, %p99
      %p101 = scmp.ne.s32.totalorder %s93, %s95
      %p102 = scmp.eq.s32.totalorder %s31, 3
      %p103 = por %p101, %p102
      %p104 = scmp.ne.s32.totalorder %s95, %s96
      %p105 = scmp.eq.s32.totalorder %s31, 0
      %p106 = por %p104, %p105
      %p107 = scmp.ne.s32.totalorder %s95, %s96
      %p108 = scmp.eq.s32.totalorder %s32, 3
      %p109 = por %p107, %p108
      %p111 = scmp.ne.s32.totalorder %s96, %s110
      %p112 = scmp.eq.s32.totalorder %s32, 0
      %p113 = por %p111, %p112
      %s115 = sadd.s32 %s114, 1
      %p118 = scmp.eq.s32.totalorder %s26, 3
      %p119 = scmp.ne.s32.totalorder %s114, %s116
      %p120 = scmp.eq.s32.totalorder %s26, 0
      %p121 = por %p119, %p120
      %p122 = scmp.ne.s32.totalorder %s114, %s116
      %p123 = scmp.eq.s32.totalorder %s31, 3
      %p124 = por %p122, %p123
      %p125 = scmp.ne.s32.totalorder %s116, %s117
      %p126 = scmp.eq.s32.totalorder %s31, 0
      %p127 = por %p125, %p126
      %p128 = scmp.ne.s32.totalorder %s116, %s117
      %p129 = scmp.eq.s32.totalorder %s32, 3
      %p130 = por %p128, %p129
      %p132 = scmp.ne.s32.totalorder %s117, %s131
      %p133 = scmp.eq.s32.totalorder %s32, 0
      %p134 = por %p132, %p133
      %s136 = sadd.s32 %s135, 1
      %p139 = scmp.eq.s32.totalorder %s26, 3
      %p140 = scmp.ne.s32.totalorder %s135, %s137
      %p141 = scmp.eq.s32.totalorder %s26, 0
      %p142 = por %p140, %p141
      %p143 = scmp.ne.s32.totalorder %s135, %s137
      %p144 = scmp.eq.s32.totalorder %s31, 3
      %p145 = por %p143, %p144
      %p146 = scmp.ne.s32.totalorder %s137, %s138
      %p147 = scmp.eq.s32.totalorder %s31, 0
      %p148 = por %p146, %p147
      %p149 = scmp.ne.s32.totalorder %s137, %s138
      %p150 = scmp.eq.s32.totalorder %s32, 3
      %p151 = por %p149, %p150
      %p153 = scmp.ne.s32.totalorder %s138, %s152
      %p154 = scmp.eq.s32.totalorder %s32, 0
      %p155 = por %p153, %p154
      %s157 = sadd.s32 %s156, 1
      %p160 = scmp.eq.s32.totalorder %s26, 3
      %p161 = scmp.ne.s32.totalorder %s156, %s158
      %p162 = scmp.eq.s32.totalorder %s26, 0
      %p163 = por %p161, %p162
      %p164 = scmp.ne.s32.totalorder %s156, %s158
      %p165 = scmp.eq.s32.totalorder %s31, 3
      %p166 = por %p164, %p165
      %p167 = scmp.ne.s32.totalorder %s158, %s159
      %p168 = scmp.eq.s32.totalorder %s31, 0
      %p169 = por %p167, %p168
      %p170 = scmp.ne.s32.totalorder %s158, %s159
      %p171 = scmp.eq.s32.totalorder %s32, 3
      %p172 = por %p170, %p171
      %p174 = scmp.ne.s32.totalorder %s159, %s173
      %p175 = scmp.eq.s32.totalorder %s32, 0
      %p176 = por %p174, %p175
      %s178 = sadd.s32 %s177, 1
      %p181 = scmp.eq.s32.totalorder %s26, 3
      %p182 = scmp.ne.s32.totalorder %s177, %s179
      %p183 = scmp.eq.s32.totalorder %s26, 0
      %p184 = por %p182, %p183
      %p185 = scmp.ne.s32.totalorder %s177, %s179
      %p186 = scmp.eq.s32.totalorder %s31, 3
      %p187 = por %p185, %p186
      %p188 = scmp.ne.s32.totalorder %s179, %s180
      %p189 = scmp.eq.s32.totalorder %s31, 0
      %p190 = por %p188, %p189
      %p191 = scmp.ne.s32.totalorder %s179, %s180
      %p192 = scmp.eq.s32.totalorder %s32, 3
      %p193 = por %p191, %p192
      %p195 = scmp.ne.s32.totalorder %s180, %s194
      %p196 = scmp.eq.s32.totalorder %s32, 0
      %p197 = por %p195, %p196
      %s199 = sadd.s32 %s198, 1
      %p202 = scmp.eq.s32.totalorder %s26, 3
      %p203 = scmp.ne.s32.totalorder %s198, %s200
      %p204 = scmp.eq.s32.totalorder %s26, 0
      %p205 = por %p203, %p204
      %p206 = scmp.ne.s32.totalorder %s198, %s200
      %p207 = scmp.eq.s32.totalorder %s31, 3
      %p208 = por %p206, %p207
      %p209 = scmp.ne.s32.totalorder %s200, %s201
      %p210 = scmp.eq.s32.totalorder %s31, 0
      %p211 = por %p209, %p210
      %p212 = scmp.ne.s32.totalorder %s200, %s201
      %p213 = scmp.eq.s32.totalorder %s32, 3
      %p214 = por %p212, %p213
      %p216 = scmp.ne.s32.totalorder %s201, %s215
      %p217 = scmp.eq.s32.totalorder %s32, 0
      %p218 = por %p216, %p217
      %s220 = sadd.s32 %s219, 1
      %p223 = scmp.eq.s32.totalorder %s26, 3
      %p224 = scmp.ne.s32.totalorder %s219, %s221
      %p225 = scmp.eq.s32.totalorder %s26, 0
      %p226 = por %p224, %p225
      %p227 = scmp.ne.s32.totalorder %s219, %s221
      %p228 = scmp.eq.s32.totalorder %s31, 3
      %p229 = por %p227, %p228
      %p230 = scmp.ne.s32.totalorder %s221, %s222
      %p231 = scmp.eq.s32.totalorder %s31, 0
      %p232 = por %p230, %p231
      %p233 = scmp.ne.s32.totalorder %s221, %s222
      %p234 = scmp.eq.s32.totalorder %s32, 3
      %p235 = por %p233, %p234
      %p237 = scmp.ne.s32.totalorder %s222, %s236
      %p238 = scmp.eq.s32.totalorder %s32, 0
      %p239 = por %p237, %p238
      %s241 = sadd.s32 %s240, 1
      %p244 = scmp.eq.s32.totalorder %s26, 3
      %p245 = scmp.ne.s32.totalorder %s240, %s242
      %p246 = scmp.eq.s32.totalorder %s26, 0
      %p247 = por %p245, %p246
      %p248 = scmp.ne.s32.totalorder %s240, %s242
      %p249 = scmp.eq.s32.totalorder %s31, 3
      %p250 = por %p248, %p249
      %p251 = scmp.ne.s32.totalorder %s242, %s243
      %p252 = scmp.eq.s32.totalorder %s31, 0
      %p253 = por %p251, %p252
      %p254 = scmp.ne.s32.totalorder %s242, %s243
      %p255 = scmp.eq.s32.totalorder %s32, 3
      %p256 = por %p254, %p255
      %p258 = scmp.ne.s32.totalorder %s243, %s257
      %p259 = scmp.eq.s32.totalorder %s32, 0
      %p260 = por %p258, %p259
      %s262 = sadd.s32 %s261, 1
      %p265 = scmp.eq.s32.totalorder %s26, 3
      %p266 = scmp.ne.s32.totalorder %s261, %s263
      %p267 = scmp.eq.s32.totalorder %s26, 0
      %p268 = por %p266, %p267
      %p269 = scmp.ne.s32.totalorder %s261, %s263
      %p270 = scmp.eq.s32.totalorder %s31, 3
      %p271 = por %p269, %p270
      %p272 = scmp.ne.s32.totalorder %s263, %s264
      %p273 = scmp.eq.s32.totalorder %s31, 0
      %p274 = por %p272, %p273
      %p275 = scmp.ne.s32.totalorder %s263, %s264
      %p276 = scmp.eq.s32.totalorder %s32, 3
      %p277 = por %p275, %p276
      %p279 = scmp.ne.s32.totalorder %s264, %s278
      %p280 = scmp.eq.s32.totalorder %s32, 0
      %p281 = por %p279, %p280
      %s283 = sadd.s32 %s282, 1
      %p286 = scmp.eq.s32.totalorder %s26, 3
      %p287 = scmp.ne.s32.totalorder %s282, %s284
      %p288 = scmp.eq.s32.totalorder %s26, 0
      %p289 = por %p287, %p288
      %p290 = scmp.ne.s32.totalorder %s282, %s284
      %p291 = scmp.eq.s32.totalorder %s31, 3
      %p292 = por %p290, %p291
      %p293 = scmp.ne.s32.totalorder %s284, %s285
      %p294 = scmp.eq.s32.totalorder %s31, 0
      %p295 = por %p293, %p294
      %p296 = scmp.ne.s32.totalorder %s284, %s285
      %p297 = scmp.eq.s32.totalorder %s32, 3
      %p298 = por %p296, %p297
      %p300 = scmp.ne.s32.totalorder %s285, %s299
      %p301 = scmp.eq.s32.totalorder %s32, 0
      %p302 = por %p300, %p301
      %s303 = ssub.s32 %s33, %s45
      %s304 = ssub.s32 %s34, %s41
      %s305 = sor.u32 %s303, %s304
      %p306 = scmp.eq.s32.totalorder %s305, 0
      %s308 = sadd.s32 %s307, 1
      %s309 = scalar_select %p306, %s307, %s308
      %p312 = pneg %p306
      %p313 = scmp.eq.s32.totalorder %s26, 3
      %p314 = por %p312, %p313
      %p315 = scmp.ne.s32.totalorder %s307, %s310
      %p316 = scmp.eq.s32.totalorder %s26, 0
      %p317 = por %p315, %p316
      %p318 = scmp.ne.s32.totalorder %s307, %s310
      %p319 = scmp.eq.s32.totalorder %s31, 3
      %p320 = por %p318, %p319
      %p321 = scmp.ne.s32.totalorder %s310, %s311
      %p322 = scmp.eq.s32.totalorder %s31, 0
      %p323 = por %p321, %p322
      %p324 = scmp.ne.s32.totalorder %s310, %s311
      %p325 = scmp.eq.s32.totalorder %s32, 3
      %p326 = por %p324, %p325
      %p328 = scmp.ne.s32.totalorder %s311, %s327
      %p329 = scmp.eq.s32.totalorder %s32, 0
      %p330 = por %p328, %p329
      %p331 = scmp.le.s32.totalorder 1, %s26
      %p332 = scmp.lt.s32.totalorder %s26, 5
      %p333 = pnand %p331, %p332
      %p334 = pneg %p333
      // Predicated region
      $region9: #{tpu_custom_call.1} parent=5 // pred_check
        _
      $region10: #{tpu_custom_call.1} parent=5 // pred_check_branch
        %336 = sbr.rel (%p333) target = $region12
      $region11: #{tpu_custom_call.1} parent=5 // pred_region
        %s337 = ssub.s32 %s26, 1
        // Predicated region
        $region13: #{tpu_custom_call.1} parent=11 // pred_check
          %p338 = pneg %p85
        $region14: #{tpu_custom_call.1} parent=11 // pred_check_branch
          %340 = sbr.rel (%p338) target = $region16
        $region15: #{tpu_custom_call.1} parent=11 // pred_region
          _
        $region16: #{tpu_custom_call.1} parent=11 // pred_fallthru
          _
        // Predicated region
        $region17: #{tpu_custom_call.1} parent=11 // pred_check
          %p341 = pneg %p106
        $region18: #{tpu_custom_call.1} parent=11 // pred_check_branch
          %343 = sbr.rel (%p341) target = $region20
        $region19: #{tpu_custom_call.1} parent=11 // pred_region
          _
        $region20: #{tpu_custom_call.1} parent=11 // pred_fallthru
          _
        // Predicated region
        $region21: #{tpu_custom_call.1} parent=11 // pred_check
          %p344 = pneg %p127
        $region22: #{tpu_custom_call.1} parent=11 // pred_check_branch
          %346 = sbr.rel (%p344) target = $region24
        $region23: #{tpu_custom_call.1} parent=11 // pred_region
          %s348 = ssub.s32 3072, 3072
          %349 = vsyncadd [#allocation9], %s348
          %s350 = sshll.u32 [#allocation8], 4
          %s351 = int_to_ptr.vmem [resolvable:$true] %s350
          %356 = dma.hbm_to_vmem [thread:$0]  %s3, 3072, %s351, [#allocation9], 192, 192, 12
        $region24: #{tpu_custom_call.1} parent=11 // pred_fallthru
          _
        // Predicated region
        $region25: #{tpu_custom_call.1} parent=11 // pred_check
          %p357 = pneg %p148
        $region26: #{tpu_custom_call.1} parent=11 // pred_check_branch
          %359 = sbr.rel (%p357) target = $region28
        $region27: #{tpu_custom_call.1} parent=11 // pred_region
          %s361 = ssub.s32 1024, 1024
          %362 = vsyncadd [#allocation9], %s361
          %s363 = sshll.u32 [#allocation10], 4
          %s364 = int_to_ptr.vmem [resolvable:$true] %s363
          %369 = dma.hbm_to_vmem [thread:$0]  %s4, 1024, %s364, [#allocation9], 64, 64, 4
        $region28: #{tpu_custom_call.1} parent=11 // pred_fallthru
          _
        // Predicated region
        $region29: #{tpu_custom_call.1} parent=11 // pred_check
          %p370 = pneg %p169
        $region30: #{tpu_custom_call.1} parent=11 // pred_check_branch
          %372 = sbr.rel (%p370) target = $region32
        $region31: #{tpu_custom_call.1} parent=11 // pred_region
          _
        $region32: #{tpu_custom_call.1} parent=11 // pred_fallthru
          _
        // Predicated region
        $region33: #{tpu_custom_call.1} parent=11 // pred_check
          %p373 = pneg %p190
        $region34: #{tpu_custom_call.1} parent=11 // pred_check_branch
          %375 = sbr.rel (%p373) target = $region36
        $region35: #{tpu_custom_call.1} parent=11 // pred_region
          _
        $region36: #{tpu_custom_call.1} parent=11 // pred_fallthru
          _
        // Predicated region
        $region37: #{tpu_custom_call.1} parent=11 // pred_check
          %p376 = pneg %p211
        $region38: #{tpu_custom_call.1} parent=11 // pred_check_branch
          %378 = sbr.rel (%p376) target = $region40
        $region39: #{tpu_custom_call.1} parent=11 // pred_region
          _
        $region40: #{tpu_custom_call.1} parent=11 // pred_fallthru
          _
        // Predicated region
        $region41: #{tpu_custom_call.1} parent=11 // pred_check
          %p379 = pneg %p232
        $region42: #{tpu_custom_call.1} parent=11 // pred_check_branch
          %381 = sbr.rel (%p379) target = $region44
        $region43: #{tpu_custom_call.1} parent=11 // pred_region
          %s383 = ssub.s32 4096, 4096
          %384 = vsyncadd [#allocation12], %s383
          %s385 = sshll.u32 [#allocation11], 4
          %s386 = int_to_ptr.vmem [resolvable:$true] %s385
          %391 = dma.hbm_to_vmem [thread:$0]  %s8, 4096, %s386, [#allocation12], 256, 256, 16
        $region44: #{tpu_custom_call.1} parent=11 // pred_fallthru
          _
        // Predicated region
        $region45: #{tpu_custom_call.1} parent=11 // pred_check
          %p392 = pneg %p253
        $region46: #{tpu_custom_call.1} parent=11 // pred_check_branch
          %394 = sbr.rel (%p392) target = $region48
        $region47: #{tpu_custom_call.1} parent=11 // pred_region
          _
        $region48: #{tpu_custom_call.1} parent=11 // pred_fallthru
          _
        // Predicated region
        $region49: #{tpu_custom_call.1} parent=11 // pred_check
          %p395 = pneg %p274
        $region50: #{tpu_custom_call.1} parent=11 // pred_check_branch
          %397 = sbr.rel (%p395) target = $region52
        $region51: #{tpu_custom_call.1} parent=11 // pred_region
          %s399 = ssub.s32 4096, 4096
          %400 = vsyncadd [#allocation12], %s399
          %s401 = sshll.u32 [#allocation13], 4
          %s402 = int_to_ptr.vmem [resolvable:$true] %s401
          %407 = dma.hbm_to_vmem [thread:$0]  %s10, 4096, %s402, [#allocation12], 64, 64, 4
        $region52: #{tpu_custom_call.1} parent=11 // pred_fallthru
          _
        // Predicated region
        $region53: #{tpu_custom_call.1} parent=11 // pred_check
          %p408 = pneg %p295
        $region54: #{tpu_custom_call.1} parent=11 // pred_check_branch
          %410 = sbr.rel (%p408) target = $region56
        $region55: #{tpu_custom_call.1} parent=11 // pred_region
          _
        $region56: #{tpu_custom_call.1} parent=11 // pred_fallthru
          _
      $region12: #{tpu_custom_call.1} parent=5 // pred_fallthru
        _
      %p411 = scmp.lt.s32.totalorder %s26, 4
      // Predicated region
      $region57: #{tpu_custom_call.1} parent=5 // pred_check
        %p412 = pneg %p411
      $region58: #{tpu_custom_call.1} parent=5 // pred_check_branch
        %414 = sbr.rel (%p412) target = $region60
      $region59: #{tpu_custom_call.1} parent=5 // pred_region
        // Predicated region
        $region61: #{tpu_custom_call.1} parent=59 // pred_check
          %p415 = pneg %p58
        $region62: #{tpu_custom_call.1} parent=59 // pred_check_branch
          %417 = sbr.rel (%p415) target = $region64
        $region63: #{tpu_custom_call.1} parent=59 // pred_region
          %s418 = sand.u32 %s48, 1
          %s419 = scalar_lea.sflag [#allocation6], %s418
          %s420 = sand.u32 %s48, 1
          %s421 = smul.addr %s420, 32
          %s422 = scalar_lea.vmem [#allocation5], %s421
          %s424 = ssub.s32 512, 512
          %425 = vsyncadd %s419, %s424
          %s426 = smul.addr %s33, 4
          %s427 = smul.addr %s426, 128
          %s428 = scalar_lea.hbm %s0, %s427
          %s429 = sshll.u32 %s422, 4
          %s430 = int_to_ptr.vmem [resolvable:$true] %s429
          %435 = dma.hbm_to_vmem [thread:$0]  %s428, 512, %s430, %s419, 128, 128, 8
        $region64: #{tpu_custom_call.1} parent=59 // pred_fallthru
          _
      $region60: #{tpu_custom_call.1} parent=5 // pred_fallthru
        _
      %p436 = scmp.le.s32.totalorder 1, %s26
      %p437 = scmp.lt.s32.totalorder %s26, 5
      %p438 = pnand %p436, %p437
      %p439 = pneg %p438
      // Predicated region
      $region65: #{tpu_custom_call.1} parent=5 // pred_check
        _
      $region66: #{tpu_custom_call.1} parent=5 // pred_check_branch
        %441 = sbr.rel (%p438) target = $region68
      $region67: #{tpu_custom_call.1} parent=5 // pred_region
        %s442 = ssub.s32 %s26, 1
        %s443 = sand.u32 %s51, 1
        %s444 = scalar_lea.sflag [#allocation6], %s443
        %s445 = sand.u32 %s51, 1
        %s446 = smul.addr %s445, 32
        %s447 = scalar_lea.vmem [#allocation5], %s446
        // Predicated region
        $region69: #{tpu_custom_call.1} parent=67 // pred_check
          %p448 = pneg %p64
        $region70: #{tpu_custom_call.1} parent=67 // pred_check_branch
          %450 = sbr.rel (%p448) target = $region72
        $region71: #{tpu_custom_call.1} parent=67 // pred_region
          %451 = dma.done %s444, 512
        $region72: #{tpu_custom_call.1} parent=67 // pred_fallthru
          _
        // Predicated region
        $region73: #{tpu_custom_call.1} parent=67 // pred_check
          %p452 = pneg %p127
        $region74: #{tpu_custom_call.1} parent=67 // pred_check_branch
          %454 = sbr.rel (%p452) target = $region76
        $region75: #{tpu_custom_call.1} parent=67 // pred_region
          %455 = dma.done [#allocation9], 3072
        $region76: #{tpu_custom_call.1} parent=67 // pred_fallthru
          _
        // Predicated region
        $region77: #{tpu_custom_call.1} parent=67 // pred_check
          %p456 = pneg %p148
        $region78: #{tpu_custom_call.1} parent=67 // pred_check_branch
          %458 = sbr.rel (%p456) target = $region80
        $region79: #{tpu_custom_call.1} parent=67 // pred_region
          %459 = dma.done [#allocation9], 1024
        $region80: #{tpu_custom_call.1} parent=67 // pred_fallthru
          _
        // Predicated region
        $region81: #{tpu_custom_call.1} parent=67 // pred_check
          %p460 = pneg %p232
        $region82: #{tpu_custom_call.1} parent=67 // pred_check_branch
          %462 = sbr.rel (%p460) target = $region84
        $region83: #{tpu_custom_call.1} parent=67 // pred_region
          %463 = dma.done [#allocation12], 4096
        $region84: #{tpu_custom_call.1} parent=67 // pred_fallthru
          _
        // Predicated region
        $region85: #{tpu_custom_call.1} parent=67 // pred_check
          %p464 = pneg %p274
        $region86: #{tpu_custom_call.1} parent=67 // pred_check_branch
          %466 = sbr.rel (%p464) target = $region88
        $region87: #{tpu_custom_call.1} parent=67 // pred_region
          %467 = dma.done [#allocation12], 4096
        $region88: #{tpu_custom_call.1} parent=67 // pred_fallthru
          _
        %s468 = sand.u32 %s51, 1
        %s469 = scalar_lea.sflag [#allocation6], %s468
        %s470 = sand.u32 %s51, 1
        %s471 = smul.addr %s470, 32
        %s472 = scalar_lea.vmem [#allocation5], %s471
        %p473 = pneg %p64
        %p474 = pneg %p61
        %p475 = pneg %p85
        %p476 = pneg %p82
        %p477 = pneg %p106
        %p478 = pneg %p103
        %p479 = pneg %p127
        %p480 = pneg %p124
        %p481 = pneg %p148
        %p482 = pneg %p145
        %p483 = pneg %p169
        %p484 = pneg %p166
        %p485 = pneg %p190
        %p486 = pneg %p187
        %p487 = pneg %p211
        %p488 = pneg %p208
        %p489 = pneg %p232
        %p490 = pneg %p229
        %p491 = pneg %p253
        %p492 = pneg %p250
        %p493 = pneg %p274
        %p494 = pneg %p271
        %p495 = pneg %p295
        %p496 = pneg %p292
        %p497 = pneg %p323
        %p498 = pneg %p320
        %s499 = sand.u32 %s310, 1
        %s500 = scalar_lea.sflag [#allocation7], %s499
        %s501 = sand.u32 %s310, 1
        %s502 = smul.addr %s501, 16
        %s503 = scalar_lea.vmem [#allocation14], %s502
        %s504 = smul.u32 2, %s36
        %p506 = scmp.eq.s32.totalorder %s36, 0
        // Predicated region
        $region89: #{tpu_custom_call.1} parent=67 // pred_check
          %p507 = pneg %p506
        $region90: #{tpu_custom_call.1} parent=67 // pred_check_branch
          %509 = sbr.rel (%p507) target = $region92
        $region91: #{tpu_custom_call.1} parent=67 // pred_region
          %v510 = vld [vmem:[%s447] sm:$0xff]
          %v511 = vld [vmem:[%s447 + $0x8] sm:$0xff]
          %v512 = vld [vmem:[%s447 + $0x10] sm:$0xff]
          %v513 = vld [vmem:[%s447 + $0x18] sm:$0xff]
          %v514 = vld [vmem:[%s1] sm:$0x1]
          %v515 = vld [vmem:[%s2] sm:$0x1]
          %516 = vadd.xlane.f32.xlu0 %v510
          %v517 = vpop.xlane.xlu0 %516
          %518 = vadd.xlane.f32.xlu0 %v511
          %v519 = vpop.xlane.xlu0 %518
          %520 = vadd.xlane.f32.xlu0 %v512
          %v521 = vpop.xlane.xlu0 %520
          %522 = vadd.xlane.f32.xlu0 %v513
          %v523 = vpop.xlane.xlu0 %522
          %v524 = vrcp.pop 128.0
          %v525 = vmul.f32 %v517, %v524
          %v526 = vmul.f32 %v519, %v524
          %v527 = vmul.f32 %v521, %v524
          %v528 = vmul.f32 %v523, %v524
          %v529 = vsub.f32 %v510, %v525
          %v530 = vsub.f32 %v511, %v526
          %v531 = vsub.f32 %v512, %v527
          %v532 = vsub.f32 %v513, %v528
          %v533 = vmul.f32 %v529, %v529
          %v534 = vmul.f32 %v530, %v530
          %v535 = vmul.f32 %v531, %v531
          %v536 = vmul.f32 %v532, %v532
          %537 = vadd.xlane.f32.xlu0 %v533
          %v538 = vpop.xlane.xlu0 %537
          %539 = vadd.xlane.f32.xlu0 %v534
          %v540 = vpop.xlane.xlu0 %539
          %541 = vadd.xlane.f32.xlu0 %v535
          %v542 = vpop.xlane.xlu0 %541
          %543 = vadd.xlane.f32.xlu0 %v536
          %v544 = vpop.xlane.xlu0 %543
          %v545 = vmul.f32 %v538, %v524
          %v546 = vmul.f32 %v540, %v524
          %v547 = vmul.f32 %v542, %v524
          %v548 = vmul.f32 %v544, %v524
          %v549 = vadd.f32 %v545, 1e-05
          %v550 = vadd.f32 %v546, 1e-05
          %v551 = vadd.f32 %v547, 1e-05
          %v552 = vadd.f32 %v548, 1e-05
          %v553 = vrsqrt.pop %v549
          %v554 = vrsqrt.pop %v550
          %v555 = vrsqrt.pop %v551
          %v556 = vrsqrt.pop %v552
          %v557 = vmul.f32 %v529, %v553
          %v558 = vmul.f32 %v530, %v554
          %v559 = vmul.f32 %v531, %v555
          %v560 = vmul.f32 %v532, %v556
          %v562 = vlaneseq
          %v563 = vshrl.u32 %v562, 7
          %v564 = vsub.s32 0, %v563
          %v565 = vrot.slane %v514, %v564
          %v567 = vmul.f32 %v557, %v565
          %v568 = vmul.f32 %v558, %v565
          %v569 = vmul.f32 %v559, %v565
          %v570 = vmul.f32 %v560, %v565
          %v572 = vlaneseq
          %v573 = vshrl.u32 %v572, 7
          %v574 = vsub.s32 0, %v573
          %v575 = vrot.slane %v515, %v574
          %v577 = vadd.f32 %v567, %v575
          %v578 = vadd.f32 %v568, %v575
          %v579 = vadd.f32 %v569, %v575
          %v580 = vadd.f32 %v570, %v575
          %v581 = vpack.c.bf16 %v578, %v577
          %v582 = vpack.c.bf16 %v580, %v579
          %v583 = vld [vmem:[#allocation8] sm:$0xff]
          %v584 = vld [vmem:[#allocation8 + $0x8] sm:$0xf]
          %v585 = vld [vmem:[#allocation8 + $0xc] sm:$0xff]
          %v586 = vld [vmem:[#allocation8 + $0x14] sm:$0xf]
          %v587 = vld [vmem:[#allocation8 + $0x18] sm:$0xff]
          %v588 = vld [vmem:[#allocation8 + $0x20] sm:$0xf]
          %v589 = vld [vmem:[#allocation8 + $0x24] sm:$0xff]
          %v590 = vld [vmem:[#allocation8 + $0x2c] sm:$0xf]
          %v591 = vld [vmem:[#allocation8 + $0x30] sm:$0xff]
          %v592 = vld [vmem:[#allocation8 + $0x38] sm:$0xf]
          %v593 = vld [vmem:[#allocation8 + $0x3c] sm:$0xff]
          %v594 = vld [vmem:[#allocation8 + $0x44] sm:$0xf]
          %v595 = vld [vmem:[#allocation8 + $0x48] sm:$0xff]
          %v596 = vld [vmem:[#allocation8 + $0x50] sm:$0xf]
          %v597 = vld [vmem:[#allocation8 + $0x54] sm:$0xff]
          %v598 = vld [vmem:[#allocation8 + $0x5c] sm:$0xf]
          %v599 = vld [vmem:[#allocation8 + $0x60] sm:$0xff]
          %v600 = vld [vmem:[#allocation8 + $0x68] sm:$0xf]
          %v601 = vld [vmem:[#allocation8 + $0x6c] sm:$0xff]
          %v602 = vld [vmem:[#allocation8 + $0x74] sm:$0xf]
          %v603 = vld [vmem:[#allocation8 + $0x78] sm:$0xff]
          %v604 = vld [vmem:[#allocation8 + $0x80] sm:$0xf]
          %v605 = vld [vmem:[#allocation8 + $0x84] sm:$0xff]
          %v606 = vld [vmem:[#allocation8 + $0x8c] sm:$0xf]
          %v607 = vld [vmem:[#allocation8 + $0x90] sm:$0xff]
          %v608 = vld [vmem:[#allocation8 + $0x98] sm:$0xf]
          %v609 = vld [vmem:[#allocation8 + $0x9c] sm:$0xff]
          %v610 = vld [vmem:[#allocation8 + $0xa4] sm:$0xf]
          %v611 = vld [vmem:[#allocation8 + $0xa8] sm:$0xff]
          %v612 = vld [vmem:[#allocation8 + $0xb0] sm:$0xf]
          %v613 = vld [vmem:[#allocation8 + $0xb4] sm:$0xff]
          %v614 = vld [vmem:[#allocation8 + $0xbc] sm:$0xf]
          %v647 = vunpack.c.l.b16 %v583
          %v648 = vunpack.c.h.b16 %v583
          %v649 = vunpack.c.l.b16 %v584
          %v650 = vunpack.c.l.b16 %v585
          %v651 = vunpack.c.h.b16 %v585
          %v652 = vunpack.c.l.b16 %v586
          %v653 = vunpack.c.l.b16 %v587
          %v654 = vunpack.c.h.b16 %v587
          %v655 = vunpack.c.l.b16 %v588
          %v656 = vunpack.c.l.b16 %v589
          %v657 = vunpack.c.h.b16 %v589
          %v658 = vunpack.c.l.b16 %v590
          %v659 = vunpack.c.l.b16 %v591
          %v660 = vunpack.c.h.b16 %v591
          %v661 = vunpack.c.l.b16 %v592
          %v662 = vunpack.c.l.b16 %v593
          %v663 = vunpack.c.h.b16 %v593
          %v664 = vunpack.c.l.b16 %v594
          %v665 = vunpack.c.l.b16 %v595
          %v666 = vunpack.c.h.b16 %v595
          %v667 = vunpack.c.l.b16 %v596
          %v668 = vunpack.c.l.b16 %v597
          %v669 = vunpack.c.h.b16 %v597
          %v670 = vunpack.c.l.b16 %v598
          %v671 = vunpack.c.l.b16 %v599
          %v672 = vunpack.c.h.b16 %v599
          %v673 = vunpack.c.l.b16 %v600
          %v674 = vunpack.c.l.b16 %v601
          %v675 = vunpack.c.h.b16 %v601
          %v676 = vunpack.c.l.b16 %v602
          %v677 = vunpack.c.l.b16 %v603
          %v678 = vunpack.c.h.b16 %v603
          %v679 = vunpack.c.l.b16 %v604
          %v680 = vunpack.c.l.b16 %v605
          %v681 = vunpack.c.h.b16 %v605
          %v682 = vunpack.c.l.b16 %v606
          %v683 = vunpack.c.l.b16 %v607
          %v684 = vunpack.c.h.b16 %v607
          %v685 = vunpack.c.l.b16 %v608
          %v686 = vunpack.c.l.b16 %v609
          %v687 = vunpack.c.h.b16 %v609
          %v688 = vunpack.c.l.b16 %v610
          %v689 = vunpack.c.l.b16 %v611
          %v690 = vunpack.c.h.b16 %v611
          %v691 = vunpack.c.l.b16 %v612
          %v692 = vunpack.c.l.b16 %v613
          %v693 = vunpack.c.h.b16 %v613
          %v694 = vunpack.c.l.b16 %v614
          %v695 = vpack.c.b16 %v650, %v647
          %v696 = vpack.c.b16 %v651, %v648
          %v697 = vpack.c.b16 %v652, %v649
          %v698 = vpack.c.b16 %v656, %v653
          %v699 = vpack.c.b16 %v657, %v654
          %v700 = vpack.c.b16 %v658, %v655
          %v701 = vpack.c.b16 %v662, %v659
          %v702 = vpack.c.b16 %v663, %v660
          %v703 = vpack.c.b16 %v664, %v661
          %v704 = vpack.c.b16 %v668, %v665
          %v705 = vpack.c.b16 %v669, %v666
          %v706 = vpack.c.b16 %v670, %v667
          %v707 = vpack.c.b16 %v674, %v671
          %v708 = vpack.c.b16 %v675, %v672
          %v709 = vpack.c.b16 %v676, %v673
          %v710 = vpack.c.b16 %v680, %v677
          %v711 = vpack.c.b16 %v681, %v678
          %v712 = vpack.c.b16 %v682, %v679
          %v713 = vpack.c.b16 %v686, %v683
          %v714 = vpack.c.b16 %v687, %v684
          %v715 = vpack.c.b16 %v688, %v685
          %v716 = vpack.c.b16 %v692, %v689
          %v717 = vpack.c.b16 %v693, %v690
          %v718 = vpack.c.b16 %v694, %v691
          %743 = vmatprep.subr.bf16.mxu0 %v717
          %744 = vmatpush1.bf16.msra.mxu0 %v716
          %745 = vmatprep.subr.bf16.mxu0 %v714
          %746 = vmatpush1.bf16.msra.mxu0 %v713
          %747 = vmatprep.subr.bf16.mxu0 %v711
          %748 = vmatpush1.bf16.msra.mxu0 %v710
          %749 = vmatprep.subr.bf16.mxu0 %v708
          %750 = vmatpush1.bf16.msra.mxu0 %v707
          %751 = vmatprep.subr.bf16.mxu0 %v705
          %752 = vmatpush1.bf16.msra.mxu0 %v704
          %753 = vmatprep.subr.bf16.mxu0 %v702
          %754 = vmatpush1.bf16.msra.mxu0 %v701
          %755 = vmatprep.subr.bf16.mxu0 %v699
          %756 = vmatpush1.bf16.msra.mxu0 %v698
          %757 = vmatprep.subr.bf16.mxu0 %v696
          %758 = vmatpush1.bf16.msra.mxu0 %v695
          %759 = vmatprep.subr.bf16.mxu0 0
          %760 = vmatpush2.bf16.msra.mxu0 0
          %761 = vmatprep.subr.bf16.mxu0 0
          %762 = vmatpush2.bf16.msra.mxu0 0
          %763 = vmatprep.subr.bf16.mxu0 0
          %764 = vmatpush2.bf16.msra.mxu0 0
          %765 = vmatprep.subr.bf16.mxu0 0
          %766 = vmatpush2.bf16.msra.mxu0 0
          %767 = vmatprep.subr.bf16.mxu0 0
          %768 = vmatpush2.bf16.msra.mxu0 0
          %769 = vmatprep.subr.bf16.mxu0 0
          %770 = vmatpush2.bf16.msra.mxu0 0
          %771 = vmatprep.subr.bf16.mxu0 0
          %772 = vmatpush2.bf16.msra.mxu0 0
          %773 = vmatprep.subr.bf16.mxu0 0
          %774 = vmatpush2.bf16.msra.mxu0 0
          %775 = vmatprep.mubr.bf16.mxu0 0
          %776 = vmatmul.mubr.bf16.gmra.mxu0 %v581
          %v777 = vpop.f32.mrf.mxu0
          %v778 = vadd.f32 0.0, %v777
          %v779 = vpop.f32.mrf.mxu0
          %v780 = vadd.f32 0.0, %v779
          %v781 = vpop.f32.mrf.mxu0
          %v782 = vadd.f32 0.0, %v781
          %v783 = vpop.f32.mrf.mxu0
          %v784 = vadd.f32 0.0, %v783
          %785 = vmatprep.mubr.bf16.mxu0 0
          %786 = vmatmul.mubr.bf16.gmra.mxu0 %v582
          %v787 = vpop.f32.mrf.mxu0
          %v788 = vadd.f32 0.0, %v787
          %v789 = vpop.f32.mrf.mxu0
          %v790 = vadd.f32 0.0, %v789
          %v791 = vpop.f32.mrf.mxu0
          %v792 = vadd.f32 0.0, %v791
          %v793 = vpop.f32.mrf.mxu0
          %v794 = vadd.f32 0.0, %v793
          %795 = vdwg.mxu0
          %796 = vmatprep.subr.bf16.mxu0 0
          %797 = vmatpush1.bf16.msra.mxu0 %v718
          %798 = vmatprep.subr.bf16.mxu0 0
          %799 = vmatpush1.bf16.msra.mxu0 %v715
          %800 = vmatprep.subr.bf16.mxu0 0
          %801 = vmatpush1.bf16.msra.mxu0 %v712
          %802 = vmatprep.subr.bf16.mxu0 0
          %803 = vmatpush1.bf16.msra.mxu0 %v709
          %804 = vmatprep.subr.bf16.mxu0 0
          %805 = vmatpush1.bf16.msra.mxu0 %v706
          %806 = vmatprep.subr.bf16.mxu0 0
          %807 = vmatpush1.bf16.msra.mxu0 %v703
          %808 = vmatprep.subr.bf16.mxu0 0
          %809 = vmatpush1.bf16.msra.mxu0 %v700
          %810 = vmatprep.subr.bf16.mxu0 0
          %811 = vmatpush1.bf16.msra.mxu0 %v697
          %812 = vmatprep.subr.bf16.mxu0 0
          %813 = vmatpush2.bf16.msra.mxu0 0
          %814 = vmatprep.subr.bf16.mxu0 0
          %815 = vmatpush2.bf16.msra.mxu0 0
          %816 = vmatprep.subr.bf16.mxu0 0
          %817 = vmatpush2.bf16.msra.mxu0 0
          %818 = vmatprep.subr.bf16.mxu0 0
          %819 = vmatpush2.bf16.msra.mxu0 0
          %820 = vmatprep.subr.bf16.mxu0 0
          %821 = vmatpush2.bf16.msra.mxu0 0
          %822 = vmatprep.subr.bf16.mxu0 0
          %823 = vmatpush2.bf16.msra.mxu0 0
          %824 = vmatprep.subr.bf16.mxu0 0
          %825 = vmatpush2.bf16.msra.mxu0 0
          %826 = vmatprep.subr.bf16.mxu0 0
          %827 = vmatpush2.bf16.msra.mxu0 0
          %828 = vmatprep.mubr.bf16.mxu0 0
          %829 = vmatmul.mubr.bf16.gmra.mxu0 %v581
          %v830 = vpop.f32.mrf.mxu0
          %v831 = vadd.f32 0.0, %v830
          %v832 = vpop.f32.mrf.mxu0
          %v833 = vpop.f32.mrf.mxu0
          %v834 = vadd.f32 0.0, %v833
          %v835 = vpop.f32.mrf.mxu0
          %836 = vmatprep.mubr.bf16.mxu0 0
          %837 = vmatmul.mubr.bf16.gmra.mxu0 %v582
          %v838 = vpop.f32.mrf.mxu0
          %v839 = vadd.f32 0.0, %v838
          %v840 = vpop.f32.mrf.mxu0
          %v841 = vpop.f32.mrf.mxu0
          %v842 = vadd.f32 0.0, %v841
          %v843 = vpop.f32.mrf.mxu0
          %844 = vdwg.mxu0
          %v845 = vpack.c.bf16 %v782, %v778
          %v846 = vpack.c.bf16 %v784, %v780
          %v847 = vpack.c.bf16 %v834, %v831
          %v848 = vpack.c.bf16 %v792, %v788
          %v849 = vpack.c.bf16 %v794, %v790
          %v850 = vpack.c.bf16 %v842, %v839
          %v853 = vunpack.c.l.b16 %v845
          %v854 = vunpack.c.h.b16 %v845
          %v855 = vunpack.c.l.b16 %v848
          %v856 = vunpack.c.h.b16 %v848
          %v857 = vpack.c.b16 %v853, %v853
          %v858 = vpack.c.b16 %v854, %v854
          %v859 = vpack.c.b16 %v855, %v855
          %v860 = vpack.c.b16 %v856, %v856
          %vm865 = vcmask 257024
          %866 = vst.msk [vmem:[#allocation2] sm:$0xf] %vm865, %v857
          %867 = vst.msk [vmem:[#allocation2 + $0x4] sm:$0xf] %vm865, %v858
          %868 = vst.msk [vmem:[#allocation2 + $0x8] sm:$0xf] %vm865, %v859
          %869 = vst.msk [vmem:[#allocation2 + $0xc] sm:$0xf] %vm865, %v860
          %v872 = vunpack.c.l.b16 %v846
          %v873 = vunpack.c.h.b16 %v846
          %v874 = vunpack.c.l.b16 %v849
          %v875 = vunpack.c.h.b16 %v849
          %v876 = vpack.c.b16 %v872, %v872
          %v877 = vpack.c.b16 %v873, %v873
          %v878 = vpack.c.b16 %v874, %v874
          %v879 = vpack.c.b16 %v875, %v875
          %884 = vst.msk [vmem:[#allocation3] sm:$0xf] %vm865, %v876
          %885 = vst.msk [vmem:[#allocation3 + $0x4] sm:$0xf] %vm865, %v877
          %886 = vst.msk [vmem:[#allocation3 + $0x8] sm:$0xf] %vm865, %v878
          %887 = vst.msk [vmem:[#allocation3 + $0xc] sm:$0xf] %vm865, %v879
          %v890 = vunpack.c.l.b16 %v847
          %v891 = vunpack.c.h.b16 %v847
          %v892 = vunpack.c.l.b16 %v850
          %v893 = vunpack.c.h.b16 %v850
          %v894 = vpack.c.b16 %v890, %v890
          %v895 = vpack.c.b16 %v891, %v891
          %v896 = vpack.c.b16 %v892, %v892
          %v897 = vpack.c.b16 %v893, %v893
          %902 = vst.msk [vmem:[#allocation4] sm:$0xf] %vm865, %v894
          %903 = vst.msk [vmem:[#allocation4 + $0x4] sm:$0xf] %vm865, %v895
          %904 = vst.msk [vmem:[#allocation4 + $0x8] sm:$0xf] %vm865, %v896
          %905 = vst.msk [vmem:[#allocation4 + $0xc] sm:$0xf] %vm865, %v897
          %906 = vrot.lane.b32.xlu0 %v857, 96
          %v907 = vpop.permute.xlu0 %906
          %908 = vrot.lane.b32.xlu0 %v858, 96
          %v909 = vpop.permute.xlu0 %908
          %910 = vrot.lane.b32.xlu0 %v859, 96
          %v911 = vpop.permute.xlu0 %910
          %912 = vrot.lane.b32.xlu0 %v860, 96
          %v913 = vpop.permute.xlu0 %912
          %s918 = scalar_lea.vmem [#allocation2], 16
          %919 = vst.msk [vmem:[%s918] sm:$0xf] %vm865, %v907
          %920 = vst.msk [vmem:[%s918 + $0x4] sm:$0xf] %vm865, %v909
          %921 = vst.msk [vmem:[%s918 + $0x8] sm:$0xf] %vm865, %v911
          %922 = vst.msk [vmem:[%s918 + $0xc] sm:$0xf] %vm865, %v913
          %923 = vrot.lane.b32.xlu0 %v876, 96
          %v924 = vpop.permute.xlu0 %923
          %925 = vrot.lane.b32.xlu0 %v877, 96
          %v926 = vpop.permute.xlu0 %925
          %927 = vrot.lane.b32.xlu0 %v878, 96
          %v928 = vpop.permute.xlu0 %927
          %929 = vrot.lane.b32.xlu0 %v879, 96
          %v930 = vpop.permute.xlu0 %929
          %s935 = scalar_lea.vmem [#allocation3], 16
          %936 = vst.msk [vmem:[%s935] sm:$0xf] %vm865, %v924
          %937 = vst.msk [vmem:[%s935 + $0x4] sm:$0xf] %vm865, %v926
          %938 = vst.msk [vmem:[%s935 + $0x8] sm:$0xf] %vm865, %v928
          %939 = vst.msk [vmem:[%s935 + $0xc] sm:$0xf] %vm865, %v930
          %940 = vrot.lane.b32.xlu0 %v894, 96
          %v941 = vpop.permute.xlu0 %940
          %942 = vrot.lane.b32.xlu0 %v895, 96
          %v943 = vpop.permute.xlu0 %942
          %944 = vrot.lane.b32.xlu0 %v896, 96
          %v945 = vpop.permute.xlu0 %944
          %946 = vrot.lane.b32.xlu0 %v897, 96
          %v947 = vpop.permute.xlu0 %946
          %s952 = scalar_lea.vmem [#allocation4], 16
          %953 = vst.msk [vmem:[%s952] sm:$0xf] %vm865, %v941
          %954 = vst.msk [vmem:[%s952 + $0x4] sm:$0xf] %vm865, %v943
          %955 = vst.msk [vmem:[%s952 + $0x8] sm:$0xf] %vm865, %v945
          %956 = vst.msk [vmem:[%s952 + $0xc] sm:$0xf] %vm865, %v947
          %957 = vrot.lane.b32.xlu0 %v857, 64
          %v958 = vpop.permute.xlu0 %957
          %959 = vrot.lane.b32.xlu0 %v858, 64
          %v960 = vpop.permute.xlu0 %959
          %961 = vrot.lane.b32.xlu0 %v859, 64
          %v962 = vpop.permute.xlu0 %961
          %963 = vrot.lane.b32.xlu0 %v860, 64
          %v964 = vpop.permute.xlu0 %963
          %s969 = scalar_lea.vmem [#allocation2], 32
          %970 = vst.msk [vmem:[%s969] sm:$0xf] %vm865, %v958
          %971 = vst.msk [vmem:[%s969 + $0x4] sm:$0xf] %vm865, %v960
          %972 = vst.msk [vmem:[%s969 + $0x8] sm:$0xf] %vm865, %v962
          %973 = vst.msk [vmem:[%s969 + $0xc] sm:$0xf] %vm865, %v964
          %974 = vrot.lane.b32.xlu0 %v876, 64
          %v975 = vpop.permute.xlu0 %974
          %976 = vrot.lane.b32.xlu0 %v877, 64
          %v977 = vpop.permute.xlu0 %976
          %978 = vrot.lane.b32.xlu0 %v878, 64
          %v979 = vpop.permute.xlu0 %978
          %980 = vrot.lane.b32.xlu0 %v879, 64
          %v981 = vpop.permute.xlu0 %980
          %s986 = scalar_lea.vmem [#allocation3], 32
          %987 = vst.msk [vmem:[%s986] sm:$0xf] %vm865, %v975
          %988 = vst.msk [vmem:[%s986 + $0x4] sm:$0xf] %vm865, %v977
          %989 = vst.msk [vmem:[%s986 + $0x8] sm:$0xf] %vm865, %v979
          %990 = vst.msk [vmem:[%s986 + $0xc] sm:$0xf] %vm865, %v981
          %991 = vrot.lane.b32.xlu0 %v894, 64
          %v992 = vpop.permute.xlu0 %991
          %993 = vrot.lane.b32.xlu0 %v895, 64
          %v994 = vpop.permute.xlu0 %993
          %995 = vrot.lane.b32.xlu0 %v896, 64
          %v996 = vpop.permute.xlu0 %995
          %997 = vrot.lane.b32.xlu0 %v897, 64
          %v998 = vpop.permute.xlu0 %997
          %s1003 = scalar_lea.vmem [#allocation4], 32
          %1004 = vst.msk [vmem:[%s1003] sm:$0xf] %vm865, %v992
          %1005 = vst.msk [vmem:[%s1003 + $0x4] sm:$0xf] %vm865, %v994
          %1006 = vst.msk [vmem:[%s1003 + $0x8] sm:$0xf] %vm865, %v996
          %1007 = vst.msk [vmem:[%s1003 + $0xc] sm:$0xf] %vm865, %v998
          %1008 = vrot.lane.b32.xlu0 %v857, 32
          %v1009 = vpop.permute.xlu0 %1008
          %1010 = vrot.lane.b32.xlu0 %v858, 32
          %v1011 = vpop.permute.xlu0 %1010
          %1012 = vrot.lane.b32.xlu0 %v859, 32
          %v1013 = vpop.permute.xlu0 %1012
          %1014 = vrot.lane.b32.xlu0 %v860, 32
          %v1015 = vpop.permute.xlu0 %1014
          %s1020 = scalar_lea.vmem [#allocation2], 48
          %1021 = vst.msk [vmem:[%s1020] sm:$0xf] %vm865, %v1009
          %1022 = vst.msk [vmem:[%s1020 + $0x4] sm:$0xf] %vm865, %v1011
          %1023 = vst.msk [vmem:[%s1020 + $0x8] sm:$0xf] %vm865, %v1013
          %1024 = vst.msk [vmem:[%s1020 + $0xc] sm:$0xf] %vm865, %v1015
          %1025 = vrot.lane.b32.xlu0 %v876, 32
          %v1026 = vpop.permute.xlu0 %1025
          %1027 = vrot.lane.b32.xlu0 %v877, 32
          %v1028 = vpop.permute.xlu0 %1027
          %1029 = vrot.lane.b32.xlu0 %v878, 32
          %v1030 = vpop.permute.xlu0 %1029
          %1031 = vrot.lane.b32.xlu0 %v879, 32
          %v1032 = vpop.permute.xlu0 %1031
          %s1037 = scalar_lea.vmem [#allocation3], 48
          %1038 = vst.msk [vmem:[%s1037] sm:$0xf] %vm865, %v1026
          %1039 = vst.msk [vmem:[%s1037 + $0x4] sm:$0xf] %vm865, %v1028
          %1040 = vst.msk [vmem:[%s1037 + $0x8] sm:$0xf] %vm865, %v1030
          %1041 = vst.msk [vmem:[%s1037 + $0xc] sm:$0xf] %vm865, %v1032
          %1042 = vrot.lane.b32.xlu0 %v894, 32
          %v1043 = vpop.permute.xlu0 %1042
          %1044 = vrot.lane.b32.xlu0 %v895, 32
          %v1045 = vpop.permute.xlu0 %1044
          %1046 = vrot.lane.b32.xlu0 %v896, 32
          %v1047 = vpop.permute.xlu0 %1046
          %1048 = vrot.lane.b32.xlu0 %v897, 32
          %v1049 = vpop.permute.xlu0 %1048
          %s1054 = scalar_lea.vmem [#allocation4], 48
          %1055 = vst.msk [vmem:[%s1054] sm:$0xf] %vm865, %v1043
          %1056 = vst.msk [vmem:[%s1054 + $0x4] sm:$0xf] %vm865, %v1045
          %1057 = vst.msk [vmem:[%s1054 + $0x8] sm:$0xf] %vm865, %v1047
          %1058 = vst.msk [vmem:[%s1054 + $0xc] sm:$0xf] %vm865, %v1049
        $region92: #{tpu_custom_call.1} parent=67 // pred_fallthru
          _
        %s1059 = smul.u32 %s36, 16
        %s1060 = scalar_lea.vmem %s447, %s1059 [#allocation5]
        %v1061 = vld [vmem:[%s1060] sm:$0xff]
        %v1062 = vld [vmem:[%s1060 + $0x8] sm:$0xff]
        %s1063 = sshra.s32 %s1059, 3
        %s1064 = sand.u32 %s1059, 7
        %s1065 = smul.addr %s1063, 4
        %s1066 = scalar_lea.vmem [#allocation2], %s1065
        %v1067 = vld [vmem:[%s1066] sm:$0xf]
        %v1068 = vld [vmem:[%s1066 + $0x4] sm:$0xf]
        %v1069 = vld [vmem:[%s1066 + $0x10] sm:$0xf]
        %v1070 = vld [vmem:[%s1066 + $0x14] sm:$0xf]
        %v1071 = vld [vmem:[%s1066 + $0x20] sm:$0xf]
        %v1072 = vld [vmem:[%s1066 + $0x24] sm:$0xf]
        %v1073 = vld [vmem:[%s1066 + $0x30] sm:$0xf]
        %v1074 = vld [vmem:[%s1066 + $0x34] sm:$0xf]
        %v1075 = vld [vmem:[#allocation3] sm:$0xf]
        %v1076 = vld [vmem:[#allocation3 + $0x4] sm:$0xf]
        %v1077 = vld [vmem:[#allocation3 + $0x8] sm:$0xf]
        %v1078 = vld [vmem:[#allocation3 + $0xc] sm:$0xf]
        %v1079 = vld [vmem:[#allocation3 + $0x10] sm:$0xf]
        %v1080 = vld [vmem:[#allocation3 + $0x14] sm:$0xf]
        %v1081 = vld [vmem:[#allocation3 + $0x18] sm:$0xf]
        %v1082 = vld [vmem:[#allocation3 + $0x1c] sm:$0xf]
        %v1083 = vld [vmem:[#allocation3 + $0x20] sm:$0xf]
        %v1084 = vld [vmem:[#allocation3 + $0x24] sm:$0xf]
        %v1085 = vld [vmem:[#allocation3 + $0x28] sm:$0xf]
        %v1086 = vld [vmem:[#allocation3 + $0x2c] sm:$0xf]
        %v1087 = vld [vmem:[#allocation3 + $0x30] sm:$0xf]
        %v1088 = vld [vmem:[#allocation3 + $0x34] sm:$0xf]
        %v1089 = vld [vmem:[#allocation3 + $0x38] sm:$0xf]
        %v1090 = vld [vmem:[#allocation3 + $0x3c] sm:$0xf]
        %v1091 = vld [vmem:[#allocation4] sm:$0xf]
        %v1092 = vld [vmem:[#allocation4 + $0x4] sm:$0xf]
        %v1093 = vld [vmem:[#allocation4 + $0x8] sm:$0xf]
        %v1094 = vld [vmem:[#allocation4 + $0xc] sm:$0xf]
        %v1095 = vld [vmem:[#allocation4 + $0x10] sm:$0xf]
        %v1096 = vld [vmem:[#allocation4 + $0x14] sm:$0xf]
        %v1097 = vld [vmem:[#allocation4 + $0x18] sm:$0xf]
        %v1098 = vld [vmem:[#allocation4 + $0x1c] sm:$0xf]
        %v1099 = vld [vmem:[#allocation4 + $0x20] sm:$0xf]
        %v1100 = vld [vmem:[#allocation4 + $0x24] sm:$0xf]
        %v1101 = vld [vmem:[#allocation4 + $0x28] sm:$0xf]
        %v1102 = vld [vmem:[#allocation4 + $0x2c] sm:$0xf]
        %v1103 = vld [vmem:[#allocation4 + $0x30] sm:$0xf]
        %v1104 = vld [vmem:[#allocation4 + $0x34] sm:$0xf]
        %v1105 = vld [vmem:[#allocation4 + $0x38] sm:$0xf]
        %v1106 = vld [vmem:[#allocation4 + $0x3c] sm:$0xf]
        %v1109 = vunpack.c.l.b16 %v1067
        %v1110 = vunpack.c.l.b16 %v1068
        %v1111 = vpack.c.b16 %v1110, %v1109
        %v1116 = vunpack.c.l.b16 %v1075
        %v1117 = vunpack.c.l.b16 %v1076
        %v1118 = vunpack.c.l.b16 %v1077
        %v1119 = vunpack.c.l.b16 %v1078
        %v1120 = vpack.c.b16 %v1117, %v1116
        %v1121 = vpack.c.b16 %v1119, %v1118
        %vm1122 = vcmask 261120
        %v1124 = vsel %vm1122, %v1111, 0
        %v1127 = vsel %vm1122, %v1120, 0
        %v1130 = vsel %vm1122, %v1121, 0
        %1132 = vmatprep.subr.bf16.mxu0 0
        %1133 = vmatpush1.bf16.xpose.msra.mxu0 0
        %1134 = vmatprep.subr.bf16.mxu0 0
        %1135 = vmatpush1.bf16.xpose.msra.mxu0 0
        %1136 = vmatprep.subr.bf16.mxu0 0
        %1137 = vmatpush1.bf16.xpose.msra.mxu0 0
        %1138 = vmatprep.subr.bf16.mxu0 0
        %1139 = vmatpush1.bf16.xpose.msra.mxu0 0
        %1140 = vmatprep.subr.bf16.mxu0 0
        %1141 = vmatpush1.bf16.xpose.msra.mxu0 0
        %1142 = vmatprep.subr.bf16.mxu0 0
        %1143 = vmatpush1.bf16.xpose.msra.mxu0 0
        %1144 = vmatprep.subr.bf16.mxu0 0
        %1145 = vmatpush1.bf16.xpose.msra.mxu0 %v1130
        %1146 = vmatprep.subr.bf16.mxu0 0
        %1147 = vmatpush1.bf16.xpose.msra.mxu0 %v1127
        %1148 = vmatprep.subr.bf16.mxu0 0
        %1149 = vmatpush2.bf16.xpose.msra.mxu0 0
        %1150 = vmatprep.subr.bf16.mxu0 0
        %1151 = vmatpush2.bf16.xpose.msra.mxu0 0
        %1152 = vmatprep.subr.bf16.mxu0 0
        %1153 = vmatpush2.bf16.xpose.msra.mxu0 0
        %1154 = vmatprep.subr.bf16.mxu0 0
        %1155 = vmatpush2.bf16.xpose.msra.mxu0 0
        %1156 = vmatprep.subr.bf16.mxu0 0
        %1157 = vmatpush2.bf16.xpose.msra.mxu0 0
        %1158 = vmatprep.subr.bf16.mxu0 0
        %1159 = vmatpush2.bf16.xpose.msra.mxu0 0
        %1160 = vmatprep.subr.bf16.mxu0 0
        %1161 = vmatpush2.bf16.xpose.msra.mxu0 0
        %1162 = vmatprep.subr.bf16.mxu0 0
        %1163 = vmatpush2.bf16.xpose.msra.mxu0 0
        %1164 = vmatprep.mubr.bf16.mxu0 0
        %1165 = vmatmul.mubr.bf16.gmra.mxu0 %v1124
        %v1166 = vpop.f32.mrf.mxu0
        %v1167 = vadd.f32 0.0, %v1166
        %v1168 = vpop.f32.mrf.mxu0
        %v1169 = vpop.f32.mrf.mxu0
        %v1170 = vadd.f32 0.0, %v1169
        %v1171 = vpop.f32.mrf.mxu0
        %1172 = vdwg.mxu0
        %v1175 = vunpack.c.l.b16 %v1069
        %v1176 = vunpack.c.l.b16 %v1070
        %v1177 = vpack.c.b16 %v1176, %v1175
        %v1182 = vunpack.c.l.b16 %v1079
        %v1183 = vunpack.c.l.b16 %v1080
        %v1184 = vunpack.c.l.b16 %v1081
        %v1185 = vunpack.c.l.b16 %v1082
        %v1186 = vpack.c.b16 %v1183, %v1182
        %v1187 = vpack.c.b16 %v1185, %v1184
        %v1189 = vsel %vm1122, %v1177, 0
        %v1192 = vsel %vm1122, %v1186, 0
        %v1195 = vsel %vm1122, %v1187, 0
        %1197 = vmatprep.subr.bf16.mxu0 0
        %1198 = vmatpush1.bf16.xpose.msra.mxu0 0
        %1199 = vmatprep.subr.bf16.mxu0 0
        %1200 = vmatpush1.bf16.xpose.msra.mxu0 0
        %1201 = vmatprep.subr.bf16.mxu0 0
        %1202 = vmatpush1.bf16.xpose.msra.mxu0 0
        %1203 = vmatprep.subr.bf16.mxu0 0
        %1204 = vmatpush1.bf16.xpose.msra.mxu0 0
        %1205 = vmatprep.subr.bf16.mxu0 0
        %1206 = vmatpush1.bf16.xpose.msra.mxu0 0
        %1207 = vmatprep.subr.bf16.mxu0 0
        %1208 = vmatpush1.bf16.xpose.msra.mxu0 0
        %1209 = vmatprep.subr.bf16.mxu0 0
        %1210 = vmatpush1.bf16.xpose.msra.mxu0 %v1195
        %1211 = vmatprep.subr.bf16.mxu0 0
        %1212 = vmatpush1.bf16.xpose.msra.mxu0 %v1192
        %1213 = vmatprep.subr.bf16.mxu0 0
        %1214 = vmatpush2.bf16.xpose.msra.mxu0 0
        %1215 = vmatprep.subr.bf16.mxu0 0
        %1216 = vmatpush2.bf16.xpose.msra.mxu0 0
        %1217 = vmatprep.subr.bf16.mxu0 0
        %1218 = vmatpush2.bf16.xpose.msra.mxu0 0
        %1219 = vmatprep.subr.bf16.mxu0 0
        %1220 = vmatpush2.bf16.xpose.msra.mxu0 0
        %1221 = vmatprep.subr.bf16.mxu0 0
        %1222 = vmatpush2.bf16.xpose.msra.mxu0 0
        %1223 = vmatprep.subr.bf16.mxu0 0
        %1224 = vmatpush2.bf16.xpose.msra.mxu0 0
        %1225 = vmatprep.subr.bf16.mxu0 0
        %1226 = vmatpush2.bf16.xpose.msra.mxu0 0
        %1227 = vmatprep.subr.bf16.mxu0 0
        %1228 = vmatpush2.bf16.xpose.msra.mxu0 0
        %1229 = vmatprep.mubr.bf16.mxu0 0
        %1230 = vmatmul.mubr.bf16.gmra.mxu0 %v1189
        %v1231 = vpop.f32.mrf.mxu0
        %v1232 = vadd.f32 0.0, %v1231
        %v1233 = vpop.f32.mrf.mxu0
        %v1234 = vpop.f32.mrf.mxu0
        %v1235 = vadd.f32 0.0, %v1234
        %v1236 = vpop.f32.mrf.mxu0
        %1237 = vdwg.mxu0
        %v1240 = vunpack.c.l.b16 %v1071
        %v1241 = vunpack.c.l.b16 %v1072
        %v1242 = vpack.c.b16 %v1241, %v1240
        %v1247 = vunpack.c.l.b16 %v1083
        %v1248 = vunpack.c.l.b16 %v1084
        %v1249 = vunpack.c.l.b16 %v1085
        %v1250 = vunpack.c.l.b16 %v1086
        %v1251 = vpack.c.b16 %v1248, %v1247
        %v1252 = vpack.c.b16 %v1250, %v1249
        %v1254 = vsel %vm1122, %v1242, 0
        %v1257 = vsel %vm1122, %v1251, 0
        %v1260 = vsel %vm1122, %v1252, 0
        %1262 = vmatprep.subr.bf16.mxu0 0
        %1263 = vmatpush1.bf16.xpose.msra.mxu0 0
        %1264 = vmatprep.subr.bf16.mxu0 0
        %1265 = vmatpush1.bf16.xpose.msra.mxu0 0
        %1266 = vmatprep.subr.bf16.mxu0 0
        %1267 = vmatpush1.bf16.xpose.msra.mxu0 0
        %1268 = vmatprep.subr.bf16.mxu0 0
        %1269 = vmatpush1.bf16.xpose.msra.mxu0 0
        %1270 = vmatprep.subr.bf16.mxu0 0
        %1271 = vmatpush1.bf16.xpose.msra.mxu0 0
        %1272 = vmatprep.subr.bf16.mxu0 0
        %1273 = vmatpush1.bf16.xpose.msra.mxu0 0
        %1274 = vmatprep.subr.bf16.mxu0 0
        %1275 = vmatpush1.bf16.xpose.msra.mxu0 %v1260
        %1276 = vmatprep.subr.bf16.mxu0 0
        %1277 = vmatpush1.bf16.xpose.msra.mxu0 %v1257
        %1278 = vmatprep.subr.bf16.mxu0 0
        %1279 = vmatpush2.bf16.xpose.msra.mxu0 0
        %1280 = vmatprep.subr.bf16.mxu0 0
        %1281 = vmatpush2.bf16.xpose.msra.mxu0 0
        %1282 = vmatprep.subr.bf16.mxu0 0
        %1283 = vmatpush2.bf16.xpose.msra.mxu0 0
        %1284 = vmatprep.subr.bf16.mxu0 0
        %1285 = vmatpush2.bf16.xpose.msra.mxu0 0
        %1286 = vmatprep.subr.bf16.mxu0 0
        %1287 = vmatpush2.bf16.xpose.msra.mxu0 0
        %1288 = vmatprep.subr.bf16.mxu0 0
        %1289 = vmatpush2.bf16.xpose.msra.mxu0 0
        %1290 = vmatprep.subr.bf16.mxu0 0
        %1291 = vmatpush2.bf16.xpose.msra.mxu0 0
        %1292 = vmatprep.subr.bf16.mxu0 0
        %1293 = vmatpush2.bf16.xpose.msra.mxu0 0
        %1294 = vmatprep.mubr.bf16.mxu0 0
        %1295 = vmatmul.mubr.bf16.gmra.mxu0 %v1254
        %v1296 = vpop.f32.mrf.mxu0
        %v1297 = vadd.f32 0.0, %v1296
        %v1298 = vpop.f32.mrf.mxu0
        %v1299 = vpop.f32.mrf.mxu0
        %v1300 = vadd.f32 0.0, %v1299
        %v1301 = vpop.f32.mrf.mxu0
        %1302 = vdwg.mxu0
        %v1305 = vunpack.c.l.b16 %v1073
        %v1306 = vunpack.c.l.b16 %v1074
        %v1307 = vpack.c.b16 %v1306, %v1305
        %v1312 = vunpack.c.l.b16 %v1087
        %v1313 = vunpack.c.l.b16 %v1088
        %v1314 = vunpack.c.l.b16 %v1089
        %v1315 = vunpack.c.l.b16 %v1090
        %v1316 = vpack.c.b16 %v1313, %v1312
        %v1317 = vpack.c.b16 %v1315, %v1314
        %v1319 = vsel %vm1122, %v1307, 0
        %v1322 = vsel %vm1122, %v1316, 0
        %v1325 = vsel %vm1122, %v1317, 0
        %1327 = vmatprep.subr.bf16.mxu0 0
        %1328 = vmatpush1.bf16.xpose.msra.mxu0 0
        %1329 = vmatprep.subr.bf16.mxu0 0
        %1330 = vmatpush1.bf16.xpose.msra.mxu0 0
        %1331 = vmatprep.subr.bf16.mxu0 0
        %1332 = vmatpush1.bf16.xpose.msra.mxu0 0
        %1333 = vmatprep.subr.bf16.mxu0 0
        %1334 = vmatpush1.bf16.xpose.msra.mxu0 0
        %1335 = vmatprep.subr.bf16.mxu0 0
        %1336 = vmatpush1.bf16.xpose.msra.mxu0 0
        %1337 = vmatprep.subr.bf16.mxu0 0
        %1338 = vmatpush1.bf16.xpose.msra.mxu0 0
        %1339 = vmatprep.subr.bf16.mxu0 0
        %1340 = vmatpush1.bf16.xpose.msra.mxu0 %v1325
        %1341 = vmatprep.subr.bf16.mxu0 0
        %1342 = vmatpush1.bf16.xpose.msra.mxu0 %v1322
        %1343 = vmatprep.subr.bf16.mxu0 0
        %1344 = vmatpush2.bf16.xpose.msra.mxu0 0
        %1345 = vmatprep.subr.bf16.mxu0 0
        %1346 = vmatpush2.bf16.xpose.msra.mxu0 0
        %1347 = vmatprep.subr.bf16.mxu0 0
        %1348 = vmatpush2.bf16.xpose.msra.mxu0 0
        %1349 = vmatprep.subr.bf16.mxu0 0
        %1350 = vmatpush2.bf16.xpose.msra.mxu0 0
        %1351 = vmatprep.subr.bf16.mxu0 0
        %1352 = vmatpush2.bf16.xpose.msra.mxu0 0
        %1353 = vmatprep.subr.bf16.mxu0 0
        %1354 = vmatpush2.bf16.xpose.msra.mxu0 0
        %1355 = vmatprep.subr.bf16.mxu0 0
        %1356 = vmatpush2.bf16.xpose.msra.mxu0 0
        %1357 = vmatprep.subr.bf16.mxu0 0
        %1358 = vmatpush2.bf16.xpose.msra.mxu0 0
        %1359 = vmatprep.mubr.bf16.mxu0 0
        %1360 = vmatmul.mubr.bf16.gmra.mxu0 %v1319
        %v1361 = vpop.f32.mrf.mxu0
        %v1362 = vadd.f32 0.0, %v1361
        %v1363 = vpop.f32.mrf.mxu0
        %v1364 = vpop.f32.mrf.mxu0
        %v1365 = vadd.f32 0.0, %v1364
        %v1366 = vpop.f32.mrf.mxu0
        %1367 = vdwg.mxu0
        %v1368 = vsel %vm1122, %v1167, -inf
        %1369 = vmax.xlane.f32.xlu0 %v1368
        %v1370 = vpop.xlane.xlu0 %1369
        %v1371 = vsel %vm1122, %v1170, -inf
        %1372 = vmax.xlane.f32.xlu0 %v1371
        %v1373 = vpop.xlane.xlu0 %1372
        %v1374 = vsel %vm1122, %v1232, -inf
        %1375 = vmax.xlane.f32.xlu0 %v1374
        %v1376 = vpop.xlane.xlu0 %1375
        %v1377 = vsel %vm1122, %v1235, -inf
        %1378 = vmax.xlane.f32.xlu0 %v1377
        %v1379 = vpop.xlane.xlu0 %1378
        %v1380 = vsel %vm1122, %v1297, -inf
        %1381 = vmax.xlane.f32.xlu0 %v1380
        %v1382 = vpop.xlane.xlu0 %1381
        %v1383 = vsel %vm1122, %v1300, -inf
        %1384 = vmax.xlane.f32.xlu0 %v1383
        %v1385 = vpop.xlane.xlu0 %1384
        %v1386 = vsel %vm1122, %v1362, -inf
        %1387 = vmax.xlane.f32.xlu0 %v1386
        %v1388 = vpop.xlane.xlu0 %1387
        %v1389 = vsel %vm1122, %v1365, -inf
        %1390 = vmax.xlane.f32.xlu0 %v1389
        %v1391 = vpop.xlane.xlu0 %1390
        %v1392 = vsub.f32 %v1167, %v1370
        %v1393 = vsub.f32 %v1170, %v1373
        %v1394 = vsub.f32 %v1232, %v1376
        %v1395 = vsub.f32 %v1235, %v1379
        %v1396 = vsub.f32 %v1297, %v1382
        %v1397 = vsub.f32 %v1300, %v1385
        %v1398 = vsub.f32 %v1362, %v1388
        %v1399 = vsub.f32 %v1365, %v1391
        %v1400 = vmul.f32 %v1392, 1.442695
        %v1401 = vpow.pop %v1400
        %v1402 = vmul.f32 %v1393, 1.442695
        %v1403 = vpow.pop %v1402
        %v1404 = vmul.f32 %v1394, 1.442695
        %v1405 = vpow.pop %v1404
        %v1406 = vmul.f32 %v1395, 1.442695
        %v1407 = vpow.pop %v1406
        %v1408 = vmul.f32 %v1396, 1.442695
        %v1409 = vpow.pop %v1408
        %v1410 = vmul.f32 %v1397, 1.442695
        %v1411 = vpow.pop %v1410
        %v1412 = vmul.f32 %v1398, 1.442695
        %v1413 = vpow.pop %v1412
        %v1414 = vmul.f32 %v1399, 1.442695
        %v1415 = vpow.pop %v1414
        %v1416 = vsel %vm1122, %v1401, 0.0
        %1417 = vadd.xlane.f32.xlu0 %v1416
        %v1418 = vpop.xlane.xlu0 %1417
        %v1419 = vsel %vm1122, %v1403, 0.0
        %1420 = vadd.xlane.f32.xlu0 %v1419
        %v1421 = vpop.xlane.xlu0 %1420
        %v1422 = vsel %vm1122, %v1405, 0.0
        %1423 = vadd.xlane.f32.xlu0 %v1422
        %v1424 = vpop.xlane.xlu0 %1423
        %v1425 = vsel %vm1122, %v1407, 0.0
        %1426 = vadd.xlane.f32.xlu0 %v1425
        %v1427 = vpop.xlane.xlu0 %1426
        %v1428 = vsel %vm1122, %v1409, 0.0
        %1429 = vadd.xlane.f32.xlu0 %v1428
        %v1430 = vpop.xlane.xlu0 %1429
        %v1431 = vsel %vm1122, %v1411, 0.0
        %1432 = vadd.xlane.f32.xlu0 %v1431
        %v1433 = vpop.xlane.xlu0 %1432
        %v1434 = vsel %vm1122, %v1413, 0.0
        %1435 = vadd.xlane.f32.xlu0 %v1434
        %v1436 = vpop.xlane.xlu0 %1435
        %v1437 = vsel %vm1122, %v1415, 0.0
        %1438 = vadd.xlane.f32.xlu0 %v1437
        %v1439 = vpop.xlane.xlu0 %1438
        %v1440 = vrcp.pop %v1418
        %v1441 = vrcp.pop %v1421
        %v1442 = vrcp.pop %v1424
        %v1443 = vrcp.pop %v1427
        %v1444 = vrcp.pop %v1430
        %v1445 = vrcp.pop %v1433
        %v1446 = vrcp.pop %v1436
        %v1447 = vrcp.pop %v1439
        %v1448 = vmul.f32 %v1401, %v1440
        %v1449 = vmul.f32 %v1403, %v1441
        %v1450 = vmul.f32 %v1405, %v1442
        %v1451 = vmul.f32 %v1407, %v1443
        %v1452 = vmul.f32 %v1409, %v1444
        %v1453 = vmul.f32 %v1411, %v1445
        %v1454 = vmul.f32 %v1413, %v1446
        %v1455 = vmul.f32 %v1415, %v1447
        %v1456 = vpack.c.bf16 %v1449, %v1448
        %v1457 = vpack.c.bf16 %v1451, %v1450
        %v1458 = vpack.c.bf16 %v1453, %v1452
        %v1459 = vpack.c.bf16 %v1455, %v1454
        %v1464 = vunpack.c.l.b16 %v1091
        %v1465 = vunpack.c.l.b16 %v1092
        %v1466 = vunpack.c.l.b16 %v1093
        %v1467 = vunpack.c.l.b16 %v1094
        %v1468 = vpack.c.b16 %v1465, %v1464
        %v1469 = vpack.c.b16 %v1467, %v1466
        %v1473 = vsel %vm1122, %v1456, 0
        %1475 = vmatprep.subr.bf16.mxu0 0
        %1476 = vmatpush1.bf16.msra.mxu0 0
        %1477 = vmatprep.subr.bf16.mxu0 0
        %1478 = vmatpush1.bf16.msra.mxu0 0
        %1479 = vmatprep.subr.bf16.mxu0 0
        %1480 = vmatpush1.bf16.msra.mxu0 0
        %1481 = vmatprep.subr.bf16.mxu0 0
        %1482 = vmatpush1.bf16.msra.mxu0 0
        %1483 = vmatprep.subr.bf16.mxu0 0
        %1484 = vmatpush1.bf16.msra.mxu0 0
        %1485 = vmatprep.subr.bf16.mxu0 0
        %1486 = vmatpush1.bf16.msra.mxu0 0
        %1487 = vmatprep.subr.bf16.mxu0 0
        %1488 = vmatpush1.bf16.msra.mxu0 %v1469
        %1489 = vmatprep.subr.bf16.mxu0 0
        %1490 = vmatpush1.bf16.msra.mxu0 %v1468
        %1491 = vmatprep.subr.bf16.mxu0 0
        %1492 = vmatpush2.bf16.msra.mxu0 0
        %1493 = vmatprep.subr.bf16.mxu0 0
        %1494 = vmatpush2.bf16.msra.mxu0 0
        %1495 = vmatprep.subr.bf16.mxu0 0
        %1496 = vmatpush2.bf16.msra.mxu0 0
        %1497 = vmatprep.subr.bf16.mxu0 0
        %1498 = vmatpush2.bf16.msra.mxu0 0
        %1499 = vmatprep.subr.bf16.mxu0 0
        %1500 = vmatpush2.bf16.msra.mxu0 0
        %1501 = vmatprep.subr.bf16.mxu0 0
        %1502 = vmatpush2.bf16.msra.mxu0 0
        %1503 = vmatprep.subr.bf16.mxu0 0
        %1504 = vmatpush2.bf16.msra.mxu0 0
        %1505 = vmatprep.subr.bf16.mxu0 0
        %1506 = vmatpush2.bf16.msra.mxu0 0
        %1507 = vmatprep.mubr.bf16.mxu0 0
        %1508 = vmatmul.mubr.bf16.gmra.mxu0 %v1473
        %v1509 = vpop.f32.mrf.mxu0
        %v1510 = vadd.f32 0.0, %v1509
        %v1511 = vpop.f32.mrf.mxu0
        %v1512 = vpop.f32.mrf.mxu0
        %v1513 = vadd.f32 0.0, %v1512
        %v1514 = vpop.f32.mrf.mxu0
        %1515 = vdwg.mxu0
        %v1520 = vunpack.c.l.b16 %v1095
        %v1521 = vunpack.c.l.b16 %v1096
        %v1522 = vunpack.c.l.b16 %v1097
        %v1523 = vunpack.c.l.b16 %v1098
        %v1524 = vpack.c.b16 %v1521, %v1520
        %v1525 = vpack.c.b16 %v1523, %v1522
        %v1529 = vsel %vm1122, %v1457, 0
        %1531 = vmatprep.subr.bf16.mxu0 0
        %1532 = vmatpush1.bf16.msra.mxu0 0
        %1533 = vmatprep.subr.bf16.mxu0 0
        %1534 = vmatpush1.bf16.msra.mxu0 0
        %1535 = vmatprep.subr.bf16.mxu0 0
        %1536 = vmatpush1.bf16.msra.mxu0 0
        %1537 = vmatprep.subr.bf16.mxu0 0
        %1538 = vmatpush1.bf16.msra.mxu0 0
        %1539 = vmatprep.subr.bf16.mxu0 0
        %1540 = vmatpush1.bf16.msra.mxu0 0
        %1541 = vmatprep.subr.bf16.mxu0 0
        %1542 = vmatpush1.bf16.msra.mxu0 0
        %1543 = vmatprep.subr.bf16.mxu0 0
        %1544 = vmatpush1.bf16.msra.mxu0 %v1525
        %1545 = vmatprep.subr.bf16.mxu0 0
        %1546 = vmatpush1.bf16.msra.mxu0 %v1524
        %1547 = vmatprep.subr.bf16.mxu0 0
        %1548 = vmatpush2.bf16.msra.mxu0 0
        %1549 = vmatprep.subr.bf16.mxu0 0
        %1550 = vmatpush2.bf16.msra.mxu0 0
        %1551 = vmatprep.subr.bf16.mxu0 0
        %1552 = vmatpush2.bf16.msra.mxu0 0
        %1553 = vmatprep.subr.bf16.mxu0 0
        %1554 = vmatpush2.bf16.msra.mxu0 0
        %1555 = vmatprep.subr.bf16.mxu0 0
        %1556 = vmatpush2.bf16.msra.mxu0 0
        %1557 = vmatprep.subr.bf16.mxu0 0
        %1558 = vmatpush2.bf16.msra.mxu0 0
        %1559 = vmatprep.subr.bf16.mxu0 0
        %1560 = vmatpush2.bf16.msra.mxu0 0
        %1561 = vmatprep.subr.bf16.mxu0 0
        %1562 = vmatpush2.bf16.msra.mxu0 0
        %1563 = vmatprep.mubr.bf16.mxu0 0
        %1564 = vmatmul.mubr.bf16.gmra.mxu0 %v1529
        %v1565 = vpop.f32.mrf.mxu0
        %v1566 = vadd.f32 0.0, %v1565
        %v1567 = vpop.f32.mrf.mxu0
        %v1568 = vpop.f32.mrf.mxu0
        %v1569 = vadd.f32 0.0, %v1568
        %v1570 = vpop.f32.mrf.mxu0
        %1571 = vdwg.mxu0
        %v1576 = vunpack.c.l.b16 %v1099
        %v1577 = vunpack.c.l.b16 %v1100
        %v1578 = vunpack.c.l.b16 %v1101
        %v1579 = vunpack.c.l.b16 %v1102
        %v1580 = vpack.c.b16 %v1577, %v1576
        %v1581 = vpack.c.b16 %v1579, %v1578
        %v1585 = vsel %vm1122, %v1458, 0
        %1587 = vmatprep.subr.bf16.mxu0 0
        %1588 = vmatpush1.bf16.msra.mxu0 0
        %1589 = vmatprep.subr.bf16.mxu0 0
        %1590 = vmatpush1.bf16.msra.mxu0 0
        %1591 = vmatprep.subr.bf16.mxu0 0
        %1592 = vmatpush1.bf16.msra.mxu0 0
        %1593 = vmatprep.subr.bf16.mxu0 0
        %1594 = vmatpush1.bf16.msra.mxu0 0
        %1595 = vmatprep.subr.bf16.mxu0 0
        %1596 = vmatpush1.bf16.msra.mxu0 0
        %1597 = vmatprep.subr.bf16.mxu0 0
        %1598 = vmatpush1.bf16.msra.mxu0 0
        %1599 = vmatprep.subr.bf16.mxu0 0
        %1600 = vmatpush1.bf16.msra.mxu0 %v1581
        %1601 = vmatprep.subr.bf16.mxu0 0
        %1602 = vmatpush1.bf16.msra.mxu0 %v1580
        %1603 = vmatprep.subr.bf16.mxu0 0
        %1604 = vmatpush2.bf16.msra.mxu0 0
        %1605 = vmatprep.subr.bf16.mxu0 0
        %1606 = vmatpush2.bf16.msra.mxu0 0
        %1607 = vmatprep.subr.bf16.mxu0 0
        %1608 = vmatpush2.bf16.msra.mxu0 0
        %1609 = vmatprep.subr.bf16.mxu0 0
        %1610 = vmatpush2.bf16.msra.mxu0 0
        %1611 = vmatprep.subr.bf16.mxu0 0
        %1612 = vmatpush2.bf16.msra.mxu0 0
        %1613 = vmatprep.subr.bf16.mxu0 0
        %1614 = vmatpush2.bf16.msra.mxu0 0
        %1615 = vmatprep.subr.bf16.mxu0 0
        %1616 = vmatpush2.bf16.msra.mxu0 0
        %1617 = vmatprep.subr.bf16.mxu0 0
        %1618 = vmatpush2.bf16.msra.mxu0 0
        %1619 = vmatprep.mubr.bf16.mxu0 0
        %1620 = vmatmul.mubr.bf16.gmra.mxu0 %v1585
        %v1621 = vpop.f32.mrf.mxu0
        %v1622 = vadd.f32 0.0, %v1621
        %v1623 = vpop.f32.mrf.mxu0
        %v1624 = vpop.f32.mrf.mxu0
        %v1625 = vadd.f32 0.0, %v1624
        %v1626 = vpop.f32.mrf.mxu0
        %1627 = vdwg.mxu0
        %v1632 = vunpack.c.l.b16 %v1103
        %v1633 = vunpack.c.l.b16 %v1104
        %v1634 = vunpack.c.l.b16 %v1105
        %v1635 = vunpack.c.l.b16 %v1106
        %v1636 = vpack.c.b16 %v1633, %v1632
        %v1637 = vpack.c.b16 %v1635, %v1634
        %v1641 = vsel %vm1122, %v1459, 0
        %1643 = vmatprep.subr.bf16.mxu0 0
        %1644 = vmatpush1.bf16.msra.mxu0 0
        %1645 = vmatprep.subr.bf16.mxu0 0
        %1646 = vmatpush1.bf16.msra.mxu0 0
        %1647 = vmatprep.subr.bf16.mxu0 0
        %1648 = vmatpush1.bf16.msra.mxu0 0
        %1649 = vmatprep.subr.bf16.mxu0 0
        %1650 = vmatpush1.bf16.msra.mxu0 0
        %1651 = vmatprep.subr.bf16.mxu0 0
        %1652 = vmatpush1.bf16.msra.mxu0 0
        %1653 = vmatprep.subr.bf16.mxu0 0
        %1654 = vmatpush1.bf16.msra.mxu0 0
        %1655 = vmatprep.subr.bf16.mxu0 0
        %1656 = vmatpush1.bf16.msra.mxu0 %v1637
        %1657 = vmatprep.subr.bf16.mxu0 0
        %1658 = vmatpush1.bf16.msra.mxu0 %v1636
        %1659 = vmatprep.subr.bf16.mxu0 0
        %1660 = vmatpush2.bf16.msra.mxu0 0
        %1661 = vmatprep.subr.bf16.mxu0 0
        %1662 = vmatpush2.bf16.msra.mxu0 0
        %1663 = vmatprep.subr.bf16.mxu0 0
        %1664 = vmatpush2.bf16.msra.mxu0 0
        %1665 = vmatprep.subr.bf16.mxu0 0
        %1666 = vmatpush2.bf16.msra.mxu0 0
        %1667 = vmatprep.subr.bf16.mxu0 0
        %1668 = vmatpush2.bf16.msra.mxu0 0
        %1669 = vmatprep.subr.bf16.mxu0 0
        %1670 = vmatpush2.bf16.msra.mxu0 0
        %1671 = vmatprep.subr.bf16.mxu0 0
        %1672 = vmatpush2.bf16.msra.mxu0 0
        %1673 = vmatprep.subr.bf16.mxu0 0
        %1674 = vmatpush2.bf16.msra.mxu0 0
        %1675 = vmatprep.mubr.bf16.mxu0 0
        %1676 = vmatmul.mubr.bf16.gmra.mxu0 %v1641
        %v1677 = vpop.f32.mrf.mxu0
        %v1678 = vadd.f32 0.0, %v1677
        %v1679 = vpop.f32.mrf.mxu0
        %v1680 = vpop.f32.mrf.mxu0
        %v1681 = vadd.f32 0.0, %v1680
        %v1682 = vpop.f32.mrf.mxu0
        %1683 = vdwg.mxu0
        %v1684 = vpack.c.bf16 %v1513, %v1510
        %v1685 = vld [vmem:[#allocation10] sm:$0xf]
        %v1686 = vld [vmem:[#allocation10 + $0x4] sm:$0xf]
        %v1687 = vld [vmem:[#allocation10 + $0x8] sm:$0xf]
        %v1688 = vld [vmem:[#allocation10 + $0xc] sm:$0xf]
        %v1689 = vpack.c.bf16 %v1569, %v1566
        %s1690 = scalar_lea.vmem [#allocation10], 16
        %v1691 = vld [vmem:[%s1690] sm:$0xf]
        %v1692 = vld [vmem:[%s1690 + $0x4] sm:$0xf]
        %v1693 = vld [vmem:[%s1690 + $0x8] sm:$0xf]
        %v1694 = vld [vmem:[%s1690 + $0xc] sm:$0xf]
        %v1699 = vunpack.c.l.b16 %v1691
        %v1700 = vunpack.c.l.b16 %v1692
        %v1701 = vunpack.c.l.b16 %v1693
        %v1702 = vunpack.c.l.b16 %v1694
        %v1703 = vpack.c.b16 %v1700, %v1699
        %v1704 = vpack.c.b16 %v1702, %v1701
        %v1708 = vsel %vm1122, %v1689, 0
        %1710 = vmatprep.subr.bf16.mxu0 0
        %1711 = vmatpush1.bf16.msra.mxu0 0
        %1712 = vmatprep.subr.bf16.mxu0 0
        %1713 = vmatpush1.bf16.msra.mxu0 0
        %1714 = vmatprep.subr.bf16.mxu0 0
        %1715 = vmatpush1.bf16.msra.mxu0 0
        %1716 = vmatprep.subr.bf16.mxu0 0
        %1717 = vmatpush1.bf16.msra.mxu0 0
        %1718 = vmatprep.subr.bf16.mxu0 0
        %1719 = vmatpush1.bf16.msra.mxu0 0
        %1720 = vmatprep.subr.bf16.mxu0 0
        %1721 = vmatpush1.bf16.msra.mxu0 0
        %1722 = vmatprep.subr.bf16.mxu0 0
        %1723 = vmatpush1.bf16.msra.mxu0 %v1704
        %1724 = vmatprep.subr.bf16.mxu0 0
        %1725 = vmatpush1.bf16.msra.mxu0 %v1703
        %1726 = vmatprep.subr.bf16.mxu0 0
        %1727 = vmatpush2.bf16.msra.mxu0 0
        %1728 = vmatprep.subr.bf16.mxu0 0
        %1729 = vmatpush2.bf16.msra.mxu0 0
        %1730 = vmatprep.subr.bf16.mxu0 0
        %1731 = vmatpush2.bf16.msra.mxu0 0
        %1732 = vmatprep.subr.bf16.mxu0 0
        %1733 = vmatpush2.bf16.msra.mxu0 0
        %1734 = vmatprep.subr.bf16.mxu0 0
        %1735 = vmatpush2.bf16.msra.mxu0 0
        %1736 = vmatprep.subr.bf16.mxu0 0
        %1737 = vmatpush2.bf16.msra.mxu0 0
        %1738 = vmatprep.subr.bf16.mxu0 0
        %1739 = vmatpush2.bf16.msra.mxu0 0
        %1740 = vmatprep.subr.bf16.mxu0 0
        %1741 = vmatpush2.bf16.msra.mxu0 0
        %1742 = vmatprep.mubr.bf16.mxu0 0
        %1743 = vmatmul.mubr.bf16.gmra.mxu0 %v1708
        %v1744 = vpop.f32.mrf.mxu0
        %v1745 = vadd.f32 0.0, %v1744
        %v1746 = vpop.f32.mrf.mxu0
        %v1747 = vpop.f32.mrf.mxu0
        %v1748 = vadd.f32 0.0, %v1747
        %v1749 = vpop.f32.mrf.mxu0
        %1750 = vdwg.mxu0
        %v1755 = vunpack.c.l.b16 %v1685
        %v1756 = vunpack.c.l.b16 %v1686
        %v1757 = vunpack.c.l.b16 %v1687
        %v1758 = vunpack.c.l.b16 %v1688
        %v1759 = vpack.c.b16 %v1756, %v1755
        %v1760 = vpack.c.b16 %v1758, %v1757
        %v1764 = vsel %vm1122, %v1684, 0
        %1766 = vmatprep.subr.bf16.mxu0 0
        %1767 = vmatpush1.bf16.msra.mxu0 0
        %1768 = vmatprep.subr.bf16.mxu0 0
        %1769 = vmatpush1.bf16.msra.mxu0 0
        %1770 = vmatprep.subr.bf16.mxu0 0
        %1771 = vmatpush1.bf16.msra.mxu0 0
        %1772 = vmatprep.subr.bf16.mxu0 0
        %1773 = vmatpush1.bf16.msra.mxu0 0
        %1774 = vmatprep.subr.bf16.mxu0 0
        %1775 = vmatpush1.bf16.msra.mxu0 0
        %1776 = vmatprep.subr.bf16.mxu0 0
        %1777 = vmatpush1.bf16.msra.mxu0 0
        %1778 = vmatprep.subr.bf16.mxu0 0
        %1779 = vmatpush1.bf16.msra.mxu0 %v1760
        %1780 = vmatprep.subr.bf16.mxu0 0
        %1781 = vmatpush1.bf16.msra.mxu0 %v1759
        %1782 = vmatprep.subr.bf16.mxu0 0
        %1783 = vmatpush2.bf16.msra.mxu0 0
        %1784 = vmatprep.subr.bf16.mxu0 0
        %1785 = vmatpush2.bf16.msra.mxu0 0
        %1786 = vmatprep.subr.bf16.mxu0 0
        %1787 = vmatpush2.bf16.msra.mxu0 0
        %1788 = vmatprep.subr.bf16.mxu0 0
        %1789 = vmatpush2.bf16.msra.mxu0 0
        %1790 = vmatprep.subr.bf16.mxu0 0
        %1791 = vmatpush2.bf16.msra.mxu0 0
        %1792 = vmatprep.subr.bf16.mxu0 0
        %1793 = vmatpush2.bf16.msra.mxu0 0
        %1794 = vmatprep.subr.bf16.mxu0 0
        %1795 = vmatpush2.bf16.msra.mxu0 0
        %1796 = vmatprep.subr.bf16.mxu0 0
        %1797 = vmatpush2.bf16.msra.mxu0 0
        %1798 = vmatprep.mubr.bf16.mxu0 0
        %1799 = vmatmul.mubr.bf16.gmra.mxu0 %v1764
        %v1800 = vpop.f32.mrf.mxu0
        %v1801 = vadd.f32 %v1745, %v1800
        %v1802 = vpop.f32.mrf.mxu0
        %v1803 = vpop.f32.mrf.mxu0
        %v1804 = vadd.f32 %v1748, %v1803
        %v1805 = vpop.f32.mrf.mxu0
        %1806 = vdwg.mxu0
        %v1807 = vpack.c.bf16 %v1625, %v1622
        %s1808 = scalar_lea.vmem [#allocation10], 32
        %v1809 = vld [vmem:[%s1808] sm:$0xf]
        %v1810 = vld [vmem:[%s1808 + $0x4] sm:$0xf]
        %v1811 = vld [vmem:[%s1808 + $0x8] sm:$0xf]
        %v1812 = vld [vmem:[%s1808 + $0xc] sm:$0xf]
        %v1817 = vunpack.c.l.b16 %v1809
        %v1818 = vunpack.c.l.b16 %v1810
        %v1819 = vunpack.c.l.b16 %v1811
        %v1820 = vunpack.c.l.b16 %v1812
        %v1821 = vpack.c.b16 %v1818, %v1817
        %v1822 = vpack.c.b16 %v1820, %v1819
        %v1826 = vsel %vm1122, %v1807, 0
        %1828 = vmatprep.subr.bf16.mxu0 0
        %1829 = vmatpush1.bf16.msra.mxu0 0
        %1830 = vmatprep.subr.bf16.mxu0 0
        %1831 = vmatpush1.bf16.msra.mxu0 0
        %1832 = vmatprep.subr.bf16.mxu0 0
        %1833 = vmatpush1.bf16.msra.mxu0 0
        %1834 = vmatprep.subr.bf16.mxu0 0
        %1835 = vmatpush1.bf16.msra.mxu0 0
        %1836 = vmatprep.subr.bf16.mxu0 0
        %1837 = vmatpush1.bf16.msra.mxu0 0
        %1838 = vmatprep.subr.bf16.mxu0 0
        %1839 = vmatpush1.bf16.msra.mxu0 0
        %1840 = vmatprep.subr.bf16.mxu0 0
        %1841 = vmatpush1.bf16.msra.mxu0 %v1822
        %1842 = vmatprep.subr.bf16.mxu0 0
        %1843 = vmatpush1.bf16.msra.mxu0 %v1821
        %1844 = vmatprep.subr.bf16.mxu0 0
        %1845 = vmatpush2.bf16.msra.mxu0 0
        %1846 = vmatprep.subr.bf16.mxu0 0
        %1847 = vmatpush2.bf16.msra.mxu0 0
        %1848 = vmatprep.subr.bf16.mxu0 0
        %1849 = vmatpush2.bf16.msra.mxu0 0
        %1850 = vmatprep.subr.bf16.mxu0 0
        %1851 = vmatpush2.bf16.msra.mxu0 0
        %1852 = vmatprep.subr.bf16.mxu0 0
        %1853 = vmatpush2.bf16.msra.mxu0 0
        %1854 = vmatprep.subr.bf16.mxu0 0
        %1855 = vmatpush2.bf16.msra.mxu0 0
        %1856 = vmatprep.subr.bf16.mxu0 0
        %1857 = vmatpush2.bf16.msra.mxu0 0
        %1858 = vmatprep.subr.bf16.mxu0 0
        %1859 = vmatpush2.bf16.msra.mxu0 0
        %1860 = vmatprep.mubr.bf16.mxu0 0
        %1861 = vmatmul.mubr.bf16.gmra.mxu0 %v1826
        %v1862 = vpop.f32.mrf.mxu0
        %v1863 = vadd.f32 0.0, %v1862
        %v1864 = vpop.f32.mrf.mxu0
        %v1865 = vpop.f32.mrf.mxu0
        %v1866 = vadd.f32 0.0, %v1865
        %v1867 = vpop.f32.mrf.mxu0
        %1868 = vdwg.mxu0
        %v1869 = vadd.f32 %v1801, %v1863
        %v1870 = vadd.f32 %v1804, %v1866
        %v1871 = vpack.c.bf16 %v1681, %v1678
        %s1872 = scalar_lea.vmem [#allocation10], 48
        %v1873 = vld [vmem:[%s1872] sm:$0xf]
        %v1874 = vld [vmem:[%s1872 + $0x4] sm:$0xf]
        %v1875 = vld [vmem:[%s1872 + $0x8] sm:$0xf]
        %v1876 = vld [vmem:[%s1872 + $0xc] sm:$0xf]
        %v1881 = vunpack.c.l.b16 %v1873
        %v1882 = vunpack.c.l.b16 %v1874
        %v1883 = vunpack.c.l.b16 %v1875
        %v1884 = vunpack.c.l.b16 %v1876
        %v1885 = vpack.c.b16 %v1882, %v1881
        %v1886 = vpack.c.b16 %v1884, %v1883
        %v1890 = vsel %vm1122, %v1871, 0
        %1892 = vmatprep.subr.bf16.mxu0 0
        %1893 = vmatpush1.bf16.msra.mxu0 0
        %1894 = vmatprep.subr.bf16.mxu0 0
        %1895 = vmatpush1.bf16.msra.mxu0 0
        %1896 = vmatprep.subr.bf16.mxu0 0
        %1897 = vmatpush1.bf16.msra.mxu0 0
        %1898 = vmatprep.subr.bf16.mxu0 0
        %1899 = vmatpush1.bf16.msra.mxu0 0
        %1900 = vmatprep.subr.bf16.mxu0 0
        %1901 = vmatpush1.bf16.msra.mxu0 0
        %1902 = vmatprep.subr.bf16.mxu0 0
        %1903 = vmatpush1.bf16.msra.mxu0 0
        %1904 = vmatprep.subr.bf16.mxu0 0
        %1905 = vmatpush1.bf16.msra.mxu0 %v1886
        %1906 = vmatprep.subr.bf16.mxu0 0
        %1907 = vmatpush1.bf16.msra.mxu0 %v1885
        %1908 = vmatprep.subr.bf16.mxu0 0
        %1909 = vmatpush2.bf16.msra.mxu0 0
        %1910 = vmatprep.subr.bf16.mxu0 0
        %1911 = vmatpush2.bf16.msra.mxu0 0
        %1912 = vmatprep.subr.bf16.mxu0 0
        %1913 = vmatpush2.bf16.msra.mxu0 0
        %1914 = vmatprep.subr.bf16.mxu0 0
        %1915 = vmatpush2.bf16.msra.mxu0 0
        %1916 = vmatprep.subr.bf16.mxu0 0
        %1917 = vmatpush2.bf16.msra.mxu0 0
        %1918 = vmatprep.subr.bf16.mxu0 0
        %1919 = vmatpush2.bf16.msra.mxu0 0
        %1920 = vmatprep.subr.bf16.mxu0 0
        %1921 = vmatpush2.bf16.msra.mxu0 0
        %1922 = vmatprep.subr.bf16.mxu0 0
        %1923 = vmatpush2.bf16.msra.mxu0 0
        %1924 = vmatprep.mubr.bf16.mxu0 0
        %1925 = vmatmul.mubr.bf16.gmra.mxu0 %v1890
        %v1926 = vpop.f32.mrf.mxu0
        %v1927 = vadd.f32 0.0, %v1926
        %v1928 = vpop.f32.mrf.mxu0
        %v1929 = vpop.f32.mrf.mxu0
        %v1930 = vadd.f32 0.0, %v1929
        %v1931 = vpop.f32.mrf.mxu0
        %1932 = vdwg.mxu0
        %v1933 = vadd.f32 %v1869, %v1927
        %v1934 = vadd.f32 %v1870, %v1930
        %v1935 = vld [vmem:[%s5] sm:$0x1]
        %v1937 = vlaneseq
        %v1938 = vshrl.u32 %v1937, 7
        %v1939 = vsub.s32 0, %v1938
        %v1940 = vrot.slane %v1935, %v1939
        %v1942 = vadd.f32 %v1933, %v1940
        %v1943 = vadd.f32 %v1934, %v1940
        %v1944 = vadd.f32 %v1061, %v1942
        %v1945 = vadd.f32 %v1062, %v1943
        %v1946 = vld [vmem:[%s6] sm:$0x1]
        %v1947 = vld [vmem:[%s7] sm:$0x1]
        %1948 = vadd.xlane.f32.xlu0 %v1944
        %v1949 = vpop.xlane.xlu0 %1948
        %1950 = vadd.xlane.f32.xlu0 %v1945
        %v1951 = vpop.xlane.xlu0 %1950
        %v1952 = vrcp.pop 128.0
        %v1953 = vmul.f32 %v1949, %v1952
        %v1954 = vmul.f32 %v1951, %v1952
        %v1955 = vsub.f32 %v1944, %v1953
        %v1956 = vsub.f32 %v1945, %v1954
        %v1957 = vmul.f32 %v1955, %v1955
        %v1958 = vmul.f32 %v1956, %v1956
        %1959 = vadd.xlane.f32.xlu0 %v1957
        %v1960 = vpop.xlane.xlu0 %1959
        %1961 = vadd.xlane.f32.xlu0 %v1958
        %v1962 = vpop.xlane.xlu0 %1961
        %v1963 = vmul.f32 %v1960, %v1952
        %v1964 = vmul.f32 %v1962, %v1952
        %v1965 = vadd.f32 %v1963, 1e-05
        %v1966 = vadd.f32 %v1964, 1e-05
        %v1967 = vrsqrt.pop %v1965
        %v1968 = vrsqrt.pop %v1966
        %v1969 = vmul.f32 %v1955, %v1967
        %v1970 = vmul.f32 %v1956, %v1968
        %v1972 = vlaneseq
        %v1973 = vshrl.u32 %v1972, 7
        %v1974 = vsub.s32 0, %v1973
        %v1975 = vrot.slane %v1946, %v1974
        %v1977 = vmul.f32 %v1969, %v1975
        %v1978 = vmul.f32 %v1970, %v1975
        %v1980 = vlaneseq
        %v1981 = vshrl.u32 %v1980, 7
        %v1982 = vsub.s32 0, %v1981
        %v1983 = vrot.slane %v1947, %v1982
        %v1985 = vadd.f32 %v1977, %v1983
        %v1986 = vadd.f32 %v1978, %v1983
        %v1987 = vpack.c.bf16 %v1986, %v1985
        %v1988 = vld [vmem:[#allocation11] sm:$0xff]
        %v1989 = vld [vmem:[#allocation11 + $0x8] sm:$0xff]
        %v1990 = vld [vmem:[#allocation11 + $0x10] sm:$0xff]
        %v1991 = vld [vmem:[#allocation11 + $0x18] sm:$0xff]
        %v1992 = vld [vmem:[#allocation11 + $0x20] sm:$0xff]
        %v1993 = vld [vmem:[#allocation11 + $0x28] sm:$0xff]
        %v1994 = vld [vmem:[#allocation11 + $0x30] sm:$0xff]
        %v1995 = vld [vmem:[#allocation11 + $0x38] sm:$0xff]
        %v1996 = vld [vmem:[#allocation11 + $0x40] sm:$0xff]
        %v1997 = vld [vmem:[#allocation11 + $0x48] sm:$0xff]
        %v1998 = vld [vmem:[#allocation11 + $0x50] sm:$0xff]
        %v1999 = vld [vmem:[#allocation11 + $0x58] sm:$0xff]
        %v2000 = vld [vmem:[#allocation11 + $0x60] sm:$0xff]
        %v2001 = vld [vmem:[#allocation11 + $0x68] sm:$0xff]
        %v2002 = vld [vmem:[#allocation11 + $0x70] sm:$0xff]
        %v2003 = vld [vmem:[#allocation11 + $0x78] sm:$0xff]
        %v2004 = vld [vmem:[#allocation11 + $0x80] sm:$0xff]
        %v2005 = vld [vmem:[#allocation11 + $0x88] sm:$0xff]
        %v2006 = vld [vmem:[#allocation11 + $0x90] sm:$0xff]
        %v2007 = vld [vmem:[#allocation11 + $0x98] sm:$0xff]
        %v2008 = vld [vmem:[#allocation11 + $0xa0] sm:$0xff]
        %v2009 = vld [vmem:[#allocation11 + $0xa8] sm:$0xff]
        %v2010 = vld [vmem:[#allocation11 + $0xb0] sm:$0xff]
        %v2011 = vld [vmem:[#allocation11 + $0xb8] sm:$0xff]
        %v2012 = vld [vmem:[#allocation11 + $0xc0] sm:$0xff]
        %v2013 = vld [vmem:[#allocation11 + $0xc8] sm:$0xff]
        %v2014 = vld [vmem:[#allocation11 + $0xd0] sm:$0xff]
        %v2015 = vld [vmem:[#allocation11 + $0xd8] sm:$0xff]
        %v2016 = vld [vmem:[#allocation11 + $0xe0] sm:$0xff]
        %v2017 = vld [vmem:[#allocation11 + $0xe8] sm:$0xff]
        %v2018 = vld [vmem:[#allocation11 + $0xf0] sm:$0xff]
        %v2019 = vld [vmem:[#allocation11 + $0xf8] sm:$0xff]
        %v2020 = vld [vmem:[%s9] sm:$0xf]
        %v2022 = vlaneseq
        %v2023 = vshrl.u32 %v2022, 7
        %v2024 = vsub.s32 0, %v2023
        %v2025 = vrot.slane %v2020, %v2024
        %v2026 = vlaneseq
        %v2027 = vshrl.u32 %v2026, 7
        %v2028 = vsub.s32 1, %v2027
        %v2029 = vrot.slane %v2020, %v2028
        %v2030 = vlaneseq
        %v2031 = vshrl.u32 %v2030, 7
        %v2032 = vsub.s32 2, %v2031
        %v2033 = vrot.slane %v2020, %v2032
        %v2034 = vlaneseq
        %v2035 = vshrl.u32 %v2034, 7
        %v2036 = vsub.s32 3, %v2035
        %v2037 = vrot.slane %v2020, %v2036
        %v2074 = vunpack.c.l.b16 %v1988
        %v2075 = vunpack.c.h.b16 %v1988
        %v2076 = vunpack.c.l.b16 %v1989
        %v2077 = vunpack.c.h.b16 %v1989
        %v2078 = vunpack.c.l.b16 %v1990
        %v2079 = vunpack.c.h.b16 %v1990
        %v2080 = vunpack.c.l.b16 %v1991
        %v2081 = vunpack.c.h.b16 %v1991
        %v2082 = vunpack.c.l.b16 %v1992
        %v2083 = vunpack.c.h.b16 %v1992
        %v2084 = vunpack.c.l.b16 %v1993
        %v2085 = vunpack.c.h.b16 %v1993
        %v2086 = vunpack.c.l.b16 %v1994
        %v2087 = vunpack.c.h.b16 %v1994
        %v2088 = vunpack.c.l.b16 %v1995
        %v2089 = vunpack.c.h.b16 %v1995
        %v2090 = vunpack.c.l.b16 %v1996
        %v2091 = vunpack.c.h.b16 %v1996
        %v2092 = vunpack.c.l.b16 %v1997
        %v2093 = vunpack.c.h.b16 %v1997
        %v2094 = vunpack.c.l.b16 %v1998
        %v2095 = vunpack.c.h.b16 %v1998
        %v2096 = vunpack.c.l.b16 %v1999
        %v2097 = vunpack.c.h.b16 %v1999
        %v2098 = vunpack.c.l.b16 %v2000
        %v2099 = vunpack.c.h.b16 %v2000
        %v2100 = vunpack.c.l.b16 %v2001
        %v2101 = vunpack.c.h.b16 %v2001
        %v2102 = vunpack.c.l.b16 %v2002
        %v2103 = vunpack.c.h.b16 %v2002
        %v2104 = vunpack.c.l.b16 %v2003
        %v2105 = vunpack.c.h.b16 %v2003
        %v2106 = vunpack.c.l.b16 %v2004
        %v2107 = vunpack.c.h.b16 %v2004
        %v2108 = vunpack.c.l.b16 %v2005
        %v2109 = vunpack.c.h.b16 %v2005
        %v2110 = vunpack.c.l.b16 %v2006
        %v2111 = vunpack.c.h.b16 %v2006
        %v2112 = vunpack.c.l.b16 %v2007
        %v2113 = vunpack.c.h.b16 %v2007
        %v2114 = vunpack.c.l.b16 %v2008
        %v2115 = vunpack.c.h.b16 %v2008
        %v2116 = vunpack.c.l.b16 %v2009
        %v2117 = vunpack.c.h.b16 %v2009
        %v2118 = vunpack.c.l.b16 %v2010
        %v2119 = vunpack.c.h.b16 %v2010
        %v2120 = vunpack.c.l.b16 %v2011
        %v2121 = vunpack.c.h.b16 %v2011
        %v2122 = vunpack.c.l.b16 %v2012
        %v2123 = vunpack.c.h.b16 %v2012
        %v2124 = vunpack.c.l.b16 %v2013
        %v2125 = vunpack.c.h.b16 %v2013
        %v2126 = vunpack.c.l.b16 %v2014
        %v2127 = vunpack.c.h.b16 %v2014
        %v2128 = vunpack.c.l.b16 %v2015
        %v2129 = vunpack.c.h.b16 %v2015
        %v2130 = vunpack.c.l.b16 %v2016
        %v2131 = vunpack.c.h.b16 %v2016
        %v2132 = vunpack.c.l.b16 %v2017
        %v2133 = vunpack.c.h.b16 %v2017
        %v2134 = vunpack.c.l.b16 %v2018
        %v2135 = vunpack.c.h.b16 %v2018
        %v2136 = vunpack.c.l.b16 %v2019
        %v2137 = vunpack.c.h.b16 %v2019
        %v2138 = vpack.c.b16 %v2078, %v2074
        %v2139 = vpack.c.b16 %v2079, %v2075
        %v2140 = vpack.c.b16 %v2080, %v2076
        %v2141 = vpack.c.b16 %v2081, %v2077
        %v2142 = vpack.c.b16 %v2086, %v2082
        %v2143 = vpack.c.b16 %v2087, %v2083
        %v2144 = vpack.c.b16 %v2088, %v2084
        %v2145 = vpack.c.b16 %v2089, %v2085
        %v2146 = vpack.c.b16 %v2094, %v2090
        %v2147 = vpack.c.b16 %v2095, %v2091
        %v2148 = vpack.c.b16 %v2096, %v2092
        %v2149 = vpack.c.b16 %v2097, %v2093
        %v2150 = vpack.c.b16 %v2102, %v2098
        %v2151 = vpack.c.b16 %v2103, %v2099
        %v2152 = vpack.c.b16 %v2104, %v2100
        %v2153 = vpack.c.b16 %v2105, %v2101
        %v2154 = vpack.c.b16 %v2110, %v2106
        %v2155 = vpack.c.b16 %v2111, %v2107
        %v2156 = vpack.c.b16 %v2112, %v2108
        %v2157 = vpack.c.b16 %v2113, %v2109
        %v2158 = vpack.c.b16 %v2118, %v2114
        %v2159 = vpack.c.b16 %v2119, %v2115
        %v2160 = vpack.c.b16 %v2120, %v2116
        %v2161 = vpack.c.b16 %v2121, %v2117
        %v2162 = vpack.c.b16 %v2126, %v2122
        %v2163 = vpack.c.b16 %v2127, %v2123
        %v2164 = vpack.c.b16 %v2128, %v2124
        %v2165 = vpack.c.b16 %v2129, %v2125
        %v2166 = vpack.c.b16 %v2134, %v2130
        %v2167 = vpack.c.b16 %v2135, %v2131
        %v2168 = vpack.c.b16 %v2136, %v2132
        %v2169 = vpack.c.b16 %v2137, %v2133
        %2202 = vmatprep.subr.bf16.mxu0 %v2167
        %2203 = vmatpush1.bf16.msra.mxu0 %v2166
        %2204 = vmatprep.subr.bf16.mxu0 %v2163
        %2205 = vmatpush1.bf16.msra.mxu0 %v2162
        %2206 = vmatprep.subr.bf16.mxu0 %v2159
        %2207 = vmatpush1.bf16.msra.mxu0 %v2158
        %2208 = vmatprep.subr.bf16.mxu0 %v2155
        %2209 = vmatpush1.bf16.msra.mxu0 %v2154
        %2210 = vmatprep.subr.bf16.mxu0 %v2151
        %2211 = vmatpush1.bf16.msra.mxu0 %v2150
        %2212 = vmatprep.subr.bf16.mxu0 %v2147
        %2213 = vmatpush1.bf16.msra.mxu0 %v2146
        %2214 = vmatprep.subr.bf16.mxu0 %v2143
        %2215 = vmatpush1.bf16.msra.mxu0 %v2142
        %2216 = vmatprep.subr.bf16.mxu0 %v2139
        %2217 = vmatpush1.bf16.msra.mxu0 %v2138
        %2218 = vmatprep.subr.bf16.mxu0 0
        %2219 = vmatpush2.bf16.msra.mxu0 0
        %2220 = vmatprep.subr.bf16.mxu0 0
        %2221 = vmatpush2.bf16.msra.mxu0 0
        %2222 = vmatprep.subr.bf16.mxu0 0
        %2223 = vmatpush2.bf16.msra.mxu0 0
        %2224 = vmatprep.subr.bf16.mxu0 0
        %2225 = vmatpush2.bf16.msra.mxu0 0
        %2226 = vmatprep.subr.bf16.mxu0 0
        %2227 = vmatpush2.bf16.msra.mxu0 0
        %2228 = vmatprep.subr.bf16.mxu0 0
        %2229 = vmatpush2.bf16.msra.mxu0 0
        %2230 = vmatprep.subr.bf16.mxu0 0
        %2231 = vmatpush2.bf16.msra.mxu0 0
        %2232 = vmatprep.subr.bf16.mxu0 0
        %2233 = vmatpush2.bf16.msra.mxu0 0
        %2234 = vmatprep.mubr.bf16.mxu0 0
        %2235 = vmatmul.mubr.bf16.gmra.mxu0 %v1987
        %v2236 = vpop.f32.mrf.mxu0
        %v2237 = vadd.f32 %v2025, %v2236
        %v2238 = vpop.f32.mrf.mxu0
        %v2239 = vadd.f32 %v2029, %v2238
        %v2240 = vpop.f32.mrf.mxu0
        %v2241 = vadd.f32 %v2025, %v2240
        %v2242 = vpop.f32.mrf.mxu0
        %v2243 = vadd.f32 %v2029, %v2242
        %2244 = vdwg.mxu0
        %2245 = vmatprep.subr.bf16.mxu0 %v2169
        %2246 = vmatpush1.bf16.msra.mxu0 %v2168
        %2247 = vmatprep.subr.bf16.mxu0 %v2165
        %2248 = vmatpush1.bf16.msra.mxu0 %v2164
        %2249 = vmatprep.subr.bf16.mxu0 %v2161
        %2250 = vmatpush1.bf16.msra.mxu0 %v2160
        %2251 = vmatprep.subr.bf16.mxu0 %v2157
        %2252 = vmatpush1.bf16.msra.mxu0 %v2156
        %2253 = vmatprep.subr.bf16.mxu0 %v2153
        %2254 = vmatpush1.bf16.msra.mxu0 %v2152
        %2255 = vmatprep.subr.bf16.mxu0 %v2149
        %2256 = vmatpush1.bf16.msra.mxu0 %v2148
        %2257 = vmatprep.subr.bf16.mxu0 %v2145
        %2258 = vmatpush1.bf16.msra.mxu0 %v2144
        %2259 = vmatprep.subr.bf16.mxu0 %v2141
        %2260 = vmatpush1.bf16.msra.mxu0 %v2140
        %2261 = vmatprep.subr.bf16.mxu0 0
        %2262 = vmatpush2.bf16.msra.mxu0 0
        %2263 = vmatprep.subr.bf16.mxu0 0
        %2264 = vmatpush2.bf16.msra.mxu0 0
        %2265 = vmatprep.subr.bf16.mxu0 0
        %2266 = vmatpush2.bf16.msra.mxu0 0
        %2267 = vmatprep.subr.bf16.mxu0 0
        %2268 = vmatpush2.bf16.msra.mxu0 0
        %2269 = vmatprep.subr.bf16.mxu0 0
        %2270 = vmatpush2.bf16.msra.mxu0 0
        %2271 = vmatprep.subr.bf16.mxu0 0
        %2272 = vmatpush2.bf16.msra.mxu0 0
        %2273 = vmatprep.subr.bf16.mxu0 0
        %2274 = vmatpush2.bf16.msra.mxu0 0
        %2275 = vmatprep.subr.bf16.mxu0 0
        %2276 = vmatpush2.bf16.msra.mxu0 0
        %2277 = vmatprep.mubr.bf16.mxu0 0
        %2278 = vmatmul.mubr.bf16.gmra.mxu0 %v1987
        %v2279 = vpop.f32.mrf.mxu0
        %v2280 = vadd.f32 %v2033, %v2279
        %v2281 = vpop.f32.mrf.mxu0
        %v2282 = vadd.f32 %v2037, %v2281
        %v2283 = vpop.f32.mrf.mxu0
        %v2284 = vadd.f32 %v2033, %v2283
        %v2285 = vpop.f32.mrf.mxu0
        %v2286 = vadd.f32 %v2037, %v2285
        %2287 = vdwg.mxu0
        %v2288 = vmul.f32 %v2237, 0.5
        %v2289 = vmul.f32 %v2239, 0.5
        %v2290 = vmul.f32 %v2280, 0.5
        %v2291 = vmul.f32 %v2282, 0.5
        %v2292 = vmul.f32 %v2241, 0.5
        %v2293 = vmul.f32 %v2243, 0.5
        %v2294 = vmul.f32 %v2284, 0.5
        %v2295 = vmul.f32 %v2286, 0.5
        %v2296 = vmul.f32 %v2237, 0.70710677
        %v2297 = vmul.f32 %v2239, 0.70710677
        %v2298 = vmul.f32 %v2280, 0.70710677
        %v2299 = vmul.f32 %v2282, 0.70710677
        %v2300 = vmul.f32 %v2241, 0.70710677
        %v2301 = vmul.f32 %v2243, 0.70710677
        %v2302 = vmul.f32 %v2284, 0.70710677
        %v2303 = vmul.f32 %v2286, 0.70710677
        %v2304 = vand.u32 2147483647, %v2296
        %v2305 = vand.u32 2147483647, %v2297
        %v2306 = vand.u32 2147483647, %v2298
        %v2307 = vand.u32 2147483647, %v2299
        %v2308 = vand.u32 2147483647, %v2300
        %v2309 = vand.u32 2147483647, %v2301
        %v2310 = vand.u32 2147483647, %v2302
        %v2311 = vand.u32 2147483647, %v2303
        %v2312 = vmul.f32 %v2304, 0.3275911
        %v2313 = vmul.f32 %v2305, 0.3275911
        %v2314 = vmul.f32 %v2306, 0.3275911
        %v2315 = vmul.f32 %v2307, 0.3275911
        %v2316 = vmul.f32 %v2308, 0.3275911
        %v2317 = vmul.f32 %v2309, 0.3275911
        %v2318 = vmul.f32 %v2310, 0.3275911
        %v2319 = vmul.f32 %v2311, 0.3275911
        %v2320 = vadd.f32 %v2312, 1.0
        %v2321 = vadd.f32 %v2313, 1.0
        %v2322 = vadd.f32 %v2314, 1.0
        %v2323 = vadd.f32 %v2315, 1.0
        %v2324 = vadd.f32 %v2316, 1.0
        %v2325 = vadd.f32 %v2317, 1.0
        %v2326 = vadd.f32 %v2318, 1.0
        %v2327 = vadd.f32 %v2319, 1.0
        %v2328 = vrcp.pop %v2320
        %v2329 = vrcp.pop %v2321
        %v2330 = vrcp.pop %v2322
        %v2331 = vrcp.pop %v2323
        %v2332 = vrcp.pop %v2324
        %v2333 = vrcp.pop %v2325
        %v2334 = vrcp.pop %v2326
        %v2335 = vrcp.pop %v2327
        %v2336 = vmul.f32 %v2328, 1.0614054
        %v2337 = vmul.f32 %v2329, 1.0614054
        %v2338 = vmul.f32 %v2330, 1.0614054
        %v2339 = vmul.f32 %v2331, 1.0614054
        %v2340 = vmul.f32 %v2332, 1.0614054
        %v2341 = vmul.f32 %v2333, 1.0614054
        %v2342 = vmul.f32 %v2334, 1.0614054
        %v2343 = vmul.f32 %v2335, 1.0614054
        %v2344 = vadd.f32 %v2336, -1.4531521
        %v2345 = vadd.f32 %v2337, -1.4531521
        %v2346 = vadd.f32 %v2338, -1.4531521
        %v2347 = vadd.f32 %v2339, -1.4531521
        %v2348 = vadd.f32 %v2340, -1.4531521
        %v2349 = vadd.f32 %v2341, -1.4531521
        %v2350 = vadd.f32 %v2342, -1.4531521
        %v2351 = vadd.f32 %v2343, -1.4531521
        %v2352 = vmul.f32 %v2344, %v2328
        %v2353 = vmul.f32 %v2345, %v2329
        %v2354 = vmul.f32 %v2346, %v2330
        %v2355 = vmul.f32 %v2347, %v2331
        %v2356 = vmul.f32 %v2348, %v2332
        %v2357 = vmul.f32 %v2349, %v2333
        %v2358 = vmul.f32 %v2350, %v2334
        %v2359 = vmul.f32 %v2351, %v2335
        %v2360 = vadd.f32 %v2352, 1.4214138
        %v2361 = vadd.f32 %v2353, 1.4214138
        %v2362 = vadd.f32 %v2354, 1.4214138
        %v2363 = vadd.f32 %v2355, 1.4214138
        %v2364 = vadd.f32 %v2356, 1.4214138
        %v2365 = vadd.f32 %v2357, 1.4214138
        %v2366 = vadd.f32 %v2358, 1.4214138
        %v2367 = vadd.f32 %v2359, 1.4214138
        %v2368 = vmul.f32 %v2360, %v2328
        %v2369 = vmul.f32 %v2361, %v2329
        %v2370 = vmul.f32 %v2362, %v2330
        %v2371 = vmul.f32 %v2363, %v2331
        %v2372 = vmul.f32 %v2364, %v2332
        %v2373 = vmul.f32 %v2365, %v2333
        %v2374 = vmul.f32 %v2366, %v2334
        %v2375 = vmul.f32 %v2367, %v2335
        %v2376 = vadd.f32 %v2368, -0.28449672
        %v2377 = vadd.f32 %v2369, -0.28449672
        %v2378 = vadd.f32 %v2370, -0.28449672
        %v2379 = vadd.f32 %v2371, -0.28449672
        %v2380 = vadd.f32 %v2372, -0.28449672
        %v2381 = vadd.f32 %v2373, -0.28449672
        %v2382 = vadd.f32 %v2374, -0.28449672
        %v2383 = vadd.f32 %v2375, -0.28449672
        %v2384 = vmul.f32 %v2376, %v2328
        %v2385 = vmul.f32 %v2377, %v2329
        %v2386 = vmul.f32 %v2378, %v2330
        %v2387 = vmul.f32 %v2379, %v2331
        %v2388 = vmul.f32 %v2380, %v2332
        %v2389 = vmul.f32 %v2381, %v2333
        %v2390 = vmul.f32 %v2382, %v2334
        %v2391 = vmul.f32 %v2383, %v2335
        %v2392 = vadd.f32 %v2384, 0.2548296
        %v2393 = vadd.f32 %v2385, 0.2548296
        %v2394 = vadd.f32 %v2386, 0.2548296
        %v2395 = vadd.f32 %v2387, 0.2548296
        %v2396 = vadd.f32 %v2388, 0.2548296
        %v2397 = vadd.f32 %v2389, 0.2548296
        %v2398 = vadd.f32 %v2390, 0.2548296
        %v2399 = vadd.f32 %v2391, 0.2548296
        %v2400 = vmul.f32 %v2392, %v2328
        %v2401 = vmul.f32 %v2393, %v2329
        %v2402 = vmul.f32 %v2394, %v2330
        %v2403 = vmul.f32 %v2395, %v2331
        %v2404 = vmul.f32 %v2396, %v2332
        %v2405 = vmul.f32 %v2397, %v2333
        %v2406 = vmul.f32 %v2398, %v2334
        %v2407 = vmul.f32 %v2399, %v2335
        %v2408 = vsub.f32 0.0, %v2304
        %v2409 = vsub.f32 0.0, %v2305
        %v2410 = vsub.f32 0.0, %v2306
        %v2411 = vsub.f32 0.0, %v2307
        %v2412 = vsub.f32 0.0, %v2308
        %v2413 = vsub.f32 0.0, %v2309
        %v2414 = vsub.f32 0.0, %v2310
        %v2415 = vsub.f32 0.0, %v2311
        %v2416 = vmul.f32 %v2408, %v2304
        %v2417 = vmul.f32 %v2409, %v2305
        %v2418 = vmul.f32 %v2410, %v2306
        %v2419 = vmul.f32 %v2411, %v2307
        %v2420 = vmul.f32 %v2412, %v2308
        %v2421 = vmul.f32 %v2413, %v2309
        %v2422 = vmul.f32 %v2414, %v2310
        %v2423 = vmul.f32 %v2415, %v2311
        %v2424 = vmul.f32 %v2416, 1.442695
        %v2425 = vpow.pop %v2424
        %v2426 = vmul.f32 %v2417, 1.442695
        %v2427 = vpow.pop %v2426
        %v2428 = vmul.f32 %v2418, 1.442695
        %v2429 = vpow.pop %v2428
        %v2430 = vmul.f32 %v2419, 1.442695
        %v2431 = vpow.pop %v2430
        %v2432 = vmul.f32 %v2420, 1.442695
        %v2433 = vpow.pop %v2432
        %v2434 = vmul.f32 %v2421, 1.442695
        %v2435 = vpow.pop %v2434
        %v2436 = vmul.f32 %v2422, 1.442695
        %v2437 = vpow.pop %v2436
        %v2438 = vmul.f32 %v2423, 1.442695
        %v2439 = vpow.pop %v2438
        %v2440 = vmul.f32 %v2400, %v2425
        %v2441 = vmul.f32 %v2401, %v2427
        %v2442 = vmul.f32 %v2402, %v2429
        %v2443 = vmul.f32 %v2403, %v2431
        %v2444 = vmul.f32 %v2404, %v2433
        %v2445 = vmul.f32 %v2405, %v2435
        %v2446 = vmul.f32 %v2406, %v2437
        %v2447 = vmul.f32 %v2407, %v2439
        %v2448 = vsub.f32 1.0, %v2440
        %v2449 = vsub.f32 1.0, %v2441
        %v2450 = vsub.f32 1.0, %v2442
        %v2451 = vsub.f32 1.0, %v2443
        %v2452 = vsub.f32 1.0, %v2444
        %v2453 = vsub.f32 1.0, %v2445
        %v2454 = vsub.f32 1.0, %v2446
        %v2455 = vsub.f32 1.0, %v2447
        %vm2456 = vcmp.ge.f32.partialorder %v2296, 0.0
        %vm2457 = vcmp.ge.f32.partialorder %v2297, 0.0
        %vm2458 = vcmp.ge.f32.partialorder %v2298, 0.0
        %vm2459 = vcmp.ge.f32.partialorder %v2299, 0.0
        %vm2460 = vcmp.ge.f32.partialorder %v2300, 0.0
        %vm2461 = vcmp.ge.f32.partialorder %v2301, 0.0
        %vm2462 = vcmp.ge.f32.partialorder %v2302, 0.0
        %vm2463 = vcmp.ge.f32.partialorder %v2303, 0.0
        %v2464 = vsub.f32 0.0, %v2448
        %v2465 = vsub.f32 0.0, %v2449
        %v2466 = vsub.f32 0.0, %v2450
        %v2467 = vsub.f32 0.0, %v2451
        %v2468 = vsub.f32 0.0, %v2452
        %v2469 = vsub.f32 0.0, %v2453
        %v2470 = vsub.f32 0.0, %v2454
        %v2471 = vsub.f32 0.0, %v2455
        %v2472 = vsel %vm2456, %v2448, %v2464
        %v2473 = vsel %vm2457, %v2449, %v2465
        %v2474 = vsel %vm2458, %v2450, %v2466
        %v2475 = vsel %vm2459, %v2451, %v2467
        %v2476 = vsel %vm2460, %v2452, %v2468
        %v2477 = vsel %vm2461, %v2453, %v2469
        %v2478 = vsel %vm2462, %v2454, %v2470
        %v2479 = vsel %vm2463, %v2455, %v2471
        %v2480 = vadd.f32 %v2472, 1.0
        %v2481 = vadd.f32 %v2473, 1.0
        %v2482 = vadd.f32 %v2474, 1.0
        %v2483 = vadd.f32 %v2475, 1.0
        %v2484 = vadd.f32 %v2476, 1.0
        %v2485 = vadd.f32 %v2477, 1.0
        %v2486 = vadd.f32 %v2478, 1.0
        %v2487 = vadd.f32 %v2479, 1.0
        %v2488 = vmul.f32 %v2288, %v2480
        %v2489 = vmul.f32 %v2289, %v2481
        %v2490 = vmul.f32 %v2290, %v2482
        %v2491 = vmul.f32 %v2291, %v2483
        %v2492 = vmul.f32 %v2292, %v2484
        %v2493 = vmul.f32 %v2293, %v2485
        %v2494 = vmul.f32 %v2294, %v2486
        %v2495 = vmul.f32 %v2295, %v2487
        %v2496 = vpack.c.bf16 %v2492, %v2488
        %v2497 = vpack.c.bf16 %v2493, %v2489
        %v2498 = vpack.c.bf16 %v2494, %v2490
        %v2499 = vpack.c.bf16 %v2495, %v2491
        %v2500 = vld [vmem:[#allocation13] sm:$0xf]
        %v2501 = vld [vmem:[#allocation13 + $0x4] sm:$0xf]
        %v2502 = vld [vmem:[#allocation13 + $0x8] sm:$0xf]
        %v2503 = vld [vmem:[#allocation13 + $0xc] sm:$0xf]
        %v2504 = vld [vmem:[#allocation13 + $0x10] sm:$0xf]
        %v2505 = vld [vmem:[#allocation13 + $0x14] sm:$0xf]
        %v2506 = vld [vmem:[#allocation13 + $0x18] sm:$0xf]
        %v2507 = vld [vmem:[#allocation13 + $0x1c] sm:$0xf]
        %v2508 = vld [vmem:[#allocation13 + $0x20] sm:$0xf]
        %v2509 = vld [vmem:[#allocation13 + $0x24] sm:$0xf]
        %v2510 = vld [vmem:[#allocation13 + $0x28] sm:$0xf]
        %v2511 = vld [vmem:[#allocation13 + $0x2c] sm:$0xf]
        %v2512 = vld [vmem:[#allocation13 + $0x30] sm:$0xf]
        %v2513 = vld [vmem:[#allocation13 + $0x34] sm:$0xf]
        %v2514 = vld [vmem:[#allocation13 + $0x38] sm:$0xf]
        %v2515 = vld [vmem:[#allocation13 + $0x3c] sm:$0xf]
        %v2516 = vld [vmem:[#allocation13 + $0x40] sm:$0xf]
        %v2517 = vld [vmem:[#allocation13 + $0x44] sm:$0xf]
        %v2518 = vld [vmem:[#allocation13 + $0x48] sm:$0xf]
        %v2519 = vld [vmem:[#allocation13 + $0x4c] sm:$0xf]
        %v2520 = vld [vmem:[#allocation13 + $0x50] sm:$0xf]
        %v2521 = vld [vmem:[#allocation13 + $0x54] sm:$0xf]
        %v2522 = vld [vmem:[#allocation13 + $0x58] sm:$0xf]
        %v2523 = vld [vmem:[#allocation13 + $0x5c] sm:$0xf]
        %v2524 = vld [vmem:[#allocation13 + $0x60] sm:$0xf]
        %v2525 = vld [vmem:[#allocation13 + $0x64] sm:$0xf]
        %v2526 = vld [vmem:[#allocation13 + $0x68] sm:$0xf]
        %v2527 = vld [vmem:[#allocation13 + $0x6c] sm:$0xf]
        %v2528 = vld [vmem:[#allocation13 + $0x70] sm:$0xf]
        %v2529 = vld [vmem:[#allocation13 + $0x74] sm:$0xf]
        %v2530 = vld [vmem:[#allocation13 + $0x78] sm:$0xf]
        %v2531 = vld [vmem:[#allocation13 + $0x7c] sm:$0xf]
        %v2532 = vld [vmem:[#allocation13 + $0x80] sm:$0xf]
        %v2533 = vld [vmem:[#allocation13 + $0x84] sm:$0xf]
        %v2534 = vld [vmem:[#allocation13 + $0x88] sm:$0xf]
        %v2535 = vld [vmem:[#allocation13 + $0x8c] sm:$0xf]
        %v2536 = vld [vmem:[#allocation13 + $0x90] sm:$0xf]
        %v2537 = vld [vmem:[#allocation13 + $0x94] sm:$0xf]
        %v2538 = vld [vmem:[#allocation13 + $0x98] sm:$0xf]
        %v2539 = vld [vmem:[#allocation13 + $0x9c] sm:$0xf]
        %v2540 = vld [vmem:[#allocation13 + $0xa0] sm:$0xf]
        %v2541 = vld [vmem:[#allocation13 + $0xa4] sm:$0xf]
        %v2542 = vld [vmem:[#allocation13 + $0xa8] sm:$0xf]
        %v2543 = vld [vmem:[#allocation13 + $0xac] sm:$0xf]
        %v2544 = vld [vmem:[#allocation13 + $0xb0] sm:$0xf]
        %v2545 = vld [vmem:[#allocation13 + $0xb4] sm:$0xf]
        %v2546 = vld [vmem:[#allocation13 + $0xb8] sm:$0xf]
        %v2547 = vld [vmem:[#allocation13 + $0xbc] sm:$0xf]
        %v2548 = vld [vmem:[#allocation13 + $0xc0] sm:$0xf]
        %v2549 = vld [vmem:[#allocation13 + $0xc4] sm:$0xf]
        %v2550 = vld [vmem:[#allocation13 + $0xc8] sm:$0xf]
        %v2551 = vld [vmem:[#allocation13 + $0xcc] sm:$0xf]
        %v2552 = vld [vmem:[#allocation13 + $0xd0] sm:$0xf]
        %v2553 = vld [vmem:[#allocation13 + $0xd4] sm:$0xf]
        %v2554 = vld [vmem:[#allocation13 + $0xd8] sm:$0xf]
        %v2555 = vld [vmem:[#allocation13 + $0xdc] sm:$0xf]
        %v2556 = vld [vmem:[#allocation13 + $0xe0] sm:$0xf]
        %v2557 = vld [vmem:[#allocation13 + $0xe4] sm:$0xf]
        %v2558 = vld [vmem:[#allocation13 + $0xe8] sm:$0xf]
        %v2559 = vld [vmem:[#allocation13 + $0xec] sm:$0xf]
        %v2560 = vld [vmem:[#allocation13 + $0xf0] sm:$0xf]
        %v2561 = vld [vmem:[#allocation13 + $0xf4] sm:$0xf]
        %v2562 = vld [vmem:[#allocation13 + $0xf8] sm:$0xf]
        %v2563 = vld [vmem:[#allocation13 + $0xfc] sm:$0xf]
        %v2564 = vld [vmem:[%s11] sm:$0x1]
        %v2566 = vlaneseq
        %v2567 = vshrl.u32 %v2566, 7
        %v2568 = vsub.s32 0, %v2567
        %v2569 = vrot.slane %v2564, %v2568
        %v2635 = vunpack.c.l.b16 %v2500
        %v2636 = vunpack.c.l.b16 %v2501
        %v2637 = vunpack.c.l.b16 %v2502
        %v2638 = vunpack.c.l.b16 %v2503
        %v2639 = vunpack.c.l.b16 %v2504
        %v2640 = vunpack.c.l.b16 %v2505
        %v2641 = vunpack.c.l.b16 %v2506
        %v2642 = vunpack.c.l.b16 %v2507
        %v2643 = vunpack.c.l.b16 %v2508
        %v2644 = vunpack.c.l.b16 %v2509
        %v2645 = vunpack.c.l.b16 %v2510
        %v2646 = vunpack.c.l.b16 %v2511
        %v2647 = vunpack.c.l.b16 %v2512
        %v2648 = vunpack.c.l.b16 %v2513
        %v2649 = vunpack.c.l.b16 %v2514
        %v2650 = vunpack.c.l.b16 %v2515
        %v2651 = vunpack.c.l.b16 %v2516
        %v2652 = vunpack.c.l.b16 %v2517
        %v2653 = vunpack.c.l.b16 %v2518
        %v2654 = vunpack.c.l.b16 %v2519
        %v2655 = vunpack.c.l.b16 %v2520
        %v2656 = vunpack.c.l.b16 %v2521
        %v2657 = vunpack.c.l.b16 %v2522
        %v2658 = vunpack.c.l.b16 %v2523
        %v2659 = vunpack.c.l.b16 %v2524
        %v2660 = vunpack.c.l.b16 %v2525
        %v2661 = vunpack.c.l.b16 %v2526
        %v2662 = vunpack.c.l.b16 %v2527
        %v2663 = vunpack.c.l.b16 %v2528
        %v2664 = vunpack.c.l.b16 %v2529
        %v2665 = vunpack.c.l.b16 %v2530
        %v2666 = vunpack.c.l.b16 %v2531
        %v2667 = vunpack.c.l.b16 %v2532
        %v2668 = vunpack.c.l.b16 %v2533
        %v2669 = vunpack.c.l.b16 %v2534
        %v2670 = vunpack.c.l.b16 %v2535
        %v2671 = vunpack.c.l.b16 %v2536
        %v2672 = vunpack.c.l.b16 %v2537
        %v2673 = vunpack.c.l.b16 %v2538
        %v2674 = vunpack.c.l.b16 %v2539
        %v2675 = vunpack.c.l.b16 %v2540
        %v2676 = vunpack.c.l.b16 %v2541
        %v2677 = vunpack.c.l.b16 %v2542
        %v2678 = vunpack.c.l.b16 %v2543
        %v2679 = vunpack.c.l.b16 %v2544
        %v2680 = vunpack.c.l.b16 %v2545
        %v2681 = vunpack.c.l.b16 %v2546
        %v2682 = vunpack.c.l.b16 %v2547
        %v2683 = vunpack.c.l.b16 %v2548
        %v2684 = vunpack.c.l.b16 %v2549
        %v2685 = vunpack.c.l.b16 %v2550
        %v2686 = vunpack.c.l.b16 %v2551
        %v2687 = vunpack.c.l.b16 %v2552
        %v2688 = vunpack.c.l.b16 %v2553
        %v2689 = vunpack.c.l.b16 %v2554
        %v2690 = vunpack.c.l.b16 %v2555
        %v2691 = vunpack.c.l.b16 %v2556
        %v2692 = vunpack.c.l.b16 %v2557
        %v2693 = vunpack.c.l.b16 %v2558
        %v2694 = vunpack.c.l.b16 %v2559
        %v2695 = vunpack.c.l.b16 %v2560
        %v2696 = vunpack.c.l.b16 %v2561
        %v2697 = vunpack.c.l.b16 %v2562
        %v2698 = vunpack.c.l.b16 %v2563
        %v2699 = vpack.c.b16 %v2636, %v2635
        %v2700 = vpack.c.b16 %v2638, %v2637
        %v2701 = vpack.c.b16 %v2640, %v2639
        %v2702 = vpack.c.b16 %v2642, %v2641
        %v2703 = vpack.c.b16 %v2644, %v2643
        %v2704 = vpack.c.b16 %v2646, %v2645
        %v2705 = vpack.c.b16 %v2648, %v2647
        %v2706 = vpack.c.b16 %v2650, %v2649
        %v2707 = vpack.c.b16 %v2652, %v2651
        %v2708 = vpack.c.b16 %v2654, %v2653
        %v2709 = vpack.c.b16 %v2656, %v2655
        %v2710 = vpack.c.b16 %v2658, %v2657
        %v2711 = vpack.c.b16 %v2660, %v2659
        %v2712 = vpack.c.b16 %v2662, %v2661
        %v2713 = vpack.c.b16 %v2664, %v2663
        %v2714 = vpack.c.b16 %v2666, %v2665
        %v2715 = vpack.c.b16 %v2668, %v2667
        %v2716 = vpack.c.b16 %v2670, %v2669
        %v2717 = vpack.c.b16 %v2672, %v2671
        %v2718 = vpack.c.b16 %v2674, %v2673
        %v2719 = vpack.c.b16 %v2676, %v2675
        %v2720 = vpack.c.b16 %v2678, %v2677
        %v2721 = vpack.c.b16 %v2680, %v2679
        %v2722 = vpack.c.b16 %v2682, %v2681
        %v2723 = vpack.c.b16 %v2684, %v2683
        %v2724 = vpack.c.b16 %v2686, %v2685
        %v2725 = vpack.c.b16 %v2688, %v2687
        %v2726 = vpack.c.b16 %v2690, %v2689
        %v2727 = vpack.c.b16 %v2692, %v2691
        %v2728 = vpack.c.b16 %v2694, %v2693
        %v2729 = vpack.c.b16 %v2696, %v2695
        %v2730 = vpack.c.b16 %v2698, %v2697
        %2763 = vmatprep.subr.bf16.mxu0 0
        %2764 = vmatpush1.bf16.msra.mxu0 %v2706
        %2765 = vmatprep.subr.bf16.mxu0 0
        %2766 = vmatpush1.bf16.msra.mxu0 %v2705
        %2767 = vmatprep.subr.bf16.mxu0 0
        %2768 = vmatpush1.bf16.msra.mxu0 %v2704
        %2769 = vmatprep.subr.bf16.mxu0 0
        %2770 = vmatpush1.bf16.msra.mxu0 %v2703
        %2771 = vmatprep.subr.bf16.mxu0 0
        %2772 = vmatpush1.bf16.msra.mxu0 %v2702
        %2773 = vmatprep.subr.bf16.mxu0 0
        %2774 = vmatpush1.bf16.msra.mxu0 %v2701
        %2775 = vmatprep.subr.bf16.mxu0 0
        %2776 = vmatpush1.bf16.msra.mxu0 %v2700
        %2777 = vmatprep.subr.bf16.mxu0 0
        %2778 = vmatpush1.bf16.msra.mxu0 %v2699
        %2779 = vmatprep.subr.bf16.mxu0 0
        %2780 = vmatpush2.bf16.msra.mxu0 %v2714
        %2781 = vmatprep.subr.bf16.mxu0 0
        %2782 = vmatpush2.bf16.msra.mxu0 %v2713
        %2783 = vmatprep.subr.bf16.mxu0 0
        %2784 = vmatpush2.bf16.msra.mxu0 %v2712
        %2785 = vmatprep.subr.bf16.mxu0 0
        %2786 = vmatpush2.bf16.msra.mxu0 %v2711
        %2787 = vmatprep.subr.bf16.mxu0 0
        %2788 = vmatpush2.bf16.msra.mxu0 %v2710
        %2789 = vmatprep.subr.bf16.mxu0 0
        %2790 = vmatpush2.bf16.msra.mxu0 %v2709
        %2791 = vmatprep.subr.bf16.mxu0 0
        %2792 = vmatpush2.bf16.msra.mxu0 %v2708
        %2793 = vmatprep.subr.bf16.mxu0 0
        %2794 = vmatpush2.bf16.msra.mxu0 %v2707
        %2795 = vmatprep.mubr.bf16.mxu0 %v2497
        %2796 = vmatmul.mubr.bf16.gmra.mxu0 %v2496
        %v2797 = vpop.f32.mrf.mxu0
        %v2798 = vadd.f32 %v2569, %v2797
        %v2799 = vpop.f32.mrf.mxu0
        %v2800 = vpop.f32.mrf.mxu0
        %v2801 = vadd.f32 %v2569, %v2800
        %v2802 = vpop.f32.mrf.mxu0
        %2803 = vdwg.mxu0
        %2804 = vmatprep.subr.bf16.mxu0 0
        %2805 = vmatpush1.bf16.msra.mxu0 %v2722
        %2806 = vmatprep.subr.bf16.mxu0 0
        %2807 = vmatpush1.bf16.msra.mxu0 %v2721
        %2808 = vmatprep.subr.bf16.mxu0 0
        %2809 = vmatpush1.bf16.msra.mxu0 %v2720
        %2810 = vmatprep.subr.bf16.mxu0 0
        %2811 = vmatpush1.bf16.msra.mxu0 %v2719
        %2812 = vmatprep.subr.bf16.mxu0 0
        %2813 = vmatpush1.bf16.msra.mxu0 %v2718
        %2814 = vmatprep.subr.bf16.mxu0 0
        %2815 = vmatpush1.bf16.msra.mxu0 %v2717
        %2816 = vmatprep.subr.bf16.mxu0 0
        %2817 = vmatpush1.bf16.msra.mxu0 %v2716
        %2818 = vmatprep.subr.bf16.mxu0 0
        %2819 = vmatpush1.bf16.msra.mxu0 %v2715
        %2820 = vmatprep.subr.bf16.mxu0 0
        %2821 = vmatpush2.bf16.msra.mxu0 %v2730
        %2822 = vmatprep.subr.bf16.mxu0 0
        %2823 = vmatpush2.bf16.msra.mxu0 %v2729
        %2824 = vmatprep.subr.bf16.mxu0 0
        %2825 = vmatpush2.bf16.msra.mxu0 %v2728
        %2826 = vmatprep.subr.bf16.mxu0 0
        %2827 = vmatpush2.bf16.msra.mxu0 %v2727
        %2828 = vmatprep.subr.bf16.mxu0 0
        %2829 = vmatpush2.bf16.msra.mxu0 %v2726
        %2830 = vmatprep.subr.bf16.mxu0 0
        %2831 = vmatpush2.bf16.msra.mxu0 %v2725
        %2832 = vmatprep.subr.bf16.mxu0 0
        %2833 = vmatpush2.bf16.msra.mxu0 %v2724
        %2834 = vmatprep.subr.bf16.mxu0 0
        %2835 = vmatpush2.bf16.msra.mxu0 %v2723
        %2836 = vmatprep.mubr.bf16.mxu0 %v2499
        %2837 = vmatmul.mubr.bf16.gmra.mxu0 %v2498
        %v2838 = vpop.f32.mrf.mxu0
        %v2839 = vadd.f32 %v2798, %v2838
        %v2840 = vpop.f32.mrf.mxu0
        %v2841 = vpop.f32.mrf.mxu0
        %v2842 = vadd.f32 %v2801, %v2841
        %v2843 = vpop.f32.mrf.mxu0
        %2844 = vdwg.mxu0
        %v2845 = vadd.f32 %v1944, %v2839
        %v2846 = vadd.f32 %v1945, %v2842
        %2847 = vst [vmem:[%s503] sm:$0xff] %v2845
        %2848 = vst [vmem:[%s503 + $0x8] sm:$0xff] %v2846
        %s2849 = sand.u32 %s310, 1
        %s2850 = scalar_lea.sflag [#allocation7], %s2849
        %s2851 = sand.u32 %s310, 1
        %s2852 = smul.addr %s2851, 16
        %s2853 = scalar_lea.vmem [#allocation14], %s2852
        // Predicated region
        $region93: #{tpu_custom_call.1} parent=67 // pred_check
          %p2854 = pneg %p320
        $region94: #{tpu_custom_call.1} parent=67 // pred_check_branch
          %2856 = sbr.rel (%p2854) target = $region96
        $region95: #{tpu_custom_call.1} parent=67 // pred_region
          %s2857 = smul.u32 2, %s36
          %s2859 = ssub.s32 256, 256
          %2860 = vsyncadd %s2850, %s2859
          %s2861 = smul.addr %s35, 4
          %s2862 = sadd.s32 %s2857, %s2861
          %s2863 = smul.addr %s2862, 128
          %s2864 = scalar_lea.hbm %s12, %s2863
          %s2865 = sshll.u32 %s2853, 4
          %s2866 = int_to_ptr.vmem [resolvable:$true] %s2865
          %2871 = dma.vmem_to_hbm [thread:$0]  %s2866, 256, %s2864, %s2850, 128, 128, 8
        $region96: #{tpu_custom_call.1} parent=67 // pred_fallthru
          _
      $region68: #{tpu_custom_call.1} parent=5 // pred_fallthru
        _
      %p2872 = scmp.le.s32.totalorder 2, %s26
      // Predicated region
      $region97: #{tpu_custom_call.1} parent=5 // pred_check
        %p2873 = pneg %p2872
      $region98: #{tpu_custom_call.1} parent=5 // pred_check_branch
        %2875 = sbr.rel (%p2873) target = $region100
      $region99: #{tpu_custom_call.1} parent=5 // pred_region
        %s2876 = ssub.s32 %s26, 2
        // Predicated region
        $region101: #{tpu_custom_call.1} parent=99 // pred_check
          %p2877 = pneg %p326
        $region102: #{tpu_custom_call.1} parent=99 // pred_check_branch
          %2879 = sbr.rel (%p2877) target = $region104
        $region103: #{tpu_custom_call.1} parent=99 // pred_region
          %s2880 = sand.u32 %s311, 1
          %s2881 = scalar_lea.sflag [#allocation7], %s2880
          %s2882 = sand.u32 %s311, 1
          %s2883 = smul.addr %s2882, 16
          %s2884 = scalar_lea.vmem [#allocation14], %s2883
          %2885 = dma.done %s2881, 256
        $region104: #{tpu_custom_call.1} parent=99 // pred_fallthru
          _
      $region100: #{tpu_custom_call.1} parent=5 // pred_fallthru
        _
    $region6: #{tpu_custom_call.1} parent=1 // loop_footer
      %s30 = sadd.s32 1, %s26
    $region7: #{tpu_custom_call.1} parent=1 // loop_footer_branch
      %25 = sbr.rel target = $region3
    $region8: #{tpu_custom_call.1} parent=1 // loop_exit
      _
    %2886 = vsyncpa [#allocation6], 1
    %s2887 = scalar_lea.sflag [#allocation6], 1
    %2888 = vsyncpa %s2887, 1
    %2889 = vsyncpa [#allocation9], 1
    %2890 = vsyncpa [#allocation12], 1
    %2891 = vsyncpa [#allocation7], 1
    %s2892 = scalar_lea.sflag [#allocation7], 1
    %2893 = vsyncpa %s2892, 1

</llo_original>
